<compile_context>
chip_gen: v5e
topology: v5e:2x2
jax: 0.10.0
libtpu: 0.0.40
codegen_flags: <defaults>
</compile_context>

<pallas_src>
import numpy as np

import jax
import jax.numpy as jnp
from jax.experimental import pallas as pl
from jax.experimental.pallas import tpu as pltpu

# ----------------------------- configuration --------------------------------
B = 2            # batch
IMG = 16         # img_size
PATCH = 4        # swin patch size
HP = WP = IMG // PATCH
L0 = HP * WP     # tokens after patch embed (16)
C0 = 32          # embed dim (global_feature_channels)
HEADS0 = 4
C1 = 2 * C0      # dim after patch merging (64)
L1 = (HP // 2) * (WP // 2)
HEADS1 = 4
MLP_RATIO = 4
MLP0 = C0 * MLP_RATIO
MLP1 = C1 * MLP_RATIO
PRCF_R = 16      # prcf_reduction_ratio
SE_H = max(1, C0 // PRCF_R)
NUM_CLASSES = 5  # num_dr_classes
HEAD_PAD = 128   # lane-dense padded logits width
EPS = 1e-5
NEG_INF = -1e9


# ------------------------- packed-slab layout (static) ------------------------
def _layout(entries, align):
    """entries: [(name, nrows, ncols)] -> ({name: (row_off, nrows, ncols)}, total_rows)."""
    offs, r = {}, 0
    for name, nr, nc in entries:
        r = ((r + align - 1) // align) * align
        offs[name] = (r, nr, nc)
        r += nr
    return offs, ((r + align - 1) // align) * align


# stage-0 / PRCF matmul weights + constant selection matrices (bf16, 128 lanes)
_W0_ENTRIES = [
    ("pe_w", 3 * PATCH * PATCH, C0),
    ("pp_w", 3 * PATCH * PATCH, C0),
    ("qkv0", C0, 3 * C0),
    ("wo0", C0, C0),
    ("fc1_0", C0, MLP0),
    ("fc2_0", MLP0, C0),
    ("se_w1", C0, SE_H),
    ("se_w2", SE_H, C0),
    ("pool0", B, B * L0),
    ("expand0", B * L0, B),
    ("msel", 4 * B * L1, B * L0),
]
W0_OFF, W0_ROWS = _layout(_W0_ENTRIES, 16)
W0_WIDTH = 128

# patch-merge / stage-1 / head matmul weights (bf16, 256 lanes)
_W1_ENTRIES = [
    ("pm_w", 4 * C0, C1),
    ("qkv1", C1, 3 * C1),
    ("wo1", C1, C1),
    ("fc1_1", C1, MLP1),
    ("fc2_1", MLP1, C1),
    ("head_w", C1, HEAD_PAD),
    ("pool1", B, B * L1),
]
W1_OFF, W1_ROWS = _layout(_W1_ENTRIES, 16)
W1_WIDTH = 256

# every 1-row bias / LN gain vector + additive batch masks (f32, 256 lanes)
_V_ENTRIES = [
    ("pe_b", 1, C0), ("pe_ln_g", 1, C0), ("pe_ln_b", 1, C0), ("pp_b", 1, C0),
    ("se_b1", 1, SE_H), ("se_b2", 1, C0),
    ("ln1_g0", 1, C0), ("ln1_b0", 1, C0), ("b_qkv0", 1, 3 * C0), ("b_o0", 1, C0),
    ("ln2_g0", 1, C0), ("ln2_b0", 1, C0), ("b_fc1_0", 1, MLP0), ("b_fc2_0", 1, C0),
    ("pm_ln_g", 1, 4 * C0), ("pm_ln_b", 1, 4 * C0), ("pm_b", 1, C1),
    ("ln1_g1", 1, C1), ("ln1_b1", 1, C1), ("b_qkv1", 1, 3 * C1), ("b_o1", 1, C1),
    ("ln2_g1", 1, C1), ("ln2_b1", 1, C1), ("b_fc1_1", 1, MLP1), ("b_fc2_1", 1, C1),
    ("fn_g", 1, C1), ("fn_b", 1, C1), ("head_b", 1, HEAD_PAD),
    ("mask0", B * L0, B * L0), ("mask1", B * L1, B * L1),
]
V_OFF, V_ROWS = _layout(_V_ENTRIES, 8)
V_WIDTH = 256


def _slab(ref, offs, name):
    """Static VMEM-resident view of one packed entry."""
    r, nr, nc = offs[name]
    return ref[r:r + nr, :nc]


# --------------------------- in-kernel building blocks ------------------------
def _mxu(a, b):
    """bf16 MXU matmul with f32 accumulate."""
    return jnp.dot(a.astype(jnp.bfloat16), b.astype(jnp.bfloat16),
                   preferred_element_type=jnp.float32)


def _layernorm(x, g, b):
    mu = jnp.mean(x, axis=-1, keepdims=True)
    var = jnp.mean((x - mu) ** 2, axis=-1, keepdims=True)
    return (x - mu) * jax.lax.rsqrt(var + EPS) * g + b


def _swin_block(x, mask_bias, ln1_g, ln1_b, w_qkv, b_qkv, w_o, b_o,
                ln2_g, ln2_b, w_fc1, b_fc1, w_fc2, b_fc2, heads):
    """Pre-norm transformer block on an [R, C] tile, all values resident in VMEM.

    Attention runs over all R = B*L rows at once; cross-batch interaction is
    removed with the additive block-diagonal mask_bias.
    TODO(synk): shifted-window partitioning + relative position bias omitted.
    """
    C = x.shape[-1]
    Dh = C // heads
    scale = 1.0 / float(Dh) ** 0.5

    h = _layernorm(x, ln1_g, ln1_b)
    qkv = _mxu(h, w_qkv) + b_qkv                           # [R, 3C] f32
    q = (qkv[:, 0 * C:1 * C] * scale).astype(jnp.bfloat16)  # scale folded once
    k = qkv[:, 1 * C:2 * C].astype(jnp.bfloat16)
    v = qkv[:, 2 * C:3 * C].astype(jnp.bfloat16)

    attn_out = None
    for hd in range(heads):                                 # unrolled, tiny
        lo, hi = hd * Dh, (hd + 1) * Dh
        # q @ k^T without materializing a transpose (NT dot_general).
        s = jax.lax.dot_general(q[:, lo:hi], k[:, lo:hi],
                                (((1,), (1,)), ((), ())),
                                preferred_element_type=jnp.float32)
        s = s + mask_bias                                   # [R, R]
        m = jnp.max(s, axis=-1, keepdims=True)
        p = jnp.exp(s - m)
        denom = jnp.sum(p, axis=-1, keepdims=True)
        acc = _mxu(p, v[:, lo:hi])                          # [R, Dh]
        acc = acc * pl.reciprocal(denom, approx=True)
        # per-head output projection, accumulated (no lane concatenate)
        ho = _mxu(acc, w_o[lo:hi, :])
        attn_out = ho if attn_out is None else attn_out + ho

    x = x + attn_out + b_o                                  # residual in-kernel
    h2 = _layernorm(x, ln2_g, ln2_b)
    # TODO(synk): tanh-approx GELU (PyTorch nn.GELU default is exact erf).
    h2 = jax.nn.gelu(_mxu(h2, w_fc1) + b_fc1)
    x = x + _mxu(h2, w_fc2) + b_fc2
    return x


# ------------------------------- fused kernel ---------------------------------
def _wsl_dr_kernel(patches_ref, w0_ref, w1_ref, v_ref, o_ref, xm_ref):
    """Whole forward pass: patch-embed + PRCF + stage0 + merge + stage1 + head."""
    def w0(name): return _slab(w0_ref, W0_OFF, name)
    def w1(name): return _slab(w1_ref, W1_OFF, name)
    def vv(name): return _slab(v_ref, V_OFF, name)

    patches = patches_ref[...].astype(jnp.bfloat16)         # [B*L0, 48]

    # patch embed (conv k=s=PATCH as matmul) + LayerNorm
    tok = _mxu(patches, w0("pe_w")) + vv("pe_b")
    tok = _layernorm(tok, vv("pe_ln_g"), vv("pe_ln_b"))      # [B*L0, C0]

    # lesion-prompt projection (patch-avg pooling folded into pp_w at pack time)
    p_proj = _mxu(patches, w0("pp_w")) + vv("pp_b")

    # PRCF: SE channel attention on mean-pooled (tok + p_proj)
    fused = tok + p_proj
    pooled = _mxu(w0("pool0"), fused)                        # [B, C0]
    a = jnp.maximum(_mxu(pooled, w0("se_w1")) + vv("se_b1"), 0.0)
    a = _mxu(a, w0("se_w2")) + vv("se_b2")                   # [B, C0] logits
    gate = _mxu(w0("expand0"), jax.nn.sigmoid(a))            # [B*L0, C0]
    x = tok * gate + p_proj

    # swin stage 0
    x = _swin_block(x, vv("mask0"),
                    vv("ln1_g0"), vv("ln1_b0"), w0("qkv0"), vv("b_qkv0"),
                    w0("wo0"), vv("b_o0"), vv("ln2_g0"), vv("ln2_b0"),
                    w0("fc1_0"), vv("b_fc1_0"), w0("fc2_0"), vv("b_fc2_0"),
                    HEADS0)

    # 2x2 patch merging in-kernel: 4 constant row-selection matmuls,
    # static lane-offset writes into the VMEM scratch (no HBM round trip).
    msel = w0("msel")                                        # [4*B*L1, B*L0]
    xb = x.astype(jnp.bfloat16)
    for k in range(4):
        sel = msel[k * B * L1:(k + 1) * B * L1, :]
        xm_ref[:, k * C0:(k + 1) * C0] = jnp.dot(
            sel, xb, preferred_element_type=jnp.float32)
    xm = xm_ref[...]                                         # [B*L1, 4*C0]

    xm = _layernorm(xm, vv("pm_ln_g"), vv("pm_ln_b"))
    x1 = _mxu(xm, w1("pm_w")) + vv("pm_b")                   # [B*L1, C1]

    # swin stage 1
    x1 = _swin_block(x1, vv("mask1"),
                     vv("ln1_g1"), vv("ln1_b1"), w1("qkv1"), vv("b_qkv1"),
                     w1("wo1"), vv("b_o1"), vv("ln2_g1"), vv("ln2_b1"),
                     w1("fc1_1"), vv("b_fc1_1"), w1("fc2_1"), vv("b_fc2_1"),
                     HEADS1)

    # final norm + token mean-pool + classifier head (lane-dense padded logits)
    h = _layernorm(x1, vv("fn_g"), vv("fn_b"))
    pooled1 = _mxu(w1("pool1"), h)                           # [B, C1]
    o_ref[...] = _mxu(pooled1, w1("head_w")) + vv("head_b")  # [B, HEAD_PAD]


# ------------------------------ pallas wrapper ---------------------------------
def _fused_forward(patches, w0_slab, w1_slab, v_slab):
    args = (patches, w0_slab, w1_slab, v_slab)

    def _spec(a):
        nd = a.ndim
        return pl.BlockSpec(a.shape, lambda i, _nd=nd: (0,) * _nd)

    return pl.pallas_call(
        _wsl_dr_kernel,
        out_shape=jax.ShapeDtypeStruct((B, HEAD_PAD), jnp.float32),
        grid=(1,),
        in_specs=[_spec(a) for a in args],
        out_specs=pl.BlockSpec((B, HEAD_PAD), lambda i: (0, 0)),
        scratch_shapes=[pltpu.VMEM((B * L1, 4 * C0), jnp.float32)],
        compiler_params=pltpu.CompilerParams(
            dimension_semantics=("arbitrary",)),
    )(*args)


# ------------------------------ parameter init --------------------------------
class _KeyGen:
    def __init__(self, key):
        self._key = key

    def __call__(self):
        self._key, sub = jax.random.split(self._key)
        return sub


def _w(kg, shape, scale=0.02):
    return scale * jax.random.normal(kg(), shape, dtype=jnp.float32)


def _block_params(kg, C, mlp_ratio):
    H = C * mlp_ratio
    return dict(
        ln1_g=jnp.ones((C,), jnp.float32), ln1_b=jnp.zeros((C,), jnp.float32),
        w_qkv=_w(kg, (C, 3 * C)), b_qkv=jnp.zeros((3 * C,), jnp.float32),
        w_o=_w(kg, (C, C)), b_o=jnp.zeros((C,), jnp.float32),
        ln2_g=jnp.ones((C,), jnp.float32), ln2_b=jnp.zeros((C,), jnp.float32),
        w_fc1=_w(kg, (C, H)), b_fc1=jnp.zeros((H,), jnp.float32),
        w_fc2=_w(kg, (H, C)), b_fc2=jnp.zeros((C,), jnp.float32),
    )


def init_params(key):
    kg = _KeyGen(key)
    return dict(
        pe_w=_w(kg, (3 * PATCH * PATCH, C0)), pe_b=jnp.zeros((C0,), jnp.float32),
        pe_ln_g=jnp.ones((C0,), jnp.float32), pe_ln_b=jnp.zeros((C0,), jnp.float32),
        pp_w=_w(kg, (3, C0)), pp_b=jnp.zeros((C0,), jnp.float32),
        se_w1=_w(kg, (C0, SE_H)), se_b1=jnp.zeros((SE_H,), jnp.float32),
        se_w2=_w(kg, (SE_H, C0)), se_b2=jnp.zeros((C0,), jnp.float32),
        s0=_block_params(kg, C0, MLP_RATIO),
        pm=dict(
            pm_ln_g=jnp.ones((4 * C0,), jnp.float32),
            pm_ln_b=jnp.zeros((4 * C0,), jnp.float32),
            pm_w=_w(kg, (4 * C0, C1)), pm_b=jnp.zeros((C1,), jnp.float32),
        ),
        s1=_block_params(kg, C1, MLP_RATIO),
        fn_g=jnp.ones((C1,), jnp.float32), fn_b=jnp.zeros((C1,), jnp.float32),
        head_w=_w(kg, (C1, NUM_CLASSES)), head_b=jnp.zeros((NUM_CLASSES,), jnp.float32),
    )


# ----------------------- one-time packing (hoisted constants) ------------------
def _pack(entries, offs, total_rows, width, values, dtype):
    slab = np.zeros((total_rows, width), np.float32)
    for name, nr, nc in entries:
        r, _, _ = offs[name]
        slab[r:r + nr, :nc] = np.asarray(values[name], np.float32).reshape(nr, nc)
    return jnp.asarray(slab, dtype)


def pack_params(params):
    """Build the 3 lane-padded slabs + bake every constant matrix, once."""
    # TODO(synk): Grad-CAM on a frozen CNN (create_prompt_from_image) has no clean
    # Pallas equivalent; replaced by a deterministic patch-average-pooled prompt,
    # whose pooling is linear and therefore folded into the 1x1 prompt projection.
    pool_patch = np.tile(np.eye(3, dtype=np.float32),
                         (PATCH * PATCH, 1)) / (PATCH * PATCH)     # [48, 3]
    pp_w_eff = pool_patch @ np.asarray(params["pp_w"], np.float32)  # [48, C0]

    # token mean-pool / gate broadcast / batch masks (constants)
    eyeB = np.eye(B, dtype=np.float32)
    pool0 = np.repeat(eyeB, L0, axis=1) / L0                        # [B, B*L0]
    expand0 = np.repeat(eyeB, L0, axis=0)                           # [B*L0, B]
    pool1 = np.repeat(eyeB, L1, axis=1) / L1                        # [B, B*L1]
    bid0 = np.repeat(np.arange(B), L0)
    mask0 = np.where(bid0[:, None] == bid0[None, :], 0.0, NEG_INF).astype(np.float32)
    bid1 = np.repeat(np.arange(B), L1)
    mask1 = np.where(bid1[:, None] == bid1[None, :], 0.0, NEG_INF).astype(np.float32)

    # 2x2 patch-merging row-selection matrices (timm channel order:
    # (2i,2j), (2i+1,2j), (2i,2j+1), (2i+1,2j+1)), stacked as 4 x [B*L1, B*L0].
    msel = np.zeros((4, B * L1, B * L0), np.float32)
    WP2 = WP // 2
    for b in range(B):
        for i in range(HP // 2):
            for j in range(WP2):
                dst = b * L1 + i * WP2 + j
                src = [(2 * i) * WP + 2 * j, (2 * i + 1) * WP + 2 * j,
                       (2 * i) * WP + 2 * j + 1, (2 * i + 1) * WP + 2 * j + 1]
                for k in range(4):
                    msel[k, dst, b * L0 + src[k]] = 1.0
    msel = msel.reshape(4 * B * L1, B * L0)

    # lane-dense padded classifier head
    head_w_pad = np.zeros((C1, HEAD_PAD), np.float32)
    head_w_pad[:, :NUM_CLASSES] = np.asarray(params["head_w"], np.float32)
    head_b_pad = np.zeros((HEAD_PAD,), np.float32)
    head_b_pad[:NUM_CLASSES] = np.asarray(params["head_b"], np.float32)

    s0, s1, pm = params["s0"], params["s1"], params["pm"]
    w0_vals = dict(
        pe_w=params["pe_w"], pp_w=pp_w_eff, qkv0=s0["w_qkv"], wo0=s0["w_o"],
        fc1_0=s0["w_fc1"], fc2_0=s0["w_fc2"], se_w1=params["se_w1"],
        se_w2=params["se_w2"], pool0=pool0, expand0=expand0, msel=msel)
    w1_vals = dict(
        pm_w=pm["pm_w"], qkv1=s1["w_qkv"], wo1=s1["w_o"], fc1_1=s1["w_fc1"],
        fc2_1=s1["w_fc2"], head_w=head_w_pad, pool1=pool1)
    v_vals = dict(
        pe_b=params["pe_b"], pe_ln_g=params["pe_ln_g"], pe_ln_b=params["pe_ln_b"],
        pp_b=params["pp_b"], se_b1=params["se_b1"], se_b2=params["se_b2"],
        ln1_g0=s0["ln1_g"], ln1_b0=s0["ln1_b"], b_qkv0=s0["b_qkv"], b_o0=s0["b_o"],
        ln2_g0=s0["ln2_g"], ln2_b0=s0["ln2_b"], b_fc1_0=s0["b_fc1"], b_fc2_0=s0["b_fc2"],
        pm_ln_g=pm["pm_ln_g"], pm_ln_b=pm["pm_ln_b"], pm_b=pm["pm_b"],
        ln1_g1=s1["ln1_g"], ln1_b1=s1["ln1_b"], b_qkv1=s1["b_qkv"], b_o1=s1["b_o"],
        ln2_g1=s1["ln2_g"], ln2_b1=s1["ln2_b"], b_fc1_1=s1["b_fc1"], b_fc2_1=s1["b_fc2"],
        fn_g=params["fn_g"], fn_b=params["fn_b"], head_b=head_b_pad,
        mask0=mask0, mask1=mask1)

    return dict(
        w0=_pack(_W0_ENTRIES, W0_OFF, W0_ROWS, W0_WIDTH, w0_vals, jnp.bfloat16),
        w1=_pack(_W1_ENTRIES, W1_OFF, W1_ROWS, W1_WIDTH, w1_vals, jnp.bfloat16),
        v=_pack(_V_ENTRIES, V_OFF, V_ROWS, V_WIDTH, v_vals, jnp.float32),
    )


# ---------------------------------- forward ------------------------------------
def forward(packed, x_original_image):
    """x_original_image: [B, 3, IMG, IMG] float32 (NCHW, like PyTorch)."""
    assert x_original_image.shape == (B, 3, IMG, IMG)
    # pure layout: NCHW image -> flattened patches [B*L0, PATCH*PATCH*3]
    x_nhwc = jnp.transpose(x_original_image, (0, 2, 3, 1))
    patches = x_nhwc.reshape(B, HP, PATCH, WP, PATCH, 3)
    patches = patches.transpose(0, 1, 3, 2, 4, 5).reshape(B * L0, PATCH * PATCH * 3)

    logits_pad = _fused_forward(patches, packed["w0"], packed["w1"], packed["v"])
    return logits_pad[:, :NUM_CLASSES]                               # [B, NUM_CLASSES]


# ---------------------------------- main --------------------------------------
if __name__ == "__main__":
    key = jax.random.PRNGKey(0)
    kp, kx = jax.random.split(key)
    params = init_params(kp)
    packed = pack_params(params)          # built once, off the forward path
    x = jax.random.normal(kx, (B, 3, IMG, IMG), dtype=jnp.float32)

    fwd = jax.jit(forward)
    logits = fwd(packed, x)
    jax.block_until_ready(logits)
    assert logits.shape == (B, NUM_CLASSES)
    assert bool(jnp.all(jnp.isfinite(logits)))
    print("KERNEL_OK")
</pallas_src>

<mosaic_0001>
module attributes {stable_mosaic.version = 11 : i64} {
  func.func @_wsl_dr_kernel(%arg0: i32, %arg1: memref<32x48xf32, #tpu.memory_space<vmem>>, %arg2: memref<448x128xbf16, #tpu.memory_space<vmem>>, %arg3: memref<656x256xbf16, #tpu.memory_space<vmem>>, %arg4: memref<264x256xf32, #tpu.memory_space<vmem>>, %arg5: memref<2x128xf32, #tpu.memory_space<vmem>>, %arg6: memref<8x128xf32, #tpu.memory_space<vmem>>) attributes {dimension_semantics = [#tpu.dimension_semantics<arbitrary>], iteration_bounds = array<i64: 1>, scalar_prefetch = 0 : i64, scratch_operands = 1 : i64, tpu.core_type = #tpu.core_type<tc>, window_params = [{pipeline_mode = #tpu.pipeline_mode<synchronous>, transform_indices = @transform_0, window_bounds = array<i64: 32, 48>}, {pipeline_mode = #tpu.pipeline_mode<synchronous>, transform_indices = @transform_1, window_bounds = array<i64: 448, 128>}, {pipeline_mode = #tpu.pipeline_mode<synchronous>, transform_indices = @transform_2, window_bounds = array<i64: 656, 256>}, {pipeline_mode = #tpu.pipeline_mode<synchronous>, transform_indices = @transform_3, window_bounds = array<i64: 264, 256>}, {pipeline_mode = #tpu.pipeline_mode<synchronous>, transform_indices = @transform_4, window_bounds = array<i64: 2, 128>}]} {
    %c0 = arith.constant 0 : index
    %c0_0 = arith.constant 0 : index
    %0 = vector.load %arg1[%c0, %c0_0] : memref<32x48xf32, #tpu.memory_space<vmem>>, vector<32x48xf32>
    %1 = arith.truncf %0 : vector<32x48xf32> to vector<32x48xbf16>
    %c0_1 = arith.constant 0 : index
    %c0_2 = arith.constant 0 : index
    %2 = vector.load %arg2[%c0_1, %c0_2] : memref<448x128xbf16, #tpu.memory_space<vmem>>, vector<48x32xbf16>
    %cst = arith.constant dense<0.000000e+00> : vector<32x32xf32>
    %3 = tpu.matmul %1, %2, %cst {dimension_numbers = #tpu.dot_dimension_numbers<[1], [0], [0], [1], [0, 0, 1, 1], [], []>} : vector<32x48xbf16>, vector<48x32xbf16>, vector<32x32xf32> -> vector<32x32xf32>
    %c0_3 = arith.constant 0 : index
    %c0_4 = arith.constant 0 : index
    %4 = vector.load %arg4[%c0_3, %c0_4] : memref<264x256xf32, #tpu.memory_space<vmem>>, vector<1x32xf32>
    %5 = vector.broadcast %4 : vector<1x32xf32> to vector<32x32xf32>
    %6 = arith.addf %3, %5 : vector<32x32xf32>
    %c8 = arith.constant 8 : index
    %c0_5 = arith.constant 0 : index
    %7 = vector.load %arg4[%c8, %c0_5] : memref<264x256xf32, #tpu.memory_space<vmem>>, vector<1x32xf32>
    %c16 = arith.constant 16 : index
    %c0_6 = arith.constant 0 : index
    %8 = vector.load %arg4[%c16, %c0_6] : memref<264x256xf32, #tpu.memory_space<vmem>>, vector<1x32xf32>
    %cst_7 = arith.constant dense<0.000000e+00> : vector<32xf32>
    %9 = vector.multi_reduction <add>, %6, %cst_7 [1] : vector<32x32xf32> to vector<32xf32>
    %10 = vector.shape_cast %9 : vector<32xf32> to vector<32x1xf32>
    %cst_8 = arith.constant 3.200000e+01 : f32
    %11 = vector.broadcast %cst_8 : f32 to vector<32x1xf32>
    %12 = arith.divf %10, %11 : vector<32x1xf32>
    %13 = vector.broadcast %12 : vector<32x1xf32> to vector<32x32xf32>
    %14 = arith.subf %6, %13 : vector<32x32xf32>
    %15 = arith.mulf %14, %14 : vector<32x32xf32>
    %cst_9 = arith.constant dense<0.000000e+00> : vector<32xf32>
    %16 = vector.multi_reduction <add>, %15, %cst_9 [1] : vector<32x32xf32> to vector<32xf32>
    %17 = vector.shape_cast %16 : vector<32xf32> to vector<32x1xf32>
    %cst_10 = arith.constant 3.200000e+01 : f32
    %18 = vector.broadcast %cst_10 : f32 to vector<32x1xf32>
    %19 = arith.divf %17, %18 : vector<32x1xf32>
    %20 = vector.broadcast %12 : vector<32x1xf32> to vector<32x32xf32>
    %21 = arith.subf %6, %20 : vector<32x32xf32>
    %cst_11 = arith.constant 9.99999974E-6 : f32
    %22 = vector.broadcast %cst_11 : f32 to vector<32x1xf32>
    %23 = arith.addf %19, %22 : vector<32x1xf32>
    %24 = math.rsqrt %23 : vector<32x1xf32>
    %25 = vector.broadcast %24 : vector<32x1xf32> to vector<32x32xf32>
    %26 = arith.mulf %21, %25 : vector<32x32xf32>
    %27 = vector.broadcast %7 : vector<1x32xf32> to vector<32x32xf32>
    %28 = arith.mulf %26, %27 : vector<32x32xf32>
    %29 = vector.broadcast %8 : vector<1x32xf32> to vector<32x32xf32>
    %30 = arith.addf %28, %29 : vector<32x32xf32>
    %c48 = arith.constant 48 : index
    %c0_12 = arith.constant 0 : index
    %31 = vector.load %arg2[%c48, %c0_12] : memref<448x128xbf16, #tpu.memory_space<vmem>>, vector<48x32xbf16>
    %cst_13 = arith.constant dense<0.000000e+00> : vector<32x32xf32>
    %32 = tpu.matmul %1, %31, %cst_13 {dimension_numbers = #tpu.dot_dimension_numbers<[1], [0], [0], [1], [0, 0, 1, 1], [], []>} : vector<32x48xbf16>, vector<48x32xbf16>, vector<32x32xf32> -> vector<32x32xf32>
    %c24 = arith.constant 24 : index
    %c0_14 = arith.constant 0 : index
    %33 = vector.load %arg4[%c24, %c0_14] : memref<264x256xf32, #tpu.memory_space<vmem>>, vector<1x32xf32>
    %34 = vector.broadcast %33 : vector<1x32xf32> to vector<32x32xf32>
    %35 = arith.addf %32, %34 : vector<32x32xf32>
    %36 = arith.addf %30, %35 : vector<32x32xf32>
    %c368 = arith.constant 368 : index
    %c0_15 = arith.constant 0 : index
    %37 = vector.load %arg2[%c368, %c0_15] : memref<448x128xbf16, #tpu.memory_space<vmem>>, vector<2x32xbf16>
    %38 = arith.truncf %36 : vector<32x32xf32> to vector<32x32xbf16>
    %cst_16 = arith.constant dense<0.000000e+00> : vector<2x32xf32>
    %39 = tpu.matmul %37, %38, %cst_16 {dimension_numbers = #tpu.dot_dimension_numbers<[1], [0], [0], [1], [0, 0, 1, 1], [], []>} : vector<2x32xbf16>, vector<32x32xbf16>, vector<2x32xf32> -> vector<2x32xf32>
    %c320 = arith.constant 320 : index
    %c0_17 = arith.constant 0 : index
    %40 = vector.load %arg2[%c320, %c0_17] : memref<448x128xbf16, #tpu.memory_space<vmem>>, vector<32x2xbf16>
    %41 = arith.truncf %39 : vector<2x32xf32> to vector<2x32xbf16>
    %cst_18 = arith.constant dense<0.000000e+00> : vector<2x2xf32>
    %42 = tpu.matmul %41, %40, %cst_18 {dimension_numbers = #tpu.dot_dimension_numbers<[1], [0], [0], [1], [0, 0, 1, 1], [], []>} : vector<2x32xbf16>, vector<32x2xbf16>, vector<2x2xf32> -> vector<2x2xf32>
    %c32 = arith.constant 32 : index
    %c0_19 = arith.constant 0 : index
    %43 = vector.load %arg4[%c32, %c0_19] : memref<264x256xf32, #tpu.memory_space<vmem>>, vector<1x2xf32>
    %44 = vector.broadcast %43 : vector<1x2xf32> to vector<2x2xf32>
    %45 = arith.addf %42, %44 : vector<2x2xf32>
    %cst_20 = arith.constant 0.000000e+00 : f32
    %46 = vector.broadcast %cst_20 : f32 to vector<2x2xf32>
    %47 = arith.maximumf %45, %46 : vector<2x2xf32>
    %c352 = arith.constant 352 : index
    %c0_21 = arith.constant 0 : index
    %48 = vector.load %arg2[%c352, %c0_21] : memref<448x128xbf16, #tpu.memory_space<vmem>>, vector<2x32xbf16>
    %49 = arith.truncf %47 : vector<2x2xf32> to vector<2x2xbf16>
    %cst_22 = arith.constant dense<0.000000e+00> : vector<2x32xf32>
    %50 = tpu.matmul %49, %48, %cst_22 {dimension_numbers = #tpu.dot_dimension_numbers<[1], [0], [0], [1], [0, 0, 1, 1], [], []>} : vector<2x2xbf16>, vector<2x32xbf16>, vector<2x32xf32> -> vector<2x32xf32>
    %c40 = arith.constant 40 : index
    %c0_23 = arith.constant 0 : index
    %51 = vector.load %arg4[%c40, %c0_23] : memref<264x256xf32, #tpu.memory_space<vmem>>, vector<1x32xf32>
    %52 = vector.broadcast %51 : vector<1x32xf32> to vector<2x32xf32>
    %53 = arith.addf %50, %52 : vector<2x32xf32>
    %c384 = arith.constant 384 : index
    %c0_24 = arith.constant 0 : index
    %54 = vector.load %arg2[%c384, %c0_24] : memref<448x128xbf16, #tpu.memory_space<vmem>>, vector<32x2xbf16>
    %55 = arith.negf %53 : vector<2x32xf32>
    %56 = math.exp %55 : vector<2x32xf32>
    %cst_25 = arith.constant 1.000000e+00 : f32
    %57 = vector.broadcast %cst_25 : f32 to vector<2x32xf32>
    %58 = arith.addf %57, %56 : vector<2x32xf32>
    %59 = arith.divf %57, %58 : vector<2x32xf32>
    %60 = arith.truncf %59 : vector<2x32xf32> to vector<2x32xbf16>
    %cst_26 = arith.constant dense<0.000000e+00> : vector<32x32xf32>
    %61 = tpu.matmul %54, %60, %cst_26 {dimension_numbers = #tpu.dot_dimension_numbers<[1], [0], [0], [1], [0, 0, 1, 1], [], []>} : vector<32x2xbf16>, vector<2x32xbf16>, vector<32x32xf32> -> vector<32x32xf32>
    %62 = arith.mulf %30, %61 : vector<32x32xf32>
    %63 = arith.addf %62, %35 : vector<32x32xf32>
    %c224 = arith.constant 224 : index
    %c0_27 = arith.constant 0 : index
    %64 = vector.load %arg4[%c224, %c0_27] : memref<264x256xf32, #tpu.memory_space<vmem>>, vector<32x32xf32>
    %c48_28 = arith.constant 48 : index
    %c0_29 = arith.constant 0 : index
    %65 = vector.load %arg4[%c48_28, %c0_29] : memref<264x256xf32, #tpu.memory_space<vmem>>, vector<1x32xf32>
    %c56 = arith.constant 56 : index
    %c0_30 = arith.constant 0 : index
    %66 = vector.load %arg4[%c56, %c0_30] : memref<264x256xf32, #tpu.memory_space<vmem>>, vector<1x32xf32>
    %c96 = arith.constant 96 : index
    %c0_31 = arith.constant 0 : index
    %67 = vector.load %arg2[%c96, %c0_31] : memref<448x128xbf16, #tpu.memory_space<vmem>>, vector<32x96xbf16>
    %c64 = arith.constant 64 : index
    %c0_32 = arith.constant 0 : index
    %68 = vector.load %arg4[%c64, %c0_32] : memref<264x256xf32, #tpu.memory_space<vmem>>, vector<1x96xf32>
    %c128 = arith.constant 128 : index
    %c0_33 = arith.constant 0 : index
    %69 = vector.load %arg2[%c128, %c0_33] : memref<448x128xbf16, #tpu.memory_space<vmem>>, vector<32x32xbf16>
    %c72 = arith.constant 72 : index
    %c0_34 = arith.constant 0 : index
    %70 = vector.load %arg4[%c72, %c0_34] : memref<264x256xf32, #tpu.memory_space<vmem>>, vector<1x32xf32>
    %c80 = arith.constant 80 : index
    %c0_35 = arith.constant 0 : index
    %71 = vector.load %arg4[%c80, %c0_35] : memref<264x256xf32, #tpu.memory_space<vmem>>, vector<1x32xf32>
    %c88 = arith.constant 88 : index
    %c0_36 = arith.constant 0 : index
    %72 = vector.load %arg4[%c88, %c0_36] : memref<264x256xf32, #tpu.memory_space<vmem>>, vector<1x32xf32>
    %c160 = arith.constant 160 : index
    %c0_37 = arith.constant 0 : index
    %73 = vector.load %arg2[%c160, %c0_37] : memref<448x128xbf16, #tpu.memory_space<vmem>>, vector<32x128xbf16>
    %c96_38 = arith.constant 96 : index
    %c0_39 = arith.constant 0 : index
    %74 = vector.load %arg4[%c96_38, %c0_39] : memref<264x256xf32, #tpu.memory_space<vmem>>, vector<1x128xf32>
    %c192 = arith.constant 192 : index
    %c0_40 = arith.constant 0 : index
    %75 = vector.load %arg2[%c192, %c0_40] : memref<448x128xbf16, #tpu.memory_space<vmem>>, vector<128x32xbf16>
    %c104 = arith.constant 104 : index
    %c0_41 = arith.constant 0 : index
    %76 = vector.load %arg4[%c104, %c0_41] : memref<264x256xf32, #tpu.memory_space<vmem>>, vector<1x32xf32>
    %cst_42 = arith.constant dense<0.000000e+00> : vector<32xf32>
    %77 = vector.multi_reduction <add>, %63, %cst_42 [1] : vector<32x32xf32> to vector<32xf32>
    %78 = vector.shape_cast %77 : vector<32xf32> to vector<32x1xf32>
    %cst_43 = arith.constant 3.200000e+01 : f32
    %79 = vector.broadcast %cst_43 : f32 to vector<32x1xf32>
    %80 = arith.divf %78, %79 : vector<32x1xf32>
    %81 = vector.broadcast %80 : vector<32x1xf32> to vector<32x32xf32>
    %82 = arith.subf %63, %81 : vector<32x32xf32>
    %83 = arith.mulf %82, %82 : vector<32x32xf32>
    %cst_44 = arith.constant dense<0.000000e+00> : vector<32xf32>
    %84 = vector.multi_reduction <add>, %83, %cst_44 [1] : vector<32x32xf32> to vector<32xf32>
    %85 = vector.shape_cast %84 : vector<32xf32> to vector<32x1xf32>
    %cst_45 = arith.constant 3.200000e+01 : f32
    %86 = vector.broadcast %cst_45 : f32 to vector<32x1xf32>
    %87 = arith.divf %85, %86 : vector<32x1xf32>
    %88 = vector.broadcast %80 : vector<32x1xf32> to vector<32x32xf32>
    %89 = arith.subf %63, %88 : vector<32x32xf32>
    %cst_46 = arith.constant 9.99999974E-6 : f32
    %90 = vector.broadcast %cst_46 : f32 to vector<32x1xf32>
    %91 = arith.addf %87, %90 : vector<32x1xf32>
    %92 = math.rsqrt %91 : vector<32x1xf32>
    %93 = vector.broadcast %92 : vector<32x1xf32> to vector<32x32xf32>
    %94 = arith.mulf %89, %93 : vector<32x32xf32>
    %95 = vector.broadcast %65 : vector<1x32xf32> to vector<32x32xf32>
    %96 = arith.mulf %94, %95 : vector<32x32xf32>
    %97 = vector.broadcast %66 : vector<1x32xf32> to vector<32x32xf32>
    %98 = arith.addf %96, %97 : vector<32x32xf32>
    %99 = arith.truncf %98 : vector<32x32xf32> to vector<32x32xbf16>
    %cst_47 = arith.constant dense<0.000000e+00> : vector<32x96xf32>
    %100 = tpu.matmul %99, %67, %cst_47 {dimension_numbers = #tpu.dot_dimension_numbers<[1], [0], [0], [1], [0, 0, 1, 1], [], []>} : vector<32x32xbf16>, vector<32x96xbf16>, vector<32x96xf32> -> vector<32x96xf32>
    %101 = vector.broadcast %68 : vector<1x96xf32> to vector<32x96xf32>
    %102 = arith.addf %100, %101 : vector<32x96xf32>
    %103 = vector.extract_strided_slice %102 {offsets = [0, 0], sizes = [32, 32], strides = [1, 1]} : vector<32x96xf32> to vector<32x32xf32>
    %cst_48 = arith.constant 0.353553385 : f32
    %104 = vector.broadcast %cst_48 : f32 to vector<32x32xf32>
    %105 = arith.mulf %103, %104 : vector<32x32xf32>
    %106 = arith.truncf %105 : vector<32x32xf32> to vector<32x32xbf16>
    %107 = vector.extract_strided_slice %102 {offsets = [0, 32], sizes = [32, 32], strides = [1, 1]} : vector<32x96xf32> to vector<32x32xf32>
    %108 = arith.truncf %107 : vector<32x32xf32> to vector<32x32xbf16>
    %109 = vector.extract_strided_slice %102 {offsets = [0, 64], sizes = [32, 32], strides = [1, 1]} : vector<32x96xf32> to vector<32x32xf32>
    %110 = arith.truncf %109 : vector<32x32xf32> to vector<32x32xbf16>
    %111 = vector.extract_strided_slice %106 {offsets = [0, 0], sizes = [32, 8], strides = [1, 1]} : vector<32x32xbf16> to vector<32x8xbf16>
    %112 = vector.extract_strided_slice %108 {offsets = [0, 0], sizes = [32, 8], strides = [1, 1]} : vector<32x32xbf16> to vector<32x8xbf16>
    %cst_49 = arith.constant dense<0.000000e+00> : vector<32x32xf32>
    %113 = tpu.matmul %111, %112, %cst_49 {dimension_numbers = #tpu.dot_dimension_numbers<[1], [1], [0], [0], [0, 0, 1, 0], [], []>} : vector<32x8xbf16>, vector<32x8xbf16>, vector<32x32xf32> -> vector<32x32xf32>
    %114 = arith.addf %113, %64 : vector<32x32xf32>
    %cst_50 = arith.constant dense<0xFF800000> : vector<32xf32>
    %115 = vector.multi_reduction <maximumf>, %114, %cst_50 [1] : vector<32x32xf32> to vector<32xf32>
    %116 = vector.shape_cast %115 : vector<32xf32> to vector<32x1xf32>
    %117 = vector.broadcast %116 : vector<32x1xf32> to vector<32x32xf32>
    %118 = arith.subf %114, %117 : vector<32x32xf32>
    %119 = math.exp %118 : vector<32x32xf32>
    %cst_51 = arith.constant dense<0.000000e+00> : vector<32xf32>
    %120 = vector.multi_reduction <add>, %119, %cst_51 [1] : vector<32x32xf32> to vector<32xf32>
    %121 = vector.shape_cast %120 : vector<32xf32> to vector<32x1xf32>
    %122 = vector.extract_strided_slice %110 {offsets = [0, 0], sizes = [32, 8], strides = [1, 1]} : vector<32x32xbf16> to vector<32x8xbf16>
    %123 = arith.truncf %119 : vector<32x32xf32> to vector<32x32xbf16>
    %cst_52 = arith.constant dense<0.000000e+00> : vector<32x8xf32>
    %124 = tpu.matmul %123, %122, %cst_52 {dimension_numbers = #tpu.dot_dimension_numbers<[1], [0], [0], [1], [0, 0, 1, 1], [], []>} : vector<32x32xbf16>, vector<32x8xbf16>, vector<32x8xf32> -> vector<32x8xf32>
    %125 = tpu.reciprocal %121 {approx = true} : vector<32x1xf32> -> vector<32x1xf32>
    %126 = vector.broadcast %125 : vector<32x1xf32> to vector<32x8xf32>
    %127 = arith.mulf %124, %126 : vector<32x8xf32>
    %128 = vector.extract_strided_slice %69 {offsets = [0, 0], sizes = [8, 32], strides = [1, 1]} : vector<32x32xbf16> to vector<8x32xbf16>
    %129 = arith.truncf %127 : vector<32x8xf32> to vector<32x8xbf16>
    %cst_53 = arith.constant dense<0.000000e+00> : vector<32x32xf32>
    %130 = tpu.matmul %129, %128, %cst_53 {dimension_numbers = #tpu.dot_dimension_numbers<[1], [0], [0], [1], [0, 0, 1, 1], [], []>} : vector<32x8xbf16>, vector<8x32xbf16>, vector<32x32xf32> -> vector<32x32xf32>
    %131 = vector.extract_strided_slice %106 {offsets = [0, 8], sizes = [32, 8], strides = [1, 1]} : vector<32x32xbf16> to vector<32x8xbf16>
    %132 = vector.extract_strided_slice %108 {offsets = [0, 8], sizes = [32, 8], strides = [1, 1]} : vector<32x32xbf16> to vector<32x8xbf16>
    %cst_54 = arith.constant dense<0.000000e+00> : vector<32x32xf32>
    %133 = tpu.matmul %131, %132, %cst_54 {dimension_numbers = #tpu.dot_dimension_numbers<[1], [1], [0], [0], [0, 0, 1, 0], [], []>} : vector<32x8xbf16>, vector<32x8xbf16>, vector<32x32xf32> -> vector<32x32xf32>
    %134 = arith.addf %133, %64 : vector<32x32xf32>
    %cst_55 = arith.constant dense<0xFF800000> : vector<32xf32>
    %135 = vector.multi_reduction <maximumf>, %134, %cst_55 [1] : vector<32x32xf32> to vector<32xf32>
    %136 = vector.shape_cast %135 : vector<32xf32> to vector<32x1xf32>
    %137 = vector.broadcast %136 : vector<32x1xf32> to vector<32x32xf32>
    %138 = arith.subf %134, %137 : vector<32x32xf32>
    %139 = math.exp %138 : vector<32x32xf32>
    %cst_56 = arith.constant dense<0.000000e+00> : vector<32xf32>
    %140 = vector.multi_reduction <add>, %139, %cst_56 [1] : vector<32x32xf32> to vector<32xf32>
    %141 = vector.shape_cast %140 : vector<32xf32> to vector<32x1xf32>
    %142 = vector.extract_strided_slice %110 {offsets = [0, 8], sizes = [32, 8], strides = [1, 1]} : vector<32x32xbf16> to vector<32x8xbf16>
    %143 = arith.truncf %139 : vector<32x32xf32> to vector<32x32xbf16>
    %cst_57 = arith.constant dense<0.000000e+00> : vector<32x8xf32>
    %144 = tpu.matmul %143, %142, %cst_57 {dimension_numbers = #tpu.dot_dimension_numbers<[1], [0], [0], [1], [0, 0, 1, 1], [], []>} : vector<32x32xbf16>, vector<32x8xbf16>, vector<32x8xf32> -> vector<32x8xf32>
    %145 = tpu.reciprocal %141 {approx = true} : vector<32x1xf32> -> vector<32x1xf32>
    %146 = vector.broadcast %145 : vector<32x1xf32> to vector<32x8xf32>
    %147 = arith.mulf %144, %146 : vector<32x8xf32>
    %148 = vector.extract_strided_slice %69 {offsets = [8, 0], sizes = [8, 32], strides = [1, 1]} : vector<32x32xbf16> to vector<8x32xbf16>
    %149 = arith.truncf %147 : vector<32x8xf32> to vector<32x8xbf16>
    %cst_58 = arith.constant dense<0.000000e+00> : vector<32x32xf32>
    %150 = tpu.matmul %149, %148, %cst_58 {dimension_numbers = #tpu.dot_dimension_numbers<[1], [0], [0], [1], [0, 0, 1, 1], [], []>} : vector<32x8xbf16>, vector<8x32xbf16>, vector<32x32xf32> -> vector<32x32xf32>
    %151 = arith.addf %130, %150 : vector<32x32xf32>
    %152 = vector.extract_strided_slice %106 {offsets = [0, 16], sizes = [32, 8], strides = [1, 1]} : vector<32x32xbf16> to vector<32x8xbf16>
    %153 = vector.extract_strided_slice %108 {offsets = [0, 16], sizes = [32, 8], strides = [1, 1]} : vector<32x32xbf16> to vector<32x8xbf16>
    %cst_59 = arith.constant dense<0.000000e+00> : vector<32x32xf32>
    %154 = tpu.matmul %152, %153, %cst_59 {dimension_numbers = #tpu.dot_dimension_numbers<[1], [1], [0], [0], [0, 0, 1, 0], [], []>} : vector<32x8xbf16>, vector<32x8xbf16>, vector<32x32xf32> -> vector<32x32xf32>
    %155 = arith.addf %154, %64 : vector<32x32xf32>
    %cst_60 = arith.constant dense<0xFF800000> : vector<32xf32>
    %156 = vector.multi_reduction <maximumf>, %155, %cst_60 [1] : vector<32x32xf32> to vector<32xf32>
    %157 = vector.shape_cast %156 : vector<32xf32> to vector<32x1xf32>
    %158 = vector.broadcast %157 : vector<32x1xf32> to vector<32x32xf32>
    %159 = arith.subf %155, %158 : vector<32x32xf32>
    %160 = math.exp %159 : vector<32x32xf32>
    %cst_61 = arith.constant dense<0.000000e+00> : vector<32xf32>
    %161 = vector.multi_reduction <add>, %160, %cst_61 [1] : vector<32x32xf32> to vector<32xf32>
    %162 = vector.shape_cast %161 : vector<32xf32> to vector<32x1xf32>
    %163 = vector.extract_strided_slice %110 {offsets = [0, 16], sizes = [32, 8], strides = [1, 1]} : vector<32x32xbf16> to vector<32x8xbf16>
    %164 = arith.truncf %160 : vector<32x32xf32> to vector<32x32xbf16>
    %cst_62 = arith.constant dense<0.000000e+00> : vector<32x8xf32>
    %165 = tpu.matmul %164, %163, %cst_62 {dimension_numbers = #tpu.dot_dimension_numbers<[1], [0], [0], [1], [0, 0, 1, 1], [], []>} : vector<32x32xbf16>, vector<32x8xbf16>, vector<32x8xf32> -> vector<32x8xf32>
    %166 = tpu.reciprocal %162 {approx = true} : vector<32x1xf32> -> vector<32x1xf32>
    %167 = vector.broadcast %166 : vector<32x1xf32> to vector<32x8xf32>
    %168 = arith.mulf %165, %167 : vector<32x8xf32>
    %169 = vector.extract_strided_slice %69 {offsets = [16, 0], sizes = [8, 32], strides = [1, 1]} : vector<32x32xbf16> to vector<8x32xbf16>
    %170 = arith.truncf %168 : vector<32x8xf32> to vector<32x8xbf16>
    %cst_63 = arith.constant dense<0.000000e+00> : vector<32x32xf32>
    %171 = tpu.matmul %170, %169, %cst_63 {dimension_numbers = #tpu.dot_dimension_numbers<[1], [0], [0], [1], [0, 0, 1, 1], [], []>} : vector<32x8xbf16>, vector<8x32xbf16>, vector<32x32xf32> -> vector<32x32xf32>
    %172 = arith.addf %151, %171 : vector<32x32xf32>
    %173 = vector.extract_strided_slice %106 {offsets = [0, 24], sizes = [32, 8], strides = [1, 1]} : vector<32x32xbf16> to vector<32x8xbf16>
    %174 = vector.extract_strided_slice %108 {offsets = [0, 24], sizes = [32, 8], strides = [1, 1]} : vector<32x32xbf16> to vector<32x8xbf16>
    %cst_64 = arith.constant dense<0.000000e+00> : vector<32x32xf32>
    %175 = tpu.matmul %173, %174, %cst_64 {dimension_numbers = #tpu.dot_dimension_numbers<[1], [1], [0], [0], [0, 0, 1, 0], [], []>} : vector<32x8xbf16>, vector<32x8xbf16>, vector<32x32xf32> -> vector<32x32xf32>
    %176 = arith.addf %175, %64 : vector<32x32xf32>
    %cst_65 = arith.constant dense<0xFF800000> : vector<32xf32>
    %177 = vector.multi_reduction <maximumf>, %176, %cst_65 [1] : vector<32x32xf32> to vector<32xf32>
    %178 = vector.shape_cast %177 : vector<32xf32> to vector<32x1xf32>
    %179 = vector.broadcast %178 : vector<32x1xf32> to vector<32x32xf32>
    %180 = arith.subf %176, %179 : vector<32x32xf32>
    %181 = math.exp %180 : vector<32x32xf32>
    %cst_66 = arith.constant dense<0.000000e+00> : vector<32xf32>
    %182 = vector.multi_reduction <add>, %181, %cst_66 [1] : vector<32x32xf32> to vector<32xf32>
    %183 = vector.shape_cast %182 : vector<32xf32> to vector<32x1xf32>
    %184 = vector.extract_strided_slice %110 {offsets = [0, 24], sizes = [32, 8], strides = [1, 1]} : vector<32x32xbf16> to vector<32x8xbf16>
    %185 = arith.truncf %181 : vector<32x32xf32> to vector<32x32xbf16>
    %cst_67 = arith.constant dense<0.000000e+00> : vector<32x8xf32>
    %186 = tpu.matmul %185, %184, %cst_67 {dimension_numbers = #tpu.dot_dimension_numbers<[1], [0], [0], [1], [0, 0, 1, 1], [], []>} : vector<32x32xbf16>, vector<32x8xbf16>, vector<32x8xf32> -> vector<32x8xf32>
    %187 = tpu.reciprocal %183 {approx = true} : vector<32x1xf32> -> vector<32x1xf32>
    %188 = vector.broadcast %187 : vector<32x1xf32> to vector<32x8xf32>
    %189 = arith.mulf %186, %188 : vector<32x8xf32>
    %190 = vector.extract_strided_slice %69 {offsets = [24, 0], sizes = [8, 32], strides = [1, 1]} : vector<32x32xbf16> to vector<8x32xbf16>
    %191 = arith.truncf %189 : vector<32x8xf32> to vector<32x8xbf16>
    %cst_68 = arith.constant dense<0.000000e+00> : vector<32x32xf32>
    %192 = tpu.matmul %191, %190, %cst_68 {dimension_numbers = #tpu.dot_dimension_numbers<[1], [0], [0], [1], [0, 0, 1, 1], [], []>} : vector<32x8xbf16>, vector<8x32xbf16>, vector<32x32xf32> -> vector<32x32xf32>
    %193 = arith.addf %172, %192 : vector<32x32xf32>
    %194 = arith.addf %63, %193 : vector<32x32xf32>
    %195 = vector.broadcast %70 : vector<1x32xf32> to vector<32x32xf32>
    %196 = arith.addf %194, %195 : vector<32x32xf32>
    %cst_69 = arith.constant dense<0.000000e+00> : vector<32xf32>
    %197 = vector.multi_reduction <add>, %196, %cst_69 [1] : vector<32x32xf32> to vector<32xf32>
    %198 = vector.shape_cast %197 : vector<32xf32> to vector<32x1xf32>
    %cst_70 = arith.constant 3.200000e+01 : f32
    %199 = vector.broadcast %cst_70 : f32 to vector<32x1xf32>
    %200 = arith.divf %198, %199 : vector<32x1xf32>
    %201 = vector.broadcast %200 : vector<32x1xf32> to vector<32x32xf32>
    %202 = arith.subf %196, %201 : vector<32x32xf32>
    %203 = arith.mulf %202, %202 : vector<32x32xf32>
    %cst_71 = arith.constant dense<0.000000e+00> : vector<32xf32>
    %204 = vector.multi_reduction <add>, %203, %cst_71 [1] : vector<32x32xf32> to vector<32xf32>
    %205 = vector.shape_cast %204 : vector<32xf32> to vector<32x1xf32>
    %cst_72 = arith.constant 3.200000e+01 : f32
    %206 = vector.broadcast %cst_72 : f32 to vector<32x1xf32>
    %207 = arith.divf %205, %206 : vector<32x1xf32>
    %208 = vector.broadcast %200 : vector<32x1xf32> to vector<32x32xf32>
    %209 = arith.subf %196, %208 : vector<32x32xf32>
    %cst_73 = arith.constant 9.99999974E-6 : f32
    %210 = vector.broadcast %cst_73 : f32 to vector<32x1xf32>
    %211 = arith.addf %207, %210 : vector<32x1xf32>
    %212 = math.rsqrt %211 : vector<32x1xf32>
    %213 = vector.broadcast %212 : vector<32x1xf32> to vector<32x32xf32>
    %214 = arith.mulf %209, %213 : vector<32x32xf32>
    %215 = vector.broadcast %71 : vector<1x32xf32> to vector<32x32xf32>
    %216 = arith.mulf %214, %215 : vector<32x32xf32>
    %217 = vector.broadcast %72 : vector<1x32xf32> to vector<32x32xf32>
    %218 = arith.addf %216, %217 : vector<32x32xf32>
    %219 = arith.truncf %218 : vector<32x32xf32> to vector<32x32xbf16>
    %cst_74 = arith.constant dense<0.000000e+00> : vector<32x128xf32>
    %220 = tpu.matmul %219, %73, %cst_74 {dimension_numbers = #tpu.dot_dimension_numbers<[1], [0], [0], [1], [0, 0, 1, 1], [], []>} : vector<32x32xbf16>, vector<32x128xbf16>, vector<32x128xf32> -> vector<32x128xf32>
    %221 = vector.broadcast %74 : vector<1x128xf32> to vector<32x128xf32>
    %222 = arith.addf %220, %221 : vector<32x128xf32>
    %223 = arith.mulf %222, %222 : vector<32x128xf32>
    %224 = arith.mulf %222, %223 : vector<32x128xf32>
    %cst_75 = arith.constant 4.471500e-02 : f32
    %225 = vector.broadcast %cst_75 : f32 to vector<32x128xf32>
    %226 = arith.mulf %225, %224 : vector<32x128xf32>
    %227 = arith.addf %222, %226 : vector<32x128xf32>
    %cst_76 = arith.constant 0.797884583 : f32
    %228 = vector.broadcast %cst_76 : f32 to vector<32x128xf32>
    %229 = arith.mulf %228, %227 : vector<32x128xf32>
    %230 = math.tanh %229 : vector<32x128xf32>
    %cst_77 = arith.constant 1.000000e+00 : f32
    %231 = vector.broadcast %cst_77 : f32 to vector<32x128xf32>
    %232 = arith.addf %231, %230 : vector<32x128xf32>
    %cst_78 = arith.constant 5.000000e-01 : f32
    %233 = vector.broadcast %cst_78 : f32 to vector<32x128xf32>
    %234 = arith.mulf %233, %232 : vector<32x128xf32>
    %235 = arith.mulf %222, %234 : vector<32x128xf32>
    %236 = arith.truncf %235 : vector<32x128xf32> to vector<32x128xbf16>
    %cst_79 = arith.constant dense<0.000000e+00> : vector<32x32xf32>
    %237 = tpu.matmul %236, %75, %cst_79 {dimension_numbers = #tpu.dot_dimension_numbers<[1], [0], [0], [1], [0, 0, 1, 1], [], []>} : vector<32x128xbf16>, vector<128x32xbf16>, vector<32x32xf32> -> vector<32x32xf32>
    %238 = arith.addf %196, %237 : vector<32x32xf32>
    %239 = vector.broadcast %76 : vector<1x32xf32> to vector<32x32xf32>
    %240 = arith.addf %238, %239 : vector<32x32xf32>
    %c416 = arith.constant 416 : index
    %c0_80 = arith.constant 0 : index
    %241 = vector.load %arg2[%c416, %c0_80] : memref<448x128xbf16, #tpu.memory_space<vmem>>, vector<32x32xbf16>
    %242 = arith.truncf %240 : vector<32x32xf32> to vector<32x32xbf16>
    %243 = vector.extract_strided_slice %241 {offsets = [0, 0], sizes = [8, 32], strides = [1, 1]} : vector<32x32xbf16> to vector<8x32xbf16>
    %cst_81 = arith.constant dense<0.000000e+00> : vector<8x32xf32>
    %244 = tpu.matmul %243, %242, %cst_81 {dimension_numbers = #tpu.dot_dimension_numbers<[1], [0], [0], [1], [0, 0, 1, 1], [], []>} : vector<8x32xbf16>, vector<32x32xbf16>, vector<8x32xf32> -> vector<8x32xf32>
    %c0_82 = arith.constant 0 : index
    %c0_83 = arith.constant 0 : index
    %245 = vector.load %arg6[%c0_82, %c0_83] : memref<8x128xf32, #tpu.memory_space<vmem>>, vector<8x32xf32>
    tpu.vector_store %arg6[%c0_82, %c0_83], %244 {strides = array<i32>} : memref<8x128xf32, #tpu.memory_space<vmem>>, vector<8x32xf32>,
    %246 = vector.extract_strided_slice %241 {offsets = [8, 0], sizes = [8, 32], strides = [1, 1]} : vector<32x32xbf16> to vector<8x32xbf16>
    %cst_84 = arith.constant dense<0.000000e+00> : vector<8x32xf32>
    %247 = tpu.matmul %246, %242, %cst_84 {dimension_numbers = #tpu.dot_dimension_numbers<[1], [0], [0], [1], [0, 0, 1, 1], [], []>} : vector<8x32xbf16>, vector<32x32xbf16>, vector<8x32xf32> -> vector<8x32xf32>
    %c0_85 = arith.constant 0 : index
    %c32_86 = arith.constant 32 : index
    %248 = vector.load %arg6[%c0_85, %c32_86] : memref<8x128xf32, #tpu.memory_space<vmem>>, vector<8x32xf32>
    tpu.vector_store %arg6[%c0_85, %c32_86], %247 {strides = array<i32>} : memref<8x128xf32, #tpu.memory_space<vmem>>, vector<8x32xf32>,
    %249 = vector.extract_strided_slice %241 {offsets = [16, 0], sizes = [8, 32], strides = [1, 1]} : vector<32x32xbf16> to vector<8x32xbf16>
    %cst_87 = arith.constant dense<0.000000e+00> : vector<8x32xf32>
    %250 = tpu.matmul %249, %242, %cst_87 {dimension_numbers = #tpu.dot_dimension_numbers<[1], [0], [0], [1], [0, 0, 1, 1], [], []>} : vector<8x32xbf16>, vector<32x32xbf16>, vector<8x32xf32> -> vector<8x32xf32>
    %c0_88 = arith.constant 0 : index
    %c64_89 = arith.constant 64 : index
    %251 = vector.load %arg6[%c0_88, %c64_89] : memref<8x128xf32, #tpu.memory_space<vmem>>, vector<8x32xf32>
    tpu.vector_store %arg6[%c0_88, %c64_89], %250 {strides = array<i32>} : memref<8x128xf32, #tpu.memory_space<vmem>>, vector<8x32xf32>,
    %252 = vector.extract_strided_slice %241 {offsets = [24, 0], sizes = [8, 32], strides = [1, 1]} : vector<32x32xbf16> to vector<8x32xbf16>
    %cst_90 = arith.constant dense<0.000000e+00> : vector<8x32xf32>
    %253 = tpu.matmul %252, %242, %cst_90 {dimension_numbers = #tpu.dot_dimension_numbers<[1], [0], [0], [1], [0, 0, 1, 1], [], []>} : vector<8x32xbf16>, vector<32x32xbf16>, vector<8x32xf32> -> vector<8x32xf32>
    %c0_91 = arith.constant 0 : index
    %c96_92 = arith.constant 96 : index
    %254 = vector.load %arg6[%c0_91, %c96_92] : memref<8x128xf32, #tpu.memory_space<vmem>>, vector<8x32xf32>
    tpu.vector_store %arg6[%c0_91, %c96_92], %253 {strides = array<i32>} : memref<8x128xf32, #tpu.memory_space<vmem>>, vector<8x32xf32>,
    %c0_93 = arith.constant 0 : index
    %c0_94 = arith.constant 0 : index
    %255 = vector.load %arg6[%c0_93, %c0_94] : memref<8x128xf32, #tpu.memory_space<vmem>>, vector<8x128xf32>
    %c112 = arith.constant 112 : index
    %c0_95 = arith.constant 0 : index
    %256 = vector.load %arg4[%c112, %c0_95] : memref<264x256xf32, #tpu.memory_space<vmem>>, vector<1x128xf32>
    %c120 = arith.constant 120 : index
    %c0_96 = arith.constant 0 : index
    %257 = vector.load %arg4[%c120, %c0_96] : memref<264x256xf32, #tpu.memory_space<vmem>>, vector<1x128xf32>
    %cst_97 = arith.constant dense<0.000000e+00> : vector<8xf32>
    %258 = vector.multi_reduction <add>, %255, %cst_97 [1] : vector<8x128xf32> to vector<8xf32>
    %259 = vector.shape_cast %258 : vector<8xf32> to vector<8x1xf32>
    %cst_98 = arith.constant 1.280000e+02 : f32
    %260 = vector.broadcast %cst_98 : f32 to vector<8x1xf32>
    %261 = arith.divf %259, %260 : vector<8x1xf32>
    %262 = vector.broadcast %261 : vector<8x1xf32> to vector<8x128xf32>
    %263 = arith.subf %255, %262 : vector<8x128xf32>
    %264 = arith.mulf %263, %263 : vector<8x128xf32>
    %cst_99 = arith.constant dense<0.000000e+00> : vector<8xf32>
    %265 = vector.multi_reduction <add>, %264, %cst_99 [1] : vector<8x128xf32> to vector<8xf32>
    %266 = vector.shape_cast %265 : vector<8xf32> to vector<8x1xf32>
    %cst_100 = arith.constant 1.280000e+02 : f32
    %267 = vector.broadcast %cst_100 : f32 to vector<8x1xf32>
    %268 = arith.divf %266, %267 : vector<8x1xf32>
    %269 = vector.broadcast %261 : vector<8x1xf32> to vector<8x128xf32>
    %270 = arith.subf %255, %269 : vector<8x128xf32>
    %cst_101 = arith.constant 9.99999974E-6 : f32
    %271 = vector.broadcast %cst_101 : f32 to vector<8x1xf32>
    %272 = arith.addf %268, %271 : vector<8x1xf32>
    %273 = math.rsqrt %272 : vector<8x1xf32>
    %274 = vector.broadcast %273 : vector<8x1xf32> to vector<8x128xf32>
    %275 = arith.mulf %270, %274 : vector<8x128xf32>
    %276 = vector.broadcast %256 : vector<1x128xf32> to vector<8x128xf32>
    %277 = arith.mulf %275, %276 : vector<8x128xf32>
    %278 = vector.broadcast %257 : vector<1x128xf32> to vector<8x128xf32>
    %279 = arith.addf %277, %278 : vector<8x128xf32>
    %c0_102 = arith.constant 0 : index
    %c0_103 = arith.constant 0 : index
    %280 = vector.load %arg3[%c0_102, %c0_103] : memref<656x256xbf16, #tpu.memory_space<vmem>>, vector<128x64xbf16>
    %281 = arith.truncf %279 : vector<8x128xf32> to vector<8x128xbf16>
    %cst_104 = arith.constant dense<0.000000e+00> : vector<8x64xf32>
    %282 = tpu.matmul %281, %280, %cst_104 {dimension_numbers = #tpu.dot_dimension_numbers<[1], [0], [0], [1], [0, 0, 1, 1], [], []>} : vector<8x128xbf16>, vector<128x64xbf16>, vector<8x64xf32> -> vector<8x64xf32>
    %c128_105 = arith.constant 128 : index
    %c0_106 = arith.constant 0 : index
    %283 = vector.load %arg4[%c128_105, %c0_106] : memref<264x256xf32, #tpu.memory_space<vmem>>, vector<1x64xf32>
    %284 = vector.broadcast %283 : vector<1x64xf32> to vector<8x64xf32>
    %285 = arith.addf %282, %284 : vector<8x64xf32>
    %c256 = arith.constant 256 : index
    %c0_107 = arith.constant 0 : index
    %286 = vector.load %arg4[%c256, %c0_107] : memref<264x256xf32, #tpu.memory_space<vmem>>, vector<8x8xf32>
    %c136 = arith.constant 136 : index
    %c0_108 = arith.constant 0 : index
    %287 = vector.load %arg4[%c136, %c0_108] : memref<264x256xf32, #tpu.memory_space<vmem>>, vector<1x64xf32>
    %c144 = arith.constant 144 : index
    %c0_109 = arith.constant 0 : index
    %288 = vector.load %arg4[%c144, %c0_109] : memref<264x256xf32, #tpu.memory_space<vmem>>, vector<1x64xf32>
    %c128_110 = arith.constant 128 : index
    %c0_111 = arith.constant 0 : index
    %289 = vector.load %arg3[%c128_110, %c0_111] : memref<656x256xbf16, #tpu.memory_space<vmem>>, vector<64x192xbf16>
    %c152 = arith.constant 152 : index
    %c0_112 = arith.constant 0 : index
    %290 = vector.load %arg4[%c152, %c0_112] : memref<264x256xf32, #tpu.memory_space<vmem>>, vector<1x192xf32>
    %c192_113 = arith.constant 192 : index
    %c0_114 = arith.constant 0 : index
    %291 = vector.load %arg3[%c192_113, %c0_114] : memref<656x256xbf16, #tpu.memory_space<vmem>>, vector<64x64xbf16>
    %c160_115 = arith.constant 160 : index
    %c0_116 = arith.constant 0 : index
    %292 = vector.load %arg4[%c160_115, %c0_116] : memref<264x256xf32, #tpu.memory_space<vmem>>, vector<1x64xf32>
    %c168 = arith.constant 168 : index
    %c0_117 = arith.constant 0 : index
    %293 = vector.load %arg4[%c168, %c0_117] : memref<264x256xf32, #tpu.memory_space<vmem>>, vector<1x64xf32>
    %c176 = arith.constant 176 : index
    %c0_118 = arith.constant 0 : index
    %294 = vector.load %arg4[%c176, %c0_118] : memref<264x256xf32, #tpu.memory_space<vmem>>, vector<1x64xf32>
    %c256_119 = arith.constant 256 : index
    %c0_120 = arith.constant 0 : index
    %295 = vector.load %arg3[%c256_119, %c0_120] : memref<656x256xbf16, #tpu.memory_space<vmem>>, vector<64x256xbf16>
    %c184 = arith.constant 184 : index
    %c0_121 = arith.constant 0 : index
    %296 = vector.load %arg4[%c184, %c0_121] : memref<264x256xf32, #tpu.memory_space<vmem>>, vector<1x256xf32>
    %c320_122 = arith.constant 320 : index
    %c0_123 = arith.constant 0 : index
    %297 = vector.load %arg3[%c320_122, %c0_123] : memref<656x256xbf16, #tpu.memory_space<vmem>>, vector<256x64xbf16>
    %c192_124 = arith.constant 192 : index
    %c0_125 = arith.constant 0 : index
    %298 = vector.load %arg4[%c192_124, %c0_125] : memref<264x256xf32, #tpu.memory_space<vmem>>, vector<1x64xf32>
    %cst_126 = arith.constant dense<0.000000e+00> : vector<8xf32>
    %299 = vector.multi_reduction <add>, %285, %cst_126 [1] : vector<8x64xf32> to vector<8xf32>
    %300 = vector.shape_cast %299 : vector<8xf32> to vector<8x1xf32>
    %cst_127 = arith.constant 6.400000e+01 : f32
    %301 = vector.broadcast %cst_127 : f32 to vector<8x1xf32>
    %302 = arith.divf %300, %301 : vector<8x1xf32>
    %303 = vector.broadcast %302 : vector<8x1xf32> to vector<8x64xf32>
    %304 = arith.subf %285, %303 : vector<8x64xf32>
    %305 = arith.mulf %304, %304 : vector<8x64xf32>
    %cst_128 = arith.constant dense<0.000000e+00> : vector<8xf32>
    %306 = vector.multi_reduction <add>, %305, %cst_128 [1] : vector<8x64xf32> to vector<8xf32>
    %307 = vector.shape_cast %306 : vector<8xf32> to vector<8x1xf32>
    %cst_129 = arith.constant 6.400000e+01 : f32
    %308 = vector.broadcast %cst_129 : f32 to vector<8x1xf32>
    %309 = arith.divf %307, %308 : vector<8x1xf32>
    %310 = vector.broadcast %302 : vector<8x1xf32> to vector<8x64xf32>
    %311 = arith.subf %285, %310 : vector<8x64xf32>
    %cst_130 = arith.constant 9.99999974E-6 : f32
    %312 = vector.broadcast %cst_130 : f32 to vector<8x1xf32>
    %313 = arith.addf %309, %312 : vector<8x1xf32>
    %314 = math.rsqrt %313 : vector<8x1xf32>
    %315 = vector.broadcast %314 : vector<8x1xf32> to vector<8x64xf32>
    %316 = arith.mulf %311, %315 : vector<8x64xf32>
    %317 = vector.broadcast %287 : vector<1x64xf32> to vector<8x64xf32>
    %318 = arith.mulf %316, %317 : vector<8x64xf32>
    %319 = vector.broadcast %288 : vector<1x64xf32> to vector<8x64xf32>
    %320 = arith.addf %318, %319 : vector<8x64xf32>
    %321 = arith.truncf %320 : vector<8x64xf32> to vector<8x64xbf16>
    %cst_131 = arith.constant dense<0.000000e+00> : vector<8x192xf32>
    %322 = tpu.matmul %321, %289, %cst_131 {dimension_numbers = #tpu.dot_dimension_numbers<[1], [0], [0], [1], [0, 0, 1, 1], [], []>} : vector<8x64xbf16>, vector<64x192xbf16>, vector<8x192xf32> -> vector<8x192xf32>
    %323 = vector.broadcast %290 : vector<1x192xf32> to vector<8x192xf32>
    %324 = arith.addf %322, %323 : vector<8x192xf32>
    %325 = vector.extract_strided_slice %324 {offsets = [0, 0], sizes = [8, 64], strides = [1, 1]} : vector<8x192xf32> to vector<8x64xf32>
    %cst_132 = arith.constant 2.500000e-01 : f32
    %326 = vector.broadcast %cst_132 : f32 to vector<8x64xf32>
    %327 = arith.mulf %325, %326 : vector<8x64xf32>
    %328 = arith.truncf %327 : vector<8x64xf32> to vector<8x64xbf16>
    %329 = vector.extract_strided_slice %324 {offsets = [0, 64], sizes = [8, 64], strides = [1, 1]} : vector<8x192xf32> to vector<8x64xf32>
    %330 = arith.truncf %329 : vector<8x64xf32> to vector<8x64xbf16>
    %331 = vector.extract_strided_slice %324 {offsets = [0, 128], sizes = [8, 64], strides = [1, 1]} : vector<8x192xf32> to vector<8x64xf32>
    %332 = arith.truncf %331 : vector<8x64xf32> to vector<8x64xbf16>
    %333 = vector.extract_strided_slice %328 {offsets = [0, 0], sizes = [8, 16], strides = [1, 1]} : vector<8x64xbf16> to vector<8x16xbf16>
    %334 = vector.extract_strided_slice %330 {offsets = [0, 0], sizes = [8, 16], strides = [1, 1]} : vector<8x64xbf16> to vector<8x16xbf16>
    %cst_133 = arith.constant dense<0.000000e+00> : vector<8x8xf32>
    %335 = tpu.matmul %333, %334, %cst_133 {dimension_numbers = #tpu.dot_dimension_numbers<[1], [1], [0], [0], [0, 0, 1, 0], [], []>} : vector<8x16xbf16>, vector<8x16xbf16>, vector<8x8xf32> -> vector<8x8xf32>
    %336 = arith.addf %335, %286 : vector<8x8xf32>
    %cst_134 = arith.constant dense<0xFF800000> : vector<8xf32>
    %337 = vector.multi_reduction <maximumf>, %336, %cst_134 [1] : vector<8x8xf32> to vector<8xf32>
    %338 = vector.shape_cast %337 : vector<8xf32> to vector<8x1xf32>
    %339 = vector.broadcast %338 : vector<8x1xf32> to vector<8x8xf32>
    %340 = arith.subf %336, %339 : vector<8x8xf32>
    %341 = math.exp %340 : vector<8x8xf32>
    %cst_135 = arith.constant dense<0.000000e+00> : vector<8xf32>
    %342 = vector.multi_reduction <add>, %341, %cst_135 [1] : vector<8x8xf32> to vector<8xf32>
    %343 = vector.shape_cast %342 : vector<8xf32> to vector<8x1xf32>
    %344 = vector.extract_strided_slice %332 {offsets = [0, 0], sizes = [8, 16], strides = [1, 1]} : vector<8x64xbf16> to vector<8x16xbf16>
    %345 = arith.truncf %341 : vector<8x8xf32> to vector<8x8xbf16>
    %cst_136 = arith.constant dense<0.000000e+00> : vector<8x16xf32>
    %346 = tpu.matmul %345, %344, %cst_136 {dimension_numbers = #tpu.dot_dimension_numbers<[1], [0], [0], [1], [0, 0, 1, 1], [], []>} : vector<8x8xbf16>, vector<8x16xbf16>, vector<8x16xf32> -> vector<8x16xf32>
    %347 = tpu.reciprocal %343 {approx = true} : vector<8x1xf32> -> vector<8x1xf32>
    %348 = vector.broadcast %347 : vector<8x1xf32> to vector<8x16xf32>
    %349 = arith.mulf %346, %348 : vector<8x16xf32>
    %350 = vector.extract_strided_slice %291 {offsets = [0, 0], sizes = [16, 64], strides = [1, 1]} : vector<64x64xbf16> to vector<16x64xbf16>
    %351 = arith.truncf %349 : vector<8x16xf32> to vector<8x16xbf16>
    %cst_137 = arith.constant dense<0.000000e+00> : vector<8x64xf32>
    %352 = tpu.matmul %351, %350, %cst_137 {dimension_numbers = #tpu.dot_dimension_numbers<[1], [0], [0], [1], [0, 0, 1, 1], [], []>} : vector<8x16xbf16>, vector<16x64xbf16>, vector<8x64xf32> -> vector<8x64xf32>
    %353 = vector.extract_strided_slice %328 {offsets = [0, 16], sizes = [8, 16], strides = [1, 1]} : vector<8x64xbf16> to vector<8x16xbf16>
    %354 = vector.extract_strided_slice %330 {offsets = [0, 16], sizes = [8, 16], strides = [1, 1]} : vector<8x64xbf16> to vector<8x16xbf16>
    %cst_138 = arith.constant dense<0.000000e+00> : vector<8x8xf32>
    %355 = tpu.matmul %353, %354, %cst_138 {dimension_numbers = #tpu.dot_dimension_numbers<[1], [1], [0], [0], [0, 0, 1, 0], [], []>} : vector<8x16xbf16>, vector<8x16xbf16>, vector<8x8xf32> -> vector<8x8xf32>
    %356 = arith.addf %355, %286 : vector<8x8xf32>
    %cst_139 = arith.constant dense<0xFF800000> : vector<8xf32>
    %357 = vector.multi_reduction <maximumf>, %356, %cst_139 [1] : vector<8x8xf32> to vector<8xf32>
    %358 = vector.shape_cast %357 : vector<8xf32> to vector<8x1xf32>
    %359 = vector.broadcast %358 : vector<8x1xf32> to vector<8x8xf32>
    %360 = arith.subf %356, %359 : vector<8x8xf32>
    %361 = math.exp %360 : vector<8x8xf32>
    %cst_140 = arith.constant dense<0.000000e+00> : vector<8xf32>
    %362 = vector.multi_reduction <add>, %361, %cst_140 [1] : vector<8x8xf32> to vector<8xf32>
    %363 = vector.shape_cast %362 : vector<8xf32> to vector<8x1xf32>
    %364 = vector.extract_strided_slice %332 {offsets = [0, 16], sizes = [8, 16], strides = [1, 1]} : vector<8x64xbf16> to vector<8x16xbf16>
    %365 = arith.truncf %361 : vector<8x8xf32> to vector<8x8xbf16>
    %cst_141 = arith.constant dense<0.000000e+00> : vector<8x16xf32>
    %366 = tpu.matmul %365, %364, %cst_141 {dimension_numbers = #tpu.dot_dimension_numbers<[1], [0], [0], [1], [0, 0, 1, 1], [], []>} : vector<8x8xbf16>, vector<8x16xbf16>, vector<8x16xf32> -> vector<8x16xf32>
    %367 = tpu.reciprocal %363 {approx = true} : vector<8x1xf32> -> vector<8x1xf32>
    %368 = vector.broadcast %367 : vector<8x1xf32> to vector<8x16xf32>
    %369 = arith.mulf %366, %368 : vector<8x16xf32>
    %370 = vector.extract_strided_slice %291 {offsets = [16, 0], sizes = [16, 64], strides = [1, 1]} : vector<64x64xbf16> to vector<16x64xbf16>
    %371 = arith.truncf %369 : vector<8x16xf32> to vector<8x16xbf16>
    %cst_142 = arith.constant dense<0.000000e+00> : vector<8x64xf32>
    %372 = tpu.matmul %371, %370, %cst_142 {dimension_numbers = #tpu.dot_dimension_numbers<[1], [0], [0], [1], [0, 0, 1, 1], [], []>} : vector<8x16xbf16>, vector<16x64xbf16>, vector<8x64xf32> -> vector<8x64xf32>
    %373 = arith.addf %352, %372 : vector<8x64xf32>
    %374 = vector.extract_strided_slice %328 {offsets = [0, 32], sizes = [8, 16], strides = [1, 1]} : vector<8x64xbf16> to vector<8x16xbf16>
    %375 = vector.extract_strided_slice %330 {offsets = [0, 32], sizes = [8, 16], strides = [1, 1]} : vector<8x64xbf16> to vector<8x16xbf16>
    %cst_143 = arith.constant dense<0.000000e+00> : vector<8x8xf32>
    %376 = tpu.matmul %374, %375, %cst_143 {dimension_numbers = #tpu.dot_dimension_numbers<[1], [1], [0], [0], [0, 0, 1, 0], [], []>} : vector<8x16xbf16>, vector<8x16xbf16>, vector<8x8xf32> -> vector<8x8xf32>
    %377 = arith.addf %376, %286 : vector<8x8xf32>
    %cst_144 = arith.constant dense<0xFF800000> : vector<8xf32>
    %378 = vector.multi_reduction <maximumf>, %377, %cst_144 [1] : vector<8x8xf32> to vector<8xf32>
    %379 = vector.shape_cast %378 : vector<8xf32> to vector<8x1xf32>
    %380 = vector.broadcast %379 : vector<8x1xf32> to vector<8x8xf32>
    %381 = arith.subf %377, %380 : vector<8x8xf32>
    %382 = math.exp %381 : vector<8x8xf32>
    %cst_145 = arith.constant dense<0.000000e+00> : vector<8xf32>
    %383 = vector.multi_reduction <add>, %382, %cst_145 [1] : vector<8x8xf32> to vector<8xf32>
    %384 = vector.shape_cast %383 : vector<8xf32> to vector<8x1xf32>
    %385 = vector.extract_strided_slice %332 {offsets = [0, 32], sizes = [8, 16], strides = [1, 1]} : vector<8x64xbf16> to vector<8x16xbf16>
    %386 = arith.truncf %382 : vector<8x8xf32> to vector<8x8xbf16>
    %cst_146 = arith.constant dense<0.000000e+00> : vector<8x16xf32>
    %387 = tpu.matmul %386, %385, %cst_146 {dimension_numbers = #tpu.dot_dimension_numbers<[1], [0], [0], [1], [0, 0, 1, 1], [], []>} : vector<8x8xbf16>, vector<8x16xbf16>, vector<8x16xf32> -> vector<8x16xf32>
    %388 = tpu.reciprocal %384 {approx = true} : vector<8x1xf32> -> vector<8x1xf32>
    %389 = vector.broadcast %388 : vector<8x1xf32> to vector<8x16xf32>
    %390 = arith.mulf %387, %389 : vector<8x16xf32>
    %391 = vector.extract_strided_slice %291 {offsets = [32, 0], sizes = [16, 64], strides = [1, 1]} : vector<64x64xbf16> to vector<16x64xbf16>
    %392 = arith.truncf %390 : vector<8x16xf32> to vector<8x16xbf16>
    %cst_147 = arith.constant dense<0.000000e+00> : vector<8x64xf32>
    %393 = tpu.matmul %392, %391, %cst_147 {dimension_numbers = #tpu.dot_dimension_numbers<[1], [0], [0], [1], [0, 0, 1, 1], [], []>} : vector<8x16xbf16>, vector<16x64xbf16>, vector<8x64xf32> -> vector<8x64xf32>
    %394 = arith.addf %373, %393 : vector<8x64xf32>
    %395 = vector.extract_strided_slice %328 {offsets = [0, 48], sizes = [8, 16], strides = [1, 1]} : vector<8x64xbf16> to vector<8x16xbf16>
    %396 = vector.extract_strided_slice %330 {offsets = [0, 48], sizes = [8, 16], strides = [1, 1]} : vector<8x64xbf16> to vector<8x16xbf16>
    %cst_148 = arith.constant dense<0.000000e+00> : vector<8x8xf32>
    %397 = tpu.matmul %395, %396, %cst_148 {dimension_numbers = #tpu.dot_dimension_numbers<[1], [1], [0], [0], [0, 0, 1, 0], [], []>} : vector<8x16xbf16>, vector<8x16xbf16>, vector<8x8xf32> -> vector<8x8xf32>
    %398 = arith.addf %397, %286 : vector<8x8xf32>
    %cst_149 = arith.constant dense<0xFF800000> : vector<8xf32>
    %399 = vector.multi_reduction <maximumf>, %398, %cst_149 [1] : vector<8x8xf32> to vector<8xf32>
    %400 = vector.shape_cast %399 : vector<8xf32> to vector<8x1xf32>
    %401 = vector.broadcast %400 : vector<8x1xf32> to vector<8x8xf32>
    %402 = arith.subf %398, %401 : vector<8x8xf32>
    %403 = math.exp %402 : vector<8x8xf32>
    %cst_150 = arith.constant dense<0.000000e+00> : vector<8xf32>
    %404 = vector.multi_reduction <add>, %403, %cst_150 [1] : vector<8x8xf32> to vector<8xf32>
    %405 = vector.shape_cast %404 : vector<8xf32> to vector<8x1xf32>
    %406 = vector.extract_strided_slice %332 {offsets = [0, 48], sizes = [8, 16], strides = [1, 1]} : vector<8x64xbf16> to vector<8x16xbf16>
    %407 = arith.truncf %403 : vector<8x8xf32> to vector<8x8xbf16>
    %cst_151 = arith.constant dense<0.000000e+00> : vector<8x16xf32>
    %408 = tpu.matmul %407, %406, %cst_151 {dimension_numbers = #tpu.dot_dimension_numbers<[1], [0], [0], [1], [0, 0, 1, 1], [], []>} : vector<8x8xbf16>, vector<8x16xbf16>, vector<8x16xf32> -> vector<8x16xf32>
    %409 = tpu.reciprocal %405 {approx = true} : vector<8x1xf32> -> vector<8x1xf32>
    %410 = vector.broadcast %409 : vector<8x1xf32> to vector<8x16xf32>
    %411 = arith.mulf %408, %410 : vector<8x16xf32>
    %412 = vector.extract_strided_slice %291 {offsets = [48, 0], sizes = [16, 64], strides = [1, 1]} : vector<64x64xbf16> to vector<16x64xbf16>
    %413 = arith.truncf %411 : vector<8x16xf32> to vector<8x16xbf16>
    %cst_152 = arith.constant dense<0.000000e+00> : vector<8x64xf32>
    %414 = tpu.matmul %413, %412, %cst_152 {dimension_numbers = #tpu.dot_dimension_numbers<[1], [0], [0], [1], [0, 0, 1, 1], [], []>} : vector<8x16xbf16>, vector<16x64xbf16>, vector<8x64xf32> -> vector<8x64xf32>
    %415 = arith.addf %394, %414 : vector<8x64xf32>
    %416 = arith.addf %285, %415 : vector<8x64xf32>
    %417 = vector.broadcast %292 : vector<1x64xf32> to vector<8x64xf32>
    %418 = arith.addf %416, %417 : vector<8x64xf32>
    %cst_153 = arith.constant dense<0.000000e+00> : vector<8xf32>
    %419 = vector.multi_reduction <add>, %418, %cst_153 [1] : vector<8x64xf32> to vector<8xf32>
    %420 = vector.shape_cast %419 : vector<8xf32> to vector<8x1xf32>
    %cst_154 = arith.constant 6.400000e+01 : f32
    %421 = vector.broadcast %cst_154 : f32 to vector<8x1xf32>
    %422 = arith.divf %420, %421 : vector<8x1xf32>
    %423 = vector.broadcast %422 : vector<8x1xf32> to vector<8x64xf32>
    %424 = arith.subf %418, %423 : vector<8x64xf32>
    %425 = arith.mulf %424, %424 : vector<8x64xf32>
    %cst_155 = arith.constant dense<0.000000e+00> : vector<8xf32>
    %426 = vector.multi_reduction <add>, %425, %cst_155 [1] : vector<8x64xf32> to vector<8xf32>
    %427 = vector.shape_cast %426 : vector<8xf32> to vector<8x1xf32>
    %cst_156 = arith.constant 6.400000e+01 : f32
    %428 = vector.broadcast %cst_156 : f32 to vector<8x1xf32>
    %429 = arith.divf %427, %428 : vector<8x1xf32>
    %430 = vector.broadcast %422 : vector<8x1xf32> to vector<8x64xf32>
    %431 = arith.subf %418, %430 : vector<8x64xf32>
    %cst_157 = arith.constant 9.99999974E-6 : f32
    %432 = vector.broadcast %cst_157 : f32 to vector<8x1xf32>
    %433 = arith.addf %429, %432 : vector<8x1xf32>
    %434 = math.rsqrt %433 : vector<8x1xf32>
    %435 = vector.broadcast %434 : vector<8x1xf32> to vector<8x64xf32>
    %436 = arith.mulf %431, %435 : vector<8x64xf32>
    %437 = vector.broadcast %293 : vector<1x64xf32> to vector<8x64xf32>
    %438 = arith.mulf %436, %437 : vector<8x64xf32>
    %439 = vector.broadcast %294 : vector<1x64xf32> to vector<8x64xf32>
    %440 = arith.addf %438, %439 : vector<8x64xf32>
    %441 = arith.truncf %440 : vector<8x64xf32> to vector<8x64xbf16>
    %cst_158 = arith.constant dense<0.000000e+00> : vector<8x256xf32>
    %442 = tpu.matmul %441, %295, %cst_158 {dimension_numbers = #tpu.dot_dimension_numbers<[1], [0], [0], [1], [0, 0, 1, 1], [], []>} : vector<8x64xbf16>, vector<64x256xbf16>, vector<8x256xf32> -> vector<8x256xf32>
    %443 = vector.broadcast %296 : vector<1x256xf32> to vector<8x256xf32>
    %444 = arith.addf %442, %443 : vector<8x256xf32>
    %445 = arith.mulf %444, %444 : vector<8x256xf32>
    %446 = arith.mulf %444, %445 : vector<8x256xf32>
    %cst_159 = arith.constant 4.471500e-02 : f32
    %447 = vector.broadcast %cst_159 : f32 to vector<8x256xf32>
    %448 = arith.mulf %447, %446 : vector<8x256xf32>
    %449 = arith.addf %444, %448 : vector<8x256xf32>
    %cst_160 = arith.constant 0.797884583 : f32
    %450 = vector.broadcast %cst_160 : f32 to vector<8x256xf32>
    %451 = arith.mulf %450, %449 : vector<8x256xf32>
    %452 = math.tanh %451 : vector<8x256xf32>
    %cst_161 = arith.constant 1.000000e+00 : f32
    %453 = vector.broadcast %cst_161 : f32 to vector<8x256xf32>
    %454 = arith.addf %453, %452 : vector<8x256xf32>
    %cst_162 = arith.constant 5.000000e-01 : f32
    %455 = vector.broadcast %cst_162 : f32 to vector<8x256xf32>
    %456 = arith.mulf %455, %454 : vector<8x256xf32>
    %457 = arith.mulf %444, %456 : vector<8x256xf32>
    %458 = arith.truncf %457 : vector<8x256xf32> to vector<8x256xbf16>
    %cst_163 = arith.constant dense<0.000000e+00> : vector<8x64xf32>
    %459 = tpu.matmul %458, %297, %cst_163 {dimension_numbers = #tpu.dot_dimension_numbers<[1], [0], [0], [1], [0, 0, 1, 1], [], []>} : vector<8x256xbf16>, vector<256x64xbf16>, vector<8x64xf32> -> vector<8x64xf32>
    %460 = arith.addf %418, %459 : vector<8x64xf32>
    %461 = vector.broadcast %298 : vector<1x64xf32> to vector<8x64xf32>
    %462 = arith.addf %460, %461 : vector<8x64xf32>
    %c200 = arith.constant 200 : index
    %c0_164 = arith.constant 0 : index
    %463 = vector.load %arg4[%c200, %c0_164] : memref<264x256xf32, #tpu.memory_space<vmem>>, vector<1x64xf32>
    %c208 = arith.constant 208 : index
    %c0_165 = arith.constant 0 : index
    %464 = vector.load %arg4[%c208, %c0_165] : memref<264x256xf32, #tpu.memory_space<vmem>>, vector<1x64xf32>
    %cst_166 = arith.constant dense<0.000000e+00> : vector<8xf32>
    %465 = vector.multi_reduction <add>, %462, %cst_166 [1] : vector<8x64xf32> to vector<8xf32>
    %466 = vector.shape_cast %465 : vector<8xf32> to vector<8x1xf32>
    %cst_167 = arith.constant 6.400000e+01 : f32
    %467 = vector.broadcast %cst_167 : f32 to vector<8x1xf32>
    %468 = arith.divf %466, %467 : vector<8x1xf32>
    %469 = vector.broadcast %468 : vector<8x1xf32> to vector<8x64xf32>
    %470 = arith.subf %462, %469 : vector<8x64xf32>
    %471 = arith.mulf %470, %470 : vector<8x64xf32>
    %cst_168 = arith.constant dense<0.000000e+00> : vector<8xf32>
    %472 = vector.multi_reduction <add>, %471, %cst_168 [1] : vector<8x64xf32> to vector<8xf32>
    %473 = vector.shape_cast %472 : vector<8xf32> to vector<8x1xf32>
    %cst_169 = arith.constant 6.400000e+01 : f32
    %474 = vector.broadcast %cst_169 : f32 to vector<8x1xf32>
    %475 = arith.divf %473, %474 : vector<8x1xf32>
    %476 = vector.broadcast %468 : vector<8x1xf32> to vector<8x64xf32>
    %477 = arith.subf %462, %476 : vector<8x64xf32>
    %cst_170 = arith.constant 9.99999974E-6 : f32
    %478 = vector.broadcast %cst_170 : f32 to vector<8x1xf32>
    %479 = arith.addf %475, %478 : vector<8x1xf32>
    %480 = math.rsqrt %479 : vector<8x1xf32>
    %481 = vector.broadcast %480 : vector<8x1xf32> to vector<8x64xf32>
    %482 = arith.mulf %477, %481 : vector<8x64xf32>
    %483 = vector.broadcast %463 : vector<1x64xf32> to vector<8x64xf32>
    %484 = arith.mulf %482, %483 : vector<8x64xf32>
    %485 = vector.broadcast %464 : vector<1x64xf32> to vector<8x64xf32>
    %486 = arith.addf %484, %485 : vector<8x64xf32>
    %c640 = arith.constant 640 : index
    %c0_171 = arith.constant 0 : index
    %487 = vector.load %arg3[%c640, %c0_171] : memref<656x256xbf16, #tpu.memory_space<vmem>>, vector<2x8xbf16>
    %488 = arith.truncf %486 : vector<8x64xf32> to vector<8x64xbf16>
    %cst_172 = arith.constant dense<0.000000e+00> : vector<2x64xf32>
    %489 = tpu.matmul %487, %488, %cst_172 {dimension_numbers = #tpu.dot_dimension_numbers<[1], [0], [0], [1], [0, 0, 1, 1], [], []>} : vector<2x8xbf16>, vector<8x64xbf16>, vector<2x64xf32> -> vector<2x64xf32>
    %c576 = arith.constant 576 : index
    %c0_173 = arith.constant 0 : index
    %490 = vector.load %arg3[%c576, %c0_173] : memref<656x256xbf16, #tpu.memory_space<vmem>>, vector<64x128xbf16>
    %491 = arith.truncf %489 : vector<2x64xf32> to vector<2x64xbf16>
    %cst_174 = arith.constant dense<0.000000e+00> : vector<2x128xf32>
    %492 = tpu.matmul %491, %490, %cst_174 {dimension_numbers = #tpu.dot_dimension_numbers<[1], [0], [0], [1], [0, 0, 1, 1], [], []>} : vector<2x64xbf16>, vector<64x128xbf16>, vector<2x128xf32> -> vector<2x128xf32>
    %c216 = arith.constant 216 : index
    %c0_175 = arith.constant 0 : index
    %493 = vector.load %arg4[%c216, %c0_175] : memref<264x256xf32, #tpu.memory_space<vmem>>, vector<1x128xf32>
    %494 = vector.broadcast %493 : vector<1x128xf32> to vector<2x128xf32>
    %495 = arith.addf %492, %494 : vector<2x128xf32>
    %c0_176 = arith.constant 0 : index
    %c0_177 = arith.constant 0 : index
    %496 = vector.load %arg5[%c0_176, %c0_177] : memref<2x128xf32, #tpu.memory_space<vmem>>, vector<2x128xf32>
    tpu.vector_store %arg5[%c0_176, %c0_177], %495 {strides = array<i32>} : memref<2x128xf32, #tpu.memory_space<vmem>>, vector<2x128xf32>,
    return
  }
  func.func @transform_0(%arg0: i32) -> (i32, i32) {
    %c0_i32 = arith.constant 0 : i32
    %c0_i32_0 = arith.constant 0 : i32
    %c0_i32_1 = arith.constant 0 : i32
    return %c0_i32, %c0_i32_0 : i32, i32
  }
  func.func @transform_1(%arg0: i32) -> (i32, i32) {
    %c0_i32 = arith.constant 0 : i32
    %c0_i32_0 = arith.constant 0 : i32
    %c0_i32_1 = arith.constant 0 : i32
    return %c0_i32, %c0_i32_0 : i32, i32
  }
  func.func @transform_2(%arg0: i32) -> (i32, i32) {
    %c0_i32 = arith.constant 0 : i32
    %c0_i32_0 = arith.constant 0 : i32
    %c0_i32_1 = arith.constant 0 : i32
    return %c0_i32, %c0_i32_0 : i32, i32
  }
  func.func @transform_3(%arg0: i32) -> (i32, i32) {
    %c0_i32 = arith.constant 0 : i32
    %c0_i32_0 = arith.constant 0 : i32
    %c0_i32_1 = arith.constant 0 : i32
    return %c0_i32, %c0_i32_0 : i32, i32
  }
  func.func @transform_4(%arg0: i32) -> (i32, i32) {
    %c0_i32 = arith.constant 0 : i32
    %c0_i32_0 = arith.constant 0 : i32
    %c0_i32_1 = arith.constant 0 : i32
    return %c0_i32, %c0_i32_0 : i32, i32
  }
}

</mosaic_0001>

<llo_original>
// kernel: forward.1
$region0: #{forward.1}
  #allocation0 [shape = 'u32[]', space=smem, size = 0x4, offset = 0x4, fixed_abs, tag = 'smem constant byte address 0x4 - core index']
  #allocation1 [shape = 'u32[72,128]{1,0:T(1,128)}', space=vmem, size = 0x9000, scoped, tag = 'internal scratch']
  #allocation2 [shape = 'f32[8,128]{1,0:T(8,128)}', space=vmem, size = 0x1000, scoped, tag = 'scratch operand']
  %s0 = inlined_call_operand.vmem [shape: f32[32,48], index: 0, kind: input, shape index: {}]
  %s1 = inlined_call_operand.vmem [shape: bf16[448,128], index: 1, kind: input, shape index: {}]
  %s2 = inlined_call_operand.vmem [shape: bf16[656,256], index: 2, kind: input, shape index: {}]
  %s3 = inlined_call_operand.vmem [shape: f32[264,256], index: 3, kind: input, shape index: {}]
  %s4 = inlined_call_operand.hbm [shape: f32[2,128], index: 4, kind: output, shape index: {}]
  %s5 = sld [smem:[#allocation0]]
  $region26: #{forward.1} parent=0
    _
  %s7 = ssub.s32 1, %s5
  %s8 = scalar_select 0, %s7, %s5
  $region1: #{forward.1} parent=0
    #allocation3 [shape = 'u8[1024]{0}', space=vmem, size = 0x400, scoped, tag = 'output window, operand 0, single buffered']
    #allocation4 [shape = 's32[1]{0}', space=sflag, size = 0x4, scoped, tag = 'scoped memory for forward.1']
    %9 = vsyncpa [#allocation4], 0
    // Predicated region
    $region2: #{forward.1} parent=1 // pred_check
      _
    $region3: #{forward.1} parent=1 // pred_check_branch
      %11 = sbr.rel (0) target = $region5
    $region4: #{forward.1} parent=1 // pred_region
      _
    $region5: #{forward.1} parent=1 // pred_fallthru
      _
    // Predicated region
    $region6: #{forward.1} parent=1 // pred_check
      _
    $region7: #{forward.1} parent=1 // pred_check_branch
      %13 = sbr.rel (0) target = $region9
    $region8: #{forward.1} parent=1 // pred_region
      _
    $region9: #{forward.1} parent=1 // pred_fallthru
      _
    // Predicated region
    $region10: #{forward.1} parent=1 // pred_check
      _
    $region11: #{forward.1} parent=1 // pred_check_branch
      %15 = sbr.rel (0) target = $region13
    $region12: #{forward.1} parent=1 // pred_region
      _
    $region13: #{forward.1} parent=1 // pred_fallthru
      _
    // Predicated region
    $region14: #{forward.1} parent=1 // pred_check
      _
    $region15: #{forward.1} parent=1 // pred_check_branch
      %17 = sbr.rel (0) target = $region17
    $region16: #{forward.1} parent=1 // pred_region
      _
    $region17: #{forward.1} parent=1 // pred_fallthru
      _
    %v19 = vld [vmem:[%s0] sm:$0xff]
    %v20 = vld [vmem:[%s0 + $0x8] sm:$0xff]
    %v21 = vld [vmem:[%s0 + $0x10] sm:$0xff]
    %v22 = vld [vmem:[%s0 + $0x18] sm:$0xff]
    %v23 = vpack.c.bf16 %v20, %v19
    %v24 = vpack.c.bf16 %v22, %v21
    %v25 = vld [vmem:[%s1] sm:$0xf]
    %v26 = vld [vmem:[%s1 + $0x4] sm:$0xf]
    %v27 = vld [vmem:[%s1 + $0x8] sm:$0xf]
    %v28 = vld [vmem:[%s1 + $0xc] sm:$0xf]
    %v29 = vld [vmem:[%s1 + $0x10] sm:$0xf]
    %v30 = vld [vmem:[%s1 + $0x14] sm:$0xf]
    %v31 = vld [vmem:[%s3] ss:$0 sm:$0xff]
    %v38 = vunpack.c.l.b16 %v25
    %v39 = vunpack.c.l.b16 %v26
    %v40 = vunpack.c.l.b16 %v27
    %v41 = vunpack.c.l.b16 %v28
    %v42 = vunpack.c.l.b16 %v29
    %v43 = vunpack.c.l.b16 %v30
    %v44 = vpack.c.b16 %v39, %v38
    %v45 = vpack.c.b16 %v41, %v40
    %v46 = vpack.c.b16 %v43, %v42
    %vm50 = vcmask 392192
    %v52 = vsel %vm50, %v23, 0
    %v55 = vsel %vm50, %v24, 0
    %57 = vmatpush.bf16.msra.mxu0 0
    %58 = vmatpush.bf16.msra.mxu0 0
    %59 = vmatpush.bf16.msra.mxu0 0
    %60 = vmatpush.bf16.msra.mxu0 0
    %61 = vmatpush.bf16.msra.mxu0 0
    %62 = vmatpush.bf16.msra.mxu0 %v46
    %63 = vmatpush.bf16.msra.mxu0 %v45
    %64 = vmatpush.bf16.msra.mxu0 %v44
    %65 = vmatmul.bf16.gmra.mxu0 %v52
    %v66 = vpop.f32.mrf.mxu0
    %v67 = vadd.f32 %v31, %v66
    %v68 = vpop.f32.mrf.mxu0
    %v69 = vadd.f32 %v31, %v68
    %70 = vmatmul.bf16.gmra.mxu0 %v55
    %v71 = vpop.f32.mrf.mxu0
    %v72 = vadd.f32 %v31, %v71
    %v73 = vpop.f32.mrf.mxu0
    %v74 = vadd.f32 %v31, %v73
    %75 = vdwg.mxu0
    %v76 = vld [vmem:[%s3 + $0x10] ss:$0 sm:$0xff]
    %v77 = vld [vmem:[%s3 + $0x20] ss:$0 sm:$0xff]
    %vm78 = vcmask 261120
    %v79 = vsel %vm78, %v67, 0.0
    %80 = vadd.xlane.f32.xlu0 %v79
    %v81 = vpop.xlane.xlu0 %80
    %v82 = vsel %vm78, %v69, 0.0
    %83 = vadd.xlane.f32.xlu0 %v82
    %v84 = vpop.xlane.xlu0 %83
    %v85 = vsel %vm78, %v72, 0.0
    %86 = vadd.xlane.f32.xlu0 %v85
    %v87 = vpop.xlane.xlu0 %86
    %v88 = vsel %vm78, %v74, 0.0
    %89 = vadd.xlane.f32.xlu0 %v88
    %v90 = vpop.xlane.xlu0 %89
    %v91 = vrcp.pop 32.0
    %v92 = vmul.f32 32.0, %v91
    %v93 = vsub.f32 1.0, %v92
    %v94 = vmul.f32 %v91, %v93
    %v95 = vadd.f32 %v91, %v94
    %vm96 = vweird.f32 %v91
    %v97 = vsel %vm96, %v91, %v95
    %v98 = vmul.f32 %v81, %v97
    %v99 = vmul.f32 %v84, %v97
    %v100 = vmul.f32 %v87, %v97
    %v101 = vmul.f32 %v90, %v97
    %v102 = vsub.f32 %v67, %v98
    %v103 = vsub.f32 %v69, %v99
    %v104 = vsub.f32 %v72, %v100
    %v105 = vsub.f32 %v74, %v101
    %v106 = vmul.f32 %v102, %v102
    %v107 = vmul.f32 %v103, %v103
    %v108 = vmul.f32 %v104, %v104
    %v109 = vmul.f32 %v105, %v105
    %v110 = vsel %vm78, %v106, 0.0
    %111 = vadd.xlane.f32.xlu0 %v110
    %v112 = vpop.xlane.xlu0 %111
    %v113 = vsel %vm78, %v107, 0.0
    %114 = vadd.xlane.f32.xlu0 %v113
    %v115 = vpop.xlane.xlu0 %114
    %v116 = vsel %vm78, %v108, 0.0
    %117 = vadd.xlane.f32.xlu0 %v116
    %v118 = vpop.xlane.xlu0 %117
    %v119 = vsel %vm78, %v109, 0.0
    %120 = vadd.xlane.f32.xlu0 %v119
    %v121 = vpop.xlane.xlu0 %120
    %v122 = vmul.f32 %v112, %v97
    %v123 = vmul.f32 %v115, %v97
    %v124 = vmul.f32 %v118, %v97
    %v125 = vmul.f32 %v121, %v97
    %v126 = vadd.f32 %v122, 1e-05
    %v127 = vadd.f32 %v123, 1e-05
    %v128 = vadd.f32 %v124, 1e-05
    %v129 = vadd.f32 %v125, 1e-05
    %v130 = vrsqrt.pop %v126
    %v131 = vmul.f32 %v130, %v126
    %v132 = vmul.f32 %v131, %v130
    %v133 = vmul.f32 0.5, %v132
    %v134 = vsub.f32 1.5, %v133
    %v135 = vmul.f32 %v130, %v134
    %vm136 = vweird.f32 %v126
    %vm137 = vweird.f32 %v130
    %vm138 = vmor %vm136, %vm137
    %v139 = vsel %vm138, %v130, %v135
    %v140 = vrsqrt.pop %v127
    %v141 = vmul.f32 %v140, %v127
    %v142 = vmul.f32 %v141, %v140
    %v143 = vmul.f32 0.5, %v142
    %v144 = vsub.f32 1.5, %v143
    %v145 = vmul.f32 %v140, %v144
    %vm146 = vweird.f32 %v127
    %vm147 = vweird.f32 %v140
    %vm148 = vmor %vm146, %vm147
    %v149 = vsel %vm148, %v140, %v145
    %v150 = vrsqrt.pop %v128
    %v151 = vmul.f32 %v150, %v128
    %v152 = vmul.f32 %v151, %v150
    %v153 = vmul.f32 0.5, %v152
    %v154 = vsub.f32 1.5, %v153
    %v155 = vmul.f32 %v150, %v154
    %vm156 = vweird.f32 %v128
    %vm157 = vweird.f32 %v150
    %vm158 = vmor %vm156, %vm157
    %v159 = vsel %vm158, %v150, %v155
    %v160 = vrsqrt.pop %v129
    %v161 = vmul.f32 %v160, %v129
    %v162 = vmul.f32 %v161, %v160
    %v163 = vmul.f32 0.5, %v162
    %v164 = vsub.f32 1.5, %v163
    %v165 = vmul.f32 %v160, %v164
    %vm166 = vweird.f32 %v129
    %vm167 = vweird.f32 %v160
    %vm168 = vmor %vm166, %vm167
    %v169 = vsel %vm168, %v160, %v165
    %v170 = vmul.f32 %v102, %v139
    %v171 = vmul.f32 %v103, %v149
    %v172 = vmul.f32 %v104, %v159
    %v173 = vmul.f32 %v105, %v169
    %v174 = vmul.f32 %v170, %v76
    %v175 = vmul.f32 %v171, %v76
    %v176 = vmul.f32 %v172, %v76
    %v177 = vmul.f32 %v173, %v76
    %v178 = vadd.f32 %v174, %v77
    %v179 = vadd.f32 %v175, %v77
    %v180 = vadd.f32 %v176, %v77
    %v181 = vadd.f32 %v177, %v77
    %v182 = vld [vmem:[%s1 + $0x18] sm:$0xf]
    %v183 = vld [vmem:[%s1 + $0x1c] sm:$0xf]
    %v184 = vld [vmem:[%s1 + $0x20] sm:$0xf]
    %v185 = vld [vmem:[%s1 + $0x24] sm:$0xf]
    %v186 = vld [vmem:[%s1 + $0x28] sm:$0xf]
    %v187 = vld [vmem:[%s1 + $0x2c] sm:$0xf]
    %v188 = vld [vmem:[%s3 + $0x30] ss:$0 sm:$0xff]
    %v195 = vunpack.c.l.b16 %v182
    %v196 = vunpack.c.l.b16 %v183
    %v197 = vunpack.c.l.b16 %v184
    %v198 = vunpack.c.l.b16 %v185
    %v199 = vunpack.c.l.b16 %v186
    %v200 = vunpack.c.l.b16 %v187
    %v201 = vpack.c.b16 %v196, %v195
    %v202 = vpack.c.b16 %v198, %v197
    %v203 = vpack.c.b16 %v200, %v199
    %207 = vmatpush.bf16.msra.mxu0 0
    %208 = vmatpush.bf16.msra.mxu0 0
    %209 = vmatpush.bf16.msra.mxu0 0
    %210 = vmatpush.bf16.msra.mxu0 0
    %211 = vmatpush.bf16.msra.mxu0 0
    %212 = vmatpush.bf16.msra.mxu0 %v203
    %213 = vmatpush.bf16.msra.mxu0 %v202
    %214 = vmatpush.bf16.msra.mxu0 %v201
    %215 = vmatmul.bf16.gmra.mxu0 %v52
    %v216 = vpop.f32.mrf.mxu0
    %v217 = vadd.f32 %v188, %v216
    %v218 = vpop.f32.mrf.mxu0
    %v219 = vadd.f32 %v188, %v218
    %220 = vmatmul.bf16.gmra.mxu0 %v55
    %v221 = vpop.f32.mrf.mxu0
    %v222 = vadd.f32 %v188, %v221
    %v223 = vpop.f32.mrf.mxu0
    %v224 = vadd.f32 %v188, %v223
    %225 = vdwg.mxu0
    %v226 = vadd.f32 %v178, %v217
    %v227 = vadd.f32 %v179, %v219
    %v228 = vadd.f32 %v180, %v222
    %v229 = vadd.f32 %v181, %v224
    %v230 = vld [vmem:[%s1 + $0xb8] sm:$0x1]
    %v231 = vpack.c.bf16 %v227, %v226
    %v232 = vpack.c.bf16 %v229, %v228
    %v234 = vsel %vm78, %v230, 0
    %236 = vmatpush.bf16.msra.mxu0 0
    %237 = vmatpush.bf16.msra.mxu0 0
    %238 = vmatpush.bf16.msra.mxu0 0
    %239 = vmatpush.bf16.msra.mxu0 0
    %240 = vmatpush.bf16.msra.mxu0 0
    %241 = vmatpush.bf16.msra.mxu0 0
    %242 = vmatpush.bf16.msra.mxu0 %v232
    %243 = vmatpush.bf16.msra.mxu0 %v231
    %244 = vmatmul.bf16.gmra.mxu0 %v234
    %v245 = vpop.f32.mrf.mxu0
    %v246 = vadd.f32 0.0, %v245
    %v247 = vpop.f32.mrf.mxu0
    %248 = vdwg.mxu0
    %v249 = vld [vmem:[%s1 + $0xa0] sm:$0xf]
    %v250 = vld [vmem:[%s1 + $0xa4] sm:$0xf]
    %v251 = vld [vmem:[%s1 + $0xa8] sm:$0xf]
    %v252 = vld [vmem:[%s1 + $0xac] sm:$0xf]
    %v253 = vpack.c.bf16 %v246, %v246
    %v254 = vld [vmem:[%s3 + $0x40] ss:$0 sm:$0xff]
    %v259 = vunpack.c.l.b16 %v249
    %v260 = vunpack.c.l.b16 %v250
    %v261 = vunpack.c.l.b16 %v251
    %v262 = vunpack.c.l.b16 %v252
    %v263 = vpack.c.b16 %v260, %v259
    %v264 = vpack.c.b16 %v262, %v261
    %v268 = vsel %vm78, %v253, 0
    %270 = vmatpush.bf16.msra.mxu0 0
    %271 = vmatpush.bf16.msra.mxu0 0
    %272 = vmatpush.bf16.msra.mxu0 0
    %273 = vmatpush.bf16.msra.mxu0 0
    %274 = vmatpush.bf16.msra.mxu0 0
    %275 = vmatpush.bf16.msra.mxu0 0
    %276 = vmatpush.bf16.msra.mxu0 %v264
    %277 = vmatpush.bf16.msra.mxu0 %v263
    %278 = vmatmul.bf16.gmra.mxu0 %v268
    %v279 = vpop.f32.mrf.mxu0
    %v280 = vadd.f32 %v254, %v279
    %v281 = vpop.f32.mrf.mxu0
    %282 = vdwg.mxu0
    %v283 = vmax.f32 %v280, 0.0
    %v284 = vld [vmem:[%s1 + $0xb0] sm:$0x1]
    %v285 = vpack.c.bf16 %v283, %v283
    %v286 = vld [vmem:[%s3 + $0x50] ss:$0 sm:$0xff]
    %vm287 = vcmask 15360
    %v289 = vsel %vm287, %v285, 0
    %vm291 = vcmask 1040384
    %v293 = vsel %vm291, %v284, 0
    %295 = vmatpush.bf16.msra.mxu0 0
    %296 = vmatpush.bf16.msra.mxu0 0
    %297 = vmatpush.bf16.msra.mxu0 0
    %298 = vmatpush.bf16.msra.mxu0 0
    %299 = vmatpush.bf16.msra.mxu0 0
    %300 = vmatpush.bf16.msra.mxu0 0
    %301 = vmatpush.bf16.msra.mxu0 0
    %302 = vmatpush.bf16.msra.mxu0 %v293
    %303 = vmatmul.bf16.gmra.mxu0 %v289
    %v304 = vpop.f32.mrf.mxu0
    %v305 = vadd.f32 %v286, %v304
    %v306 = vpop.f32.mrf.mxu0
    %307 = vdwg.mxu0
    %v308 = vld [vmem:[%s1 + $0xc0] sm:$0xf]
    %v309 = vld [vmem:[%s1 + $0xc4] sm:$0xf]
    %v310 = vld [vmem:[%s1 + $0xc8] sm:$0xf]
    %v311 = vld [vmem:[%s1 + $0xcc] sm:$0xf]
    %v312 = vxor.u32 %v305, 2147483648
    %v313 = vmul.f32 %v312, 1.442695
    %v314 = vpow.pop %v313
    %v315 = vadd.f32 %v314, 1.0
    %v316 = vrcp.pop %v315
    %v317 = vmul.f32 %v315, %v316
    %v318 = vsub.f32 1.0, %v317
    %v319 = vmul.f32 %v316, %v318
    %v320 = vadd.f32 %v316, %v319
    %vm321 = vweird.f32 %v315
    %vm322 = vweird.f32 %v316
    %vm323 = vmor %vm321, %vm322
    %v324 = vsel %vm323, %v316, %v320
    %v325 = vand.u32 2147483647, %v315
    %vm326 = vcmp.eq.f32.partialorder %v325, 8.507059e+37
    %v327 = vand.u32 %v315, 2147483648
    %v328 = vor.u32 1.1754944e-38, %v327
    %v329 = vsel %vm326, %v328, %v324
    %v330 = vmul.f32 1.0, %v329
    %v331 = vpack.c.bf16 %v330, %v330
    %v336 = vunpack.c.l.b16 %v308
    %v337 = vunpack.c.l.b16 %v309
    %v338 = vunpack.c.l.b16 %v310
    %v339 = vunpack.c.l.b16 %v311
    %v340 = vpack.c.b16 %v337, %v336
    %v341 = vpack.c.b16 %v339, %v338
    %v343 = vsel %vm287, %v340, 0
    %v346 = vsel %vm287, %v341, 0
    %v349 = vsel %vm291, %v331, 0
    %351 = vmatpush.bf16.msra.mxu0 0
    %352 = vmatpush.bf16.msra.mxu0 0
    %353 = vmatpush.bf16.msra.mxu0 0
    %354 = vmatpush.bf16.msra.mxu0 0
    %355 = vmatpush.bf16.msra.mxu0 0
    %356 = vmatpush.bf16.msra.mxu0 0
    %357 = vmatpush.bf16.msra.mxu0 0
    %358 = vmatpush.bf16.msra.mxu0 %v349
    %359 = vmatmul.bf16.gmra.mxu0 %v343
    %v360 = vpop.f32.mrf.mxu0
    %v361 = vadd.f32 0.0, %v360
    %v362 = vpop.f32.mrf.mxu0
    %v363 = vadd.f32 0.0, %v362
    %364 = vmatmul.bf16.gmra.mxu0 %v346
    %v365 = vpop.f32.mrf.mxu0
    %v366 = vadd.f32 0.0, %v365
    %v367 = vpop.f32.mrf.mxu0
    %v368 = vadd.f32 0.0, %v367
    %369 = vdwg.mxu0
    %v370 = vmul.f32 %v178, %v361
    %v371 = vmul.f32 %v179, %v363
    %v372 = vmul.f32 %v180, %v366
    %v373 = vmul.f32 %v181, %v368
    %v374 = vadd.f32 %v370, %v217
    %v375 = vadd.f32 %v371, %v219
    %v376 = vadd.f32 %v372, %v222
    %v377 = vadd.f32 %v373, %v224
    %v378 = vld [vmem:[%s3 + $0x1c0] sm:$0xff]
    %v379 = vld [vmem:[%s3 + $0x1d0] sm:$0xff]
    %v380 = vld [vmem:[%s3 + $0x1e0] sm:$0xff]
    %v381 = vld [vmem:[%s3 + $0x1f0] sm:$0xff]
    %v382 = vld [vmem:[%s3 + $0x60] ss:$0 sm:$0xff]
    %v383 = vld [vmem:[%s3 + $0x70] ss:$0 sm:$0xff]
    %v384 = vld [vmem:[%s1 + $0x30] sm:$0xf]
    %v385 = vld [vmem:[%s1 + $0x34] sm:$0xf]
    %v386 = vld [vmem:[%s1 + $0x38] sm:$0xf]
    %v387 = vld [vmem:[%s1 + $0x3c] sm:$0xf]
    %v388 = vld [vmem:[%s3 + $0x80] ss:$0 sm:$0xff]
    %v389 = vld [vmem:[%s1 + $0x40] sm:$0xf]
    %v390 = vld [vmem:[%s1 + $0x44] sm:$0xf]
    %v391 = vld [vmem:[%s1 + $0x48] sm:$0xf]
    %v392 = vld [vmem:[%s1 + $0x4c] sm:$0xf]
    %v393 = vld [vmem:[%s3 + $0x90] ss:$0 sm:$0xff]
    %v394 = vld [vmem:[%s3 + $0xa0] ss:$0 sm:$0xff]
    %v395 = vld [vmem:[%s3 + $0xb0] ss:$0 sm:$0xff]
    %v396 = vld [vmem:[%s1 + $0x50] sm:$0xf]
    %v397 = vld [vmem:[%s1 + $0x54] sm:$0xf]
    %v398 = vld [vmem:[%s1 + $0x58] sm:$0xf]
    %v399 = vld [vmem:[%s1 + $0x5c] sm:$0xf]
    %v400 = vld [vmem:[%s3 + $0xc0] ss:$0 sm:$0xff]
    %v401 = vld [vmem:[%s1 + $0x60] sm:$0xf]
    %v402 = vld [vmem:[%s1 + $0x64] sm:$0xf]
    %v403 = vld [vmem:[%s1 + $0x68] sm:$0xf]
    %v404 = vld [vmem:[%s1 + $0x6c] sm:$0xf]
    %v405 = vld [vmem:[%s1 + $0x70] sm:$0xf]
    %v406 = vld [vmem:[%s1 + $0x74] sm:$0xf]
    %v407 = vld [vmem:[%s1 + $0x78] sm:$0xf]
    %v408 = vld [vmem:[%s1 + $0x7c] sm:$0xf]
    %v409 = vld [vmem:[%s1 + $0x80] sm:$0xf]
    %v410 = vld [vmem:[%s1 + $0x84] sm:$0xf]
    %v411 = vld [vmem:[%s1 + $0x88] sm:$0xf]
    %v412 = vld [vmem:[%s1 + $0x8c] sm:$0xf]
    %v413 = vld [vmem:[%s1 + $0x90] sm:$0xf]
    %v414 = vld [vmem:[%s1 + $0x94] sm:$0xf]
    %v415 = vld [vmem:[%s1 + $0x98] sm:$0xf]
    %v416 = vld [vmem:[%s1 + $0x9c] sm:$0xf]
    %v417 = vld [vmem:[%s3 + $0xd0] ss:$0 sm:$0xff]
    %v418 = vsel %vm78, %v374, 0.0
    %419 = vadd.xlane.f32.xlu0 %v418
    %v420 = vpop.xlane.xlu0 %419
    %v421 = vsel %vm78, %v375, 0.0
    %422 = vadd.xlane.f32.xlu0 %v421
    %v423 = vpop.xlane.xlu0 %422
    %v424 = vsel %vm78, %v376, 0.0
    %425 = vadd.xlane.f32.xlu0 %v424
    %v426 = vpop.xlane.xlu0 %425
    %v427 = vsel %vm78, %v377, 0.0
    %428 = vadd.xlane.f32.xlu0 %v427
    %v429 = vpop.xlane.xlu0 %428
    %v430 = vmul.f32 %v420, %v97
    %v431 = vmul.f32 %v423, %v97
    %v432 = vmul.f32 %v426, %v97
    %v433 = vmul.f32 %v429, %v97
    %v434 = vsub.f32 %v374, %v430
    %v435 = vsub.f32 %v375, %v431
    %v436 = vsub.f32 %v376, %v432
    %v437 = vsub.f32 %v377, %v433
    %v438 = vmul.f32 %v434, %v434
    %v439 = vmul.f32 %v435, %v435
    %v440 = vmul.f32 %v436, %v436
    %v441 = vmul.f32 %v437, %v437
    %v442 = vsel %vm78, %v438, 0.0
    %443 = vadd.xlane.f32.xlu0 %v442
    %v444 = vpop.xlane.xlu0 %443
    %v445 = vsel %vm78, %v439, 0.0
    %446 = vadd.xlane.f32.xlu0 %v445
    %v447 = vpop.xlane.xlu0 %446
    %v448 = vsel %vm78, %v440, 0.0
    %449 = vadd.xlane.f32.xlu0 %v448
    %v450 = vpop.xlane.xlu0 %449
    %v451 = vsel %vm78, %v441, 0.0
    %452 = vadd.xlane.f32.xlu0 %v451
    %v453 = vpop.xlane.xlu0 %452
    %v454 = vmul.f32 %v444, %v97
    %v455 = vmul.f32 %v447, %v97
    %v456 = vmul.f32 %v450, %v97
    %v457 = vmul.f32 %v453, %v97
    %v458 = vadd.f32 %v454, 1e-05
    %v459 = vadd.f32 %v455, 1e-05
    %v460 = vadd.f32 %v456, 1e-05
    %v461 = vadd.f32 %v457, 1e-05
    %v462 = vrsqrt.pop %v458
    %v463 = vmul.f32 %v462, %v458
    %v464 = vmul.f32 %v463, %v462
    %v465 = vmul.f32 0.5, %v464
    %v466 = vsub.f32 1.5, %v465
    %v467 = vmul.f32 %v462, %v466
    %vm468 = vweird.f32 %v458
    %vm469 = vweird.f32 %v462
    %vm470 = vmor %vm468, %vm469
    %v471 = vsel %vm470, %v462, %v467
    %v472 = vrsqrt.pop %v459
    %v473 = vmul.f32 %v472, %v459
    %v474 = vmul.f32 %v473, %v472
    %v475 = vmul.f32 0.5, %v474
    %v476 = vsub.f32 1.5, %v475
    %v477 = vmul.f32 %v472, %v476
    %vm478 = vweird.f32 %v459
    %vm479 = vweird.f32 %v472
    %vm480 = vmor %vm478, %vm479
    %v481 = vsel %vm480, %v472, %v477
    %v482 = vrsqrt.pop %v460
    %v483 = vmul.f32 %v482, %v460
    %v484 = vmul.f32 %v483, %v482
    %v485 = vmul.f32 0.5, %v484
    %v486 = vsub.f32 1.5, %v485
    %v487 = vmul.f32 %v482, %v486
    %vm488 = vweird.f32 %v460
    %vm489 = vweird.f32 %v482
    %vm490 = vmor %vm488, %vm489
    %v491 = vsel %vm490, %v482, %v487
    %v492 = vrsqrt.pop %v461
    %v493 = vmul.f32 %v492, %v461
    %v494 = vmul.f32 %v493, %v492
    %v495 = vmul.f32 0.5, %v494
    %v496 = vsub.f32 1.5, %v495
    %v497 = vmul.f32 %v492, %v496
    %vm498 = vweird.f32 %v461
    %vm499 = vweird.f32 %v492
    %vm500 = vmor %vm498, %vm499
    %v501 = vsel %vm500, %v492, %v497
    %v502 = vmul.f32 %v434, %v471
    %v503 = vmul.f32 %v435, %v481
    %v504 = vmul.f32 %v436, %v491
    %v505 = vmul.f32 %v437, %v501
    %v506 = vmul.f32 %v502, %v382
    %v507 = vmul.f32 %v503, %v382
    %v508 = vmul.f32 %v504, %v382
    %v509 = vmul.f32 %v505, %v382
    %v510 = vadd.f32 %v506, %v383
    %v511 = vadd.f32 %v507, %v383
    %v512 = vadd.f32 %v508, %v383
    %v513 = vadd.f32 %v509, %v383
    %v514 = vpack.c.bf16 %v511, %v510
    %v515 = vpack.c.bf16 %v513, %v512
    %v520 = vunpack.c.l.b16 %v384
    %v521 = vunpack.c.l.b16 %v385
    %v522 = vunpack.c.l.b16 %v386
    %v523 = vunpack.c.l.b16 %v387
    %v524 = vpack.c.b16 %v521, %v520
    %v525 = vpack.c.b16 %v523, %v522
    %v529 = vsel %vm78, %v514, 0
    %v532 = vsel %vm78, %v515, 0
    %534 = vmatpush.bf16.msra.mxu0 0
    %535 = vmatpush.bf16.msra.mxu0 0
    %536 = vmatpush.bf16.msra.mxu0 0
    %537 = vmatpush.bf16.msra.mxu0 0
    %538 = vmatpush.bf16.msra.mxu0 0
    %539 = vmatpush.bf16.msra.mxu0 0
    %540 = vmatpush.bf16.msra.mxu0 %v525
    %541 = vmatpush.bf16.msra.mxu0 %v524
    %542 = vmatmul.bf16.gmra.mxu0 %v529
    %v543 = vpop.f32.mrf.mxu0
    %v544 = vadd.f32 %v388, %v543
    %v545 = vpop.f32.mrf.mxu0
    %v546 = vadd.f32 %v388, %v545
    %547 = vmatmul.bf16.gmra.mxu0 %v532
    %v548 = vpop.f32.mrf.mxu0
    %v549 = vadd.f32 %v388, %v548
    %v550 = vpop.f32.mrf.mxu0
    %v551 = vadd.f32 %v388, %v550
    %552 = vdwg.mxu0
    %v553 = vmul.f32 %v544, 0.35355338
    %v554 = vmul.f32 %v546, 0.35355338
    %v555 = vmul.f32 %v549, 0.35355338
    %v556 = vmul.f32 %v551, 0.35355338
    %v557 = vpack.c.bf16 %v553, %v553
    %v558 = vpack.c.bf16 %v554, %v554
    %v559 = vpack.c.bf16 %v555, %v555
    %v560 = vpack.c.bf16 %v556, %v556
    %v561 = vpack.c.bf16 %v544, %v544
    %v562 = vpack.c.bf16 %v546, %v546
    %v563 = vpack.c.bf16 %v549, %v549
    %v564 = vpack.c.bf16 %v551, %v551
    %v569 = vunpack.c.l.b16 %v557
    %v570 = vunpack.c.l.b16 %v558
    %v571 = vunpack.c.l.b16 %v559
    %v572 = vunpack.c.l.b16 %v560
    %v573 = vpack.c.b16 %v570, %v569
    %v574 = vpack.c.b16 %v572, %v571
    %v579 = vunpack.c.l.b16 %v561
    %v580 = vunpack.c.l.b16 %v562
    %v581 = vunpack.c.l.b16 %v563
    %v582 = vunpack.c.l.b16 %v564
    %v583 = vpack.c.b16 %v580, %v579
    %v584 = vpack.c.b16 %v582, %v581
    %585 = vrot.lane.b32.xlu0 %v583, 96
    %v586 = vpop.permute.xlu0 %585
    %587 = vrot.lane.b32.xlu0 %v584, 96
    %v588 = vpop.permute.xlu0 %587
    %vm589 = vcmask 64512
    %v591 = vsel %vm589, %v573, 0
    %v594 = vsel %vm589, %v574, 0
    %v597 = vsel %vm589, %v586, 0
    %v600 = vsel %vm589, %v588, 0
    %602 = vmatpush.bf16.xpose.msra.mxu0 0
    %603 = vmatpush.bf16.xpose.msra.mxu0 0
    %604 = vmatpush.bf16.xpose.msra.mxu0 0
    %605 = vmatpush.bf16.xpose.msra.mxu0 0
    %606 = vmatpush.bf16.xpose.msra.mxu0 0
    %607 = vmatpush.bf16.xpose.msra.mxu0 0
    %608 = vmatpush.bf16.xpose.msra.mxu0 %v600
    %609 = vmatpush.bf16.xpose.msra.mxu0 %v597
    %610 = vmatmul.bf16.gmra.mxu0 %v591
    %v611 = vpop.f32.mrf.mxu0
    %v612 = vadd.f32 %v378, %v611
    %v613 = vpop.f32.mrf.mxu0
    %v614 = vadd.f32 %v379, %v613
    %615 = vmatmul.bf16.gmra.mxu0 %v594
    %v616 = vpop.f32.mrf.mxu0
    %v617 = vadd.f32 %v380, %v616
    %v618 = vpop.f32.mrf.mxu0
    %v619 = vadd.f32 %v381, %v618
    %620 = vdwg.mxu0
    %v621 = vsel %vm78, %v612, -inf
    %622 = vmax.xlane.f32.xlu0 %v621
    %v623 = vpop.xlane.xlu0 %622
    %v624 = vsel %vm78, %v614, -inf
    %625 = vmax.xlane.f32.xlu0 %v624
    %v626 = vpop.xlane.xlu0 %625
    %v627 = vsel %vm78, %v617, -inf
    %628 = vmax.xlane.f32.xlu0 %v627
    %v629 = vpop.xlane.xlu0 %628
    %v630 = vsel %vm78, %v619, -inf
    %631 = vmax.xlane.f32.xlu0 %v630
    %v632 = vpop.xlane.xlu0 %631
    %v633 = vsub.f32 %v612, %v623
    %v634 = vsub.f32 %v614, %v626
    %v635 = vsub.f32 %v617, %v629
    %v636 = vsub.f32 %v619, %v632
    %v637 = vmul.f32 %v633, 1.442695
    %v638 = vpow.pop %v637
    %v639 = vmul.f32 %v634, 1.442695
    %v640 = vpow.pop %v639
    %v641 = vmul.f32 %v635, 1.442695
    %v642 = vpow.pop %v641
    %v643 = vmul.f32 %v636, 1.442695
    %v644 = vpow.pop %v643
    %v645 = vsel %vm78, %v638, 0.0
    %646 = vadd.xlane.f32.xlu0 %v645
    %v647 = vpop.xlane.xlu0 %646
    %v648 = vsel %vm78, %v640, 0.0
    %649 = vadd.xlane.f32.xlu0 %v648
    %v650 = vpop.xlane.xlu0 %649
    %v651 = vsel %vm78, %v642, 0.0
    %652 = vadd.xlane.f32.xlu0 %v651
    %v653 = vpop.xlane.xlu0 %652
    %v654 = vsel %vm78, %v644, 0.0
    %655 = vadd.xlane.f32.xlu0 %v654
    %v656 = vpop.xlane.xlu0 %655
    %v657 = vpack.c.bf16 %v640, %v638
    %v658 = vpack.c.bf16 %v644, %v642
    %659 = vrot.lane.b32.xlu0 %v583, 64
    %v660 = vpop.permute.xlu0 %659
    %661 = vrot.lane.b32.xlu0 %v584, 64
    %v662 = vpop.permute.xlu0 %661
    %v666 = vsel %vm78, %v657, 0
    %v669 = vsel %vm78, %v658, 0
    %671 = vmatpush.bf16.msra.mxu0 0
    %672 = vmatpush.bf16.msra.mxu0 0
    %673 = vmatpush.bf16.msra.mxu0 0
    %674 = vmatpush.bf16.msra.mxu0 0
    %675 = vmatpush.bf16.msra.mxu0 0
    %676 = vmatpush.bf16.msra.mxu0 0
    %677 = vmatpush.bf16.msra.mxu0 %v662
    %678 = vmatpush.bf16.msra.mxu0 %v660
    %679 = vmatmul.bf16.gmra.mxu0 %v666
    %v680 = vpop.f32.mrf.mxu0
    %v681 = vadd.f32 0.0, %v680
    %v682 = vpop.f32.mrf.mxu0
    %v683 = vadd.f32 0.0, %v682
    %684 = vmatmul.bf16.gmra.mxu0 %v669
    %v685 = vpop.f32.mrf.mxu0
    %v686 = vadd.f32 0.0, %v685
    %v687 = vpop.f32.mrf.mxu0
    %v688 = vadd.f32 0.0, %v687
    %689 = vdwg.mxu0
    %v690 = vrcp.pop %v647
    %v691 = vrcp.pop %v650
    %v692 = vrcp.pop %v653
    %v693 = vrcp.pop %v656
    %v694 = vmul.f32 %v681, %v690
    %v695 = vmul.f32 %v683, %v691
    %v696 = vmul.f32 %v686, %v692
    %v697 = vmul.f32 %v688, %v693
    %v698 = vpack.c.bf16 %v695, %v694
    %v699 = vpack.c.bf16 %v697, %v696
    %700 = vrot.lane.b32.xlu0 %v573, 120
    %v701 = vpop.permute.xlu0 %700
    %702 = vrot.lane.b32.xlu0 %v574, 120
    %v703 = vpop.permute.xlu0 %702
    %704 = vrot.lane.b32.xlu0 %v583, 88
    %v705 = vpop.permute.xlu0 %704
    %706 = vrot.lane.b32.xlu0 %v584, 88
    %v707 = vpop.permute.xlu0 %706
    %v709 = vsel %vm589, %v701, 0
    %v712 = vsel %vm589, %v703, 0
    %v715 = vsel %vm589, %v705, 0
    %v718 = vsel %vm589, %v707, 0
    %720 = vmatpush.bf16.xpose.msra.mxu0 0
    %721 = vmatpush.bf16.xpose.msra.mxu0 0
    %722 = vmatpush.bf16.xpose.msra.mxu0 0
    %723 = vmatpush.bf16.xpose.msra.mxu0 0
    %724 = vmatpush.bf16.xpose.msra.mxu0 0
    %725 = vmatpush.bf16.xpose.msra.mxu0 0
    %726 = vmatpush.bf16.xpose.msra.mxu0 %v718
    %727 = vmatpush.bf16.xpose.msra.mxu0 %v715
    %728 = vmatmul.bf16.gmra.mxu0 %v709
    %v729 = vpop.f32.mrf.mxu0
    %v730 = vadd.f32 %v378, %v729
    %v731 = vpop.f32.mrf.mxu0
    %v732 = vadd.f32 %v379, %v731
    %733 = vmatmul.bf16.gmra.mxu0 %v712
    %v734 = vpop.f32.mrf.mxu0
    %v735 = vadd.f32 %v380, %v734
    %v736 = vpop.f32.mrf.mxu0
    %v737 = vadd.f32 %v381, %v736
    %738 = vdwg.mxu0
    %v739 = vsel %vm78, %v730, -inf
    %740 = vmax.xlane.f32.xlu0 %v739
    %v741 = vpop.xlane.xlu0 %740
    %v742 = vsel %vm78, %v732, -inf
    %743 = vmax.xlane.f32.xlu0 %v742
    %v744 = vpop.xlane.xlu0 %743
    %v745 = vsel %vm78, %v735, -inf
    %746 = vmax.xlane.f32.xlu0 %v745
    %v747 = vpop.xlane.xlu0 %746
    %v748 = vsel %vm78, %v737, -inf
    %749 = vmax.xlane.f32.xlu0 %v748
    %v750 = vpop.xlane.xlu0 %749
    %v751 = vsub.f32 %v730, %v741
    %v752 = vsub.f32 %v732, %v744
    %v753 = vsub.f32 %v735, %v747
    %v754 = vsub.f32 %v737, %v750
    %v755 = vmul.f32 %v751, 1.442695
    %v756 = vpow.pop %v755
    %v757 = vmul.f32 %v752, 1.442695
    %v758 = vpow.pop %v757
    %v759 = vmul.f32 %v753, 1.442695
    %v760 = vpow.pop %v759
    %v761 = vmul.f32 %v754, 1.442695
    %v762 = vpow.pop %v761
    %v763 = vsel %vm78, %v756, 0.0
    %764 = vadd.xlane.f32.xlu0 %v763
    %v765 = vpop.xlane.xlu0 %764
    %v766 = vsel %vm78, %v758, 0.0
    %767 = vadd.xlane.f32.xlu0 %v766
    %v768 = vpop.xlane.xlu0 %767
    %v769 = vsel %vm78, %v760, 0.0
    %770 = vadd.xlane.f32.xlu0 %v769
    %v771 = vpop.xlane.xlu0 %770
    %v772 = vsel %vm78, %v762, 0.0
    %773 = vadd.xlane.f32.xlu0 %v772
    %v774 = vpop.xlane.xlu0 %773
    %v775 = vpack.c.bf16 %v758, %v756
    %v776 = vpack.c.bf16 %v762, %v760
    %777 = vrot.lane.b32.xlu0 %v583, 56
    %v778 = vpop.permute.xlu0 %777
    %779 = vrot.lane.b32.xlu0 %v584, 56
    %v780 = vpop.permute.xlu0 %779
    %v784 = vsel %vm78, %v775, 0
    %v787 = vsel %vm78, %v776, 0
    %789 = vmatpush.bf16.msra.mxu0 0
    %790 = vmatpush.bf16.msra.mxu0 0
    %791 = vmatpush.bf16.msra.mxu0 0
    %792 = vmatpush.bf16.msra.mxu0 0
    %793 = vmatpush.bf16.msra.mxu0 0
    %794 = vmatpush.bf16.msra.mxu0 0
    %795 = vmatpush.bf16.msra.mxu0 %v780
    %796 = vmatpush.bf16.msra.mxu0 %v778
    %797 = vmatmul.bf16.gmra.mxu0 %v784
    %v798 = vpop.f32.mrf.mxu0
    %v799 = vadd.f32 0.0, %v798
    %v800 = vpop.f32.mrf.mxu0
    %v801 = vadd.f32 0.0, %v800
    %802 = vmatmul.bf16.gmra.mxu0 %v787
    %v803 = vpop.f32.mrf.mxu0
    %v804 = vadd.f32 0.0, %v803
    %v805 = vpop.f32.mrf.mxu0
    %v806 = vadd.f32 0.0, %v805
    %807 = vdwg.mxu0
    %v808 = vrcp.pop %v765
    %v809 = vrcp.pop %v768
    %v810 = vrcp.pop %v771
    %v811 = vrcp.pop %v774
    %v812 = vmul.f32 %v799, %v808
    %v813 = vmul.f32 %v801, %v809
    %v814 = vmul.f32 %v804, %v810
    %v815 = vmul.f32 %v806, %v811
    %v816 = vpack.c.bf16 %v813, %v812
    %v817 = vpack.c.bf16 %v815, %v814
    %v819 = vsel %vm589, %v816, 0
    %v822 = vsel %vm589, %v817, 0
    %vm824 = vcmask 1043456
    %v826 = vsel %vm824, %v390, 0
    %828 = vmatpush.bf16.msra.mxu0 0
    %829 = vmatpush.bf16.msra.mxu0 0
    %830 = vmatpush.bf16.msra.mxu0 0
    %831 = vmatpush.bf16.msra.mxu0 0
    %832 = vmatpush.bf16.msra.mxu0 0
    %833 = vmatpush.bf16.msra.mxu0 0
    %834 = vmatpush.bf16.msra.mxu0 0
    %835 = vmatpush.bf16.msra.mxu0 %v826
    %836 = vmatmul.bf16.gmra.mxu0 %v819
    %v837 = vpop.f32.mrf.mxu0
    %v838 = vadd.f32 0.0, %v837
    %v839 = vpop.f32.mrf.mxu0
    %v840 = vadd.f32 0.0, %v839
    %841 = vmatmul.bf16.gmra.mxu0 %v822
    %v842 = vpop.f32.mrf.mxu0
    %v843 = vadd.f32 0.0, %v842
    %v844 = vpop.f32.mrf.mxu0
    %v845 = vadd.f32 0.0, %v844
    %846 = vdwg.mxu0
    %v848 = vsel %vm589, %v698, 0
    %v851 = vsel %vm589, %v699, 0
    %v854 = vsel %vm824, %v389, 0
    %856 = vmatpush.bf16.msra.mxu0 0
    %857 = vmatpush.bf16.msra.mxu0 0
    %858 = vmatpush.bf16.msra.mxu0 0
    %859 = vmatpush.bf16.msra.mxu0 0
    %860 = vmatpush.bf16.msra.mxu0 0
    %861 = vmatpush.bf16.msra.mxu0 0
    %862 = vmatpush.bf16.msra.mxu0 0
    %863 = vmatpush.bf16.msra.mxu0 %v854
    %864 = vmatmul.bf16.gmra.mxu0 %v848
    %v865 = vpop.f32.mrf.mxu0
    %v866 = vadd.f32 %v838, %v865
    %v867 = vpop.f32.mrf.mxu0
    %v868 = vadd.f32 %v840, %v867
    %869 = vmatmul.bf16.gmra.mxu0 %v851
    %v870 = vpop.f32.mrf.mxu0
    %v871 = vadd.f32 %v843, %v870
    %v872 = vpop.f32.mrf.mxu0
    %v873 = vadd.f32 %v845, %v872
    %874 = vdwg.mxu0
    %875 = vrot.lane.b32.xlu0 %v573, 112
    %v876 = vpop.permute.xlu0 %875
    %877 = vrot.lane.b32.xlu0 %v574, 112
    %v878 = vpop.permute.xlu0 %877
    %879 = vrot.lane.b32.xlu0 %v583, 80
    %v880 = vpop.permute.xlu0 %879
    %881 = vrot.lane.b32.xlu0 %v584, 80
    %v882 = vpop.permute.xlu0 %881
    %v884 = vsel %vm589, %v876, 0
    %v887 = vsel %vm589, %v878, 0
    %v890 = vsel %vm589, %v880, 0
    %v893 = vsel %vm589, %v882, 0
    %895 = vmatpush.bf16.xpose.msra.mxu0 0
    %896 = vmatpush.bf16.xpose.msra.mxu0 0
    %897 = vmatpush.bf16.xpose.msra.mxu0 0
    %898 = vmatpush.bf16.xpose.msra.mxu0 0
    %899 = vmatpush.bf16.xpose.msra.mxu0 0
    %900 = vmatpush.bf16.xpose.msra.mxu0 0
    %901 = vmatpush.bf16.xpose.msra.mxu0 %v893
    %902 = vmatpush.bf16.xpose.msra.mxu0 %v890
    %903 = vmatmul.bf16.gmra.mxu0 %v884
    %v904 = vpop.f32.mrf.mxu0
    %v905 = vadd.f32 %v378, %v904
    %v906 = vpop.f32.mrf.mxu0
    %v907 = vadd.f32 %v379, %v906
    %908 = vmatmul.bf16.gmra.mxu0 %v887
    %v909 = vpop.f32.mrf.mxu0
    %v910 = vadd.f32 %v380, %v909
    %v911 = vpop.f32.mrf.mxu0
    %v912 = vadd.f32 %v381, %v911
    %913 = vdwg.mxu0
    %v914 = vsel %vm78, %v905, -inf
    %915 = vmax.xlane.f32.xlu0 %v914
    %v916 = vpop.xlane.xlu0 %915
    %v917 = vsel %vm78, %v907, -inf
    %918 = vmax.xlane.f32.xlu0 %v917
    %v919 = vpop.xlane.xlu0 %918
    %v920 = vsel %vm78, %v910, -inf
    %921 = vmax.xlane.f32.xlu0 %v920
    %v922 = vpop.xlane.xlu0 %921
    %v923 = vsel %vm78, %v912, -inf
    %924 = vmax.xlane.f32.xlu0 %v923
    %v925 = vpop.xlane.xlu0 %924
    %v926 = vsub.f32 %v905, %v916
    %v927 = vsub.f32 %v907, %v919
    %v928 = vsub.f32 %v910, %v922
    %v929 = vsub.f32 %v912, %v925
    %v930 = vmul.f32 %v926, 1.442695
    %v931 = vpow.pop %v930
    %v932 = vmul.f32 %v927, 1.442695
    %v933 = vpow.pop %v932
    %v934 = vmul.f32 %v928, 1.442695
    %v935 = vpow.pop %v934
    %v936 = vmul.f32 %v929, 1.442695
    %v937 = vpow.pop %v936
    %v938 = vsel %vm78, %v931, 0.0
    %939 = vadd.xlane.f32.xlu0 %v938
    %v940 = vpop.xlane.xlu0 %939
    %v941 = vsel %vm78, %v933, 0.0
    %942 = vadd.xlane.f32.xlu0 %v941
    %v943 = vpop.xlane.xlu0 %942
    %v944 = vsel %vm78, %v935, 0.0
    %945 = vadd.xlane.f32.xlu0 %v944
    %v946 = vpop.xlane.xlu0 %945
    %v947 = vsel %vm78, %v937, 0.0
    %948 = vadd.xlane.f32.xlu0 %v947
    %v949 = vpop.xlane.xlu0 %948
    %v950 = vpack.c.bf16 %v933, %v931
    %v951 = vpack.c.bf16 %v937, %v935
    %952 = vrot.lane.b32.xlu0 %v583, 48
    %v953 = vpop.permute.xlu0 %952
    %954 = vrot.lane.b32.xlu0 %v584, 48
    %v955 = vpop.permute.xlu0 %954
    %v959 = vsel %vm78, %v950, 0
    %v962 = vsel %vm78, %v951, 0
    %964 = vmatpush.bf16.msra.mxu0 0
    %965 = vmatpush.bf16.msra.mxu0 0
    %966 = vmatpush.bf16.msra.mxu0 0
    %967 = vmatpush.bf16.msra.mxu0 0
    %968 = vmatpush.bf16.msra.mxu0 0
    %969 = vmatpush.bf16.msra.mxu0 0
    %970 = vmatpush.bf16.msra.mxu0 %v955
    %971 = vmatpush.bf16.msra.mxu0 %v953
    %972 = vmatmul.bf16.gmra.mxu0 %v959
    %v973 = vpop.f32.mrf.mxu0
    %v974 = vadd.f32 0.0, %v973
    %v975 = vpop.f32.mrf.mxu0
    %v976 = vadd.f32 0.0, %v975
    %977 = vmatmul.bf16.gmra.mxu0 %v962
    %v978 = vpop.f32.mrf.mxu0
    %v979 = vadd.f32 0.0, %v978
    %v980 = vpop.f32.mrf.mxu0
    %v981 = vadd.f32 0.0, %v980
    %982 = vdwg.mxu0
    %v983 = vrcp.pop %v940
    %v984 = vrcp.pop %v943
    %v985 = vrcp.pop %v946
    %v986 = vrcp.pop %v949
    %v987 = vmul.f32 %v974, %v983
    %v988 = vmul.f32 %v976, %v984
    %v989 = vmul.f32 %v979, %v985
    %v990 = vmul.f32 %v981, %v986
    %v991 = vpack.c.bf16 %v988, %v987
    %v992 = vpack.c.bf16 %v990, %v989
    %v994 = vsel %vm589, %v991, 0
    %v997 = vsel %vm589, %v992, 0
    %v1000 = vsel %vm824, %v391, 0
    %1002 = vmatpush.bf16.msra.mxu0 0
    %1003 = vmatpush.bf16.msra.mxu0 0
    %1004 = vmatpush.bf16.msra.mxu0 0
    %1005 = vmatpush.bf16.msra.mxu0 0
    %1006 = vmatpush.bf16.msra.mxu0 0
    %1007 = vmatpush.bf16.msra.mxu0 0
    %1008 = vmatpush.bf16.msra.mxu0 0
    %1009 = vmatpush.bf16.msra.mxu0 %v1000
    %1010 = vmatmul.bf16.gmra.mxu0 %v994
    %v1011 = vpop.f32.mrf.mxu0
    %v1012 = vadd.f32 0.0, %v1011
    %v1013 = vpop.f32.mrf.mxu0
    %v1014 = vadd.f32 0.0, %v1013
    %1015 = vmatmul.bf16.gmra.mxu0 %v997
    %v1016 = vpop.f32.mrf.mxu0
    %v1017 = vadd.f32 0.0, %v1016
    %v1018 = vpop.f32.mrf.mxu0
    %v1019 = vadd.f32 0.0, %v1018
    %1020 = vdwg.mxu0
    %v1021 = vadd.f32 %v866, %v1012
    %v1022 = vadd.f32 %v868, %v1014
    %v1023 = vadd.f32 %v871, %v1017
    %v1024 = vadd.f32 %v873, %v1019
    %1025 = vrot.lane.b32.xlu0 %v573, 104
    %v1026 = vpop.permute.xlu0 %1025
    %1027 = vrot.lane.b32.xlu0 %v574, 104
    %v1028 = vpop.permute.xlu0 %1027
    %1029 = vrot.lane.b32.xlu0 %v583, 72
    %v1030 = vpop.permute.xlu0 %1029
    %1031 = vrot.lane.b32.xlu0 %v584, 72
    %v1032 = vpop.permute.xlu0 %1031
    %v1034 = vsel %vm589, %v1026, 0
    %v1037 = vsel %vm589, %v1028, 0
    %v1040 = vsel %vm589, %v1030, 0
    %v1043 = vsel %vm589, %v1032, 0
    %1045 = vmatpush.bf16.xpose.msra.mxu0 0
    %1046 = vmatpush.bf16.xpose.msra.mxu0 0
    %1047 = vmatpush.bf16.xpose.msra.mxu0 0
    %1048 = vmatpush.bf16.xpose.msra.mxu0 0
    %1049 = vmatpush.bf16.xpose.msra.mxu0 0
    %1050 = vmatpush.bf16.xpose.msra.mxu0 0
    %1051 = vmatpush.bf16.xpose.msra.mxu0 %v1043
    %1052 = vmatpush.bf16.xpose.msra.mxu0 %v1040
    %1053 = vmatmul.bf16.gmra.mxu0 %v1034
    %v1054 = vpop.f32.mrf.mxu0
    %v1055 = vadd.f32 %v378, %v1054
    %v1056 = vpop.f32.mrf.mxu0
    %v1057 = vadd.f32 %v379, %v1056
    %1058 = vmatmul.bf16.gmra.mxu0 %v1037
    %v1059 = vpop.f32.mrf.mxu0
    %v1060 = vadd.f32 %v380, %v1059
    %v1061 = vpop.f32.mrf.mxu0
    %v1062 = vadd.f32 %v381, %v1061
    %1063 = vdwg.mxu0
    %v1064 = vsel %vm78, %v1055, -inf
    %1065 = vmax.xlane.f32.xlu0 %v1064
    %v1066 = vpop.xlane.xlu0 %1065
    %v1067 = vsel %vm78, %v1057, -inf
    %1068 = vmax.xlane.f32.xlu0 %v1067
    %v1069 = vpop.xlane.xlu0 %1068
    %v1070 = vsel %vm78, %v1060, -inf
    %1071 = vmax.xlane.f32.xlu0 %v1070
    %v1072 = vpop.xlane.xlu0 %1071
    %v1073 = vsel %vm78, %v1062, -inf
    %1074 = vmax.xlane.f32.xlu0 %v1073
    %v1075 = vpop.xlane.xlu0 %1074
    %v1076 = vsub.f32 %v1055, %v1066
    %v1077 = vsub.f32 %v1057, %v1069
    %v1078 = vsub.f32 %v1060, %v1072
    %v1079 = vsub.f32 %v1062, %v1075
    %v1080 = vmul.f32 %v1076, 1.442695
    %v1081 = vpow.pop %v1080
    %v1082 = vmul.f32 %v1077, 1.442695
    %v1083 = vpow.pop %v1082
    %v1084 = vmul.f32 %v1078, 1.442695
    %v1085 = vpow.pop %v1084
    %v1086 = vmul.f32 %v1079, 1.442695
    %v1087 = vpow.pop %v1086
    %v1088 = vsel %vm78, %v1081, 0.0
    %1089 = vadd.xlane.f32.xlu0 %v1088
    %v1090 = vpop.xlane.xlu0 %1089
    %v1091 = vsel %vm78, %v1083, 0.0
    %1092 = vadd.xlane.f32.xlu0 %v1091
    %v1093 = vpop.xlane.xlu0 %1092
    %v1094 = vsel %vm78, %v1085, 0.0
    %1095 = vadd.xlane.f32.xlu0 %v1094
    %v1096 = vpop.xlane.xlu0 %1095
    %v1097 = vsel %vm78, %v1087, 0.0
    %1098 = vadd.xlane.f32.xlu0 %v1097
    %v1099 = vpop.xlane.xlu0 %1098
    %v1100 = vpack.c.bf16 %v1083, %v1081
    %v1101 = vpack.c.bf16 %v1087, %v1085
    %1102 = vrot.lane.b32.xlu0 %v583, 40
    %v1103 = vpop.permute.xlu0 %1102
    %1104 = vrot.lane.b32.xlu0 %v584, 40
    %v1105 = vpop.permute.xlu0 %1104
    %v1109 = vsel %vm78, %v1100, 0
    %v1112 = vsel %vm78, %v1101, 0
    %1114 = vmatpush.bf16.msra.mxu0 0
    %1115 = vmatpush.bf16.msra.mxu0 0
    %1116 = vmatpush.bf16.msra.mxu0 0
    %1117 = vmatpush.bf16.msra.mxu0 0
    %1118 = vmatpush.bf16.msra.mxu0 0
    %1119 = vmatpush.bf16.msra.mxu0 0
    %1120 = vmatpush.bf16.msra.mxu0 %v1105
    %1121 = vmatpush.bf16.msra.mxu0 %v1103
    %1122 = vmatmul.bf16.gmra.mxu0 %v1109
    %v1123 = vpop.f32.mrf.mxu0
    %v1124 = vadd.f32 0.0, %v1123
    %v1125 = vpop.f32.mrf.mxu0
    %v1126 = vadd.f32 0.0, %v1125
    %1127 = vmatmul.bf16.gmra.mxu0 %v1112
    %v1128 = vpop.f32.mrf.mxu0
    %v1129 = vadd.f32 0.0, %v1128
    %v1130 = vpop.f32.mrf.mxu0
    %v1131 = vadd.f32 0.0, %v1130
    %1132 = vdwg.mxu0
    %v1133 = vrcp.pop %v1090
    %v1134 = vrcp.pop %v1093
    %v1135 = vrcp.pop %v1096
    %v1136 = vrcp.pop %v1099
    %v1137 = vmul.f32 %v1124, %v1133
    %v1138 = vmul.f32 %v1126, %v1134
    %v1139 = vmul.f32 %v1129, %v1135
    %v1140 = vmul.f32 %v1131, %v1136
    %v1141 = vpack.c.bf16 %v1138, %v1137
    %v1142 = vpack.c.bf16 %v1140, %v1139
    %v1144 = vsel %vm589, %v1141, 0
    %v1147 = vsel %vm589, %v1142, 0
    %v1150 = vsel %vm824, %v392, 0
    %1152 = vmatpush.bf16.msra.mxu0 0
    %1153 = vmatpush.bf16.msra.mxu0 0
    %1154 = vmatpush.bf16.msra.mxu0 0
    %1155 = vmatpush.bf16.msra.mxu0 0
    %1156 = vmatpush.bf16.msra.mxu0 0
    %1157 = vmatpush.bf16.msra.mxu0 0
    %1158 = vmatpush.bf16.msra.mxu0 0
    %1159 = vmatpush.bf16.msra.mxu0 %v1150
    %1160 = vmatmul.bf16.gmra.mxu0 %v1144
    %v1161 = vpop.f32.mrf.mxu0
    %v1162 = vadd.f32 0.0, %v1161
    %v1163 = vpop.f32.mrf.mxu0
    %v1164 = vadd.f32 0.0, %v1163
    %1165 = vmatmul.bf16.gmra.mxu0 %v1147
    %v1166 = vpop.f32.mrf.mxu0
    %v1167 = vadd.f32 0.0, %v1166
    %v1168 = vpop.f32.mrf.mxu0
    %v1169 = vadd.f32 0.0, %v1168
    %1170 = vdwg.mxu0
    %v1171 = vadd.f32 %v1021, %v1162
    %v1172 = vadd.f32 %v1022, %v1164
    %v1173 = vadd.f32 %v1023, %v1167
    %v1174 = vadd.f32 %v1024, %v1169
    %v1175 = vadd.f32 %v374, %v1171
    %v1176 = vadd.f32 %v375, %v1172
    %v1177 = vadd.f32 %v376, %v1173
    %v1178 = vadd.f32 %v377, %v1174
    %v1179 = vadd.f32 %v1175, %v393
    %v1180 = vadd.f32 %v1176, %v393
    %v1181 = vadd.f32 %v1177, %v393
    %v1182 = vadd.f32 %v1178, %v393
    %v1183 = vsel %vm78, %v1179, 0.0
    %1184 = vadd.xlane.f32.xlu0 %v1183
    %v1185 = vpop.xlane.xlu0 %1184
    %v1186 = vsel %vm78, %v1180, 0.0
    %1187 = vadd.xlane.f32.xlu0 %v1186
    %v1188 = vpop.xlane.xlu0 %1187
    %v1189 = vsel %vm78, %v1181, 0.0
    %1190 = vadd.xlane.f32.xlu0 %v1189
    %v1191 = vpop.xlane.xlu0 %1190
    %v1192 = vsel %vm78, %v1182, 0.0
    %1193 = vadd.xlane.f32.xlu0 %v1192
    %v1194 = vpop.xlane.xlu0 %1193
    %v1195 = vmul.f32 %v1185, %v97
    %v1196 = vmul.f32 %v1188, %v97
    %v1197 = vmul.f32 %v1191, %v97
    %v1198 = vmul.f32 %v1194, %v97
    %v1199 = vsub.f32 %v1179, %v1195
    %v1200 = vsub.f32 %v1180, %v1196
    %v1201 = vsub.f32 %v1181, %v1197
    %v1202 = vsub.f32 %v1182, %v1198
    %v1203 = vmul.f32 %v1199, %v1199
    %v1204 = vmul.f32 %v1200, %v1200
    %v1205 = vmul.f32 %v1201, %v1201
    %v1206 = vmul.f32 %v1202, %v1202
    %v1207 = vsel %vm78, %v1203, 0.0
    %1208 = vadd.xlane.f32.xlu0 %v1207
    %v1209 = vpop.xlane.xlu0 %1208
    %v1210 = vsel %vm78, %v1204, 0.0
    %1211 = vadd.xlane.f32.xlu0 %v1210
    %v1212 = vpop.xlane.xlu0 %1211
    %v1213 = vsel %vm78, %v1205, 0.0
    %1214 = vadd.xlane.f32.xlu0 %v1213
    %v1215 = vpop.xlane.xlu0 %1214
    %v1216 = vsel %vm78, %v1206, 0.0
    %1217 = vadd.xlane.f32.xlu0 %v1216
    %v1218 = vpop.xlane.xlu0 %1217
    %v1219 = vmul.f32 %v1209, %v97
    %v1220 = vmul.f32 %v1212, %v97
    %v1221 = vmul.f32 %v1215, %v97
    %v1222 = vmul.f32 %v1218, %v97
    %v1223 = vadd.f32 %v1219, 1e-05
    %v1224 = vadd.f32 %v1220, 1e-05
    %v1225 = vadd.f32 %v1221, 1e-05
    %v1226 = vadd.f32 %v1222, 1e-05
    %v1227 = vrsqrt.pop %v1223
    %v1228 = vmul.f32 %v1227, %v1223
    %v1229 = vmul.f32 %v1228, %v1227
    %v1230 = vmul.f32 0.5, %v1229
    %v1231 = vsub.f32 1.5, %v1230
    %v1232 = vmul.f32 %v1227, %v1231
    %vm1233 = vweird.f32 %v1223
    %vm1234 = vweird.f32 %v1227
    %vm1235 = vmor %vm1233, %vm1234
    %v1236 = vsel %vm1235, %v1227, %v1232
    %v1237 = vrsqrt.pop %v1224
    %v1238 = vmul.f32 %v1237, %v1224
    %v1239 = vmul.f32 %v1238, %v1237
    %v1240 = vmul.f32 0.5, %v1239
    %v1241 = vsub.f32 1.5, %v1240
    %v1242 = vmul.f32 %v1237, %v1241
    %vm1243 = vweird.f32 %v1224
    %vm1244 = vweird.f32 %v1237
    %vm1245 = vmor %vm1243, %vm1244
    %v1246 = vsel %vm1245, %v1237, %v1242
    %v1247 = vrsqrt.pop %v1225
    %v1248 = vmul.f32 %v1247, %v1225
    %v1249 = vmul.f32 %v1248, %v1247
    %v1250 = vmul.f32 0.5, %v1249
    %v1251 = vsub.f32 1.5, %v1250
    %v1252 = vmul.f32 %v1247, %v1251
    %vm1253 = vweird.f32 %v1225
    %vm1254 = vweird.f32 %v1247
    %vm1255 = vmor %vm1253, %vm1254
    %v1256 = vsel %vm1255, %v1247, %v1252
    %v1257 = vrsqrt.pop %v1226
    %v1258 = vmul.f32 %v1257, %v1226
    %v1259 = vmul.f32 %v1258, %v1257
    %v1260 = vmul.f32 0.5, %v1259
    %v1261 = vsub.f32 1.5, %v1260
    %v1262 = vmul.f32 %v1257, %v1261
    %vm1263 = vweird.f32 %v1226
    %vm1264 = vweird.f32 %v1257
    %vm1265 = vmor %vm1263, %vm1264
    %v1266 = vsel %vm1265, %v1257, %v1262
    %v1267 = vmul.f32 %v1199, %v1236
    %v1268 = vmul.f32 %v1200, %v1246
    %v1269 = vmul.f32 %v1201, %v1256
    %v1270 = vmul.f32 %v1202, %v1266
    %v1271 = vmul.f32 %v1267, %v394
    %v1272 = vmul.f32 %v1268, %v394
    %v1273 = vmul.f32 %v1269, %v394
    %v1274 = vmul.f32 %v1270, %v394
    %v1275 = vadd.f32 %v1271, %v395
    %v1276 = vadd.f32 %v1272, %v395
    %v1277 = vadd.f32 %v1273, %v395
    %v1278 = vadd.f32 %v1274, %v395
    %v1279 = vpack.c.bf16 %v1276, %v1275
    %v1280 = vpack.c.bf16 %v1278, %v1277
    %v1285 = vunpack.c.l.b16 %v396
    %v1286 = vunpack.c.l.b16 %v397
    %v1287 = vunpack.c.l.b16 %v398
    %v1288 = vunpack.c.l.b16 %v399
    %v1289 = vpack.c.b16 %v1286, %v1285
    %v1290 = vpack.c.b16 %v1288, %v1287
    %v1294 = vsel %vm78, %v1279, 0
    %v1297 = vsel %vm78, %v1280, 0
    %1299 = vmatpush.bf16.msra.mxu0 0
    %1300 = vmatpush.bf16.msra.mxu0 0
    %1301 = vmatpush.bf16.msra.mxu0 0
    %1302 = vmatpush.bf16.msra.mxu0 0
    %1303 = vmatpush.bf16.msra.mxu0 0
    %1304 = vmatpush.bf16.msra.mxu0 0
    %1305 = vmatpush.bf16.msra.mxu0 %v1290
    %1306 = vmatpush.bf16.msra.mxu0 %v1289
    %1307 = vmatmul.bf16.gmra.mxu0 %v1294
    %v1308 = vpop.f32.mrf.mxu0
    %v1309 = vadd.f32 %v400, %v1308
    %v1310 = vpop.f32.mrf.mxu0
    %v1311 = vadd.f32 %v400, %v1310
    %1312 = vmatmul.bf16.gmra.mxu0 %v1297
    %v1313 = vpop.f32.mrf.mxu0
    %v1314 = vadd.f32 %v400, %v1313
    %v1315 = vpop.f32.mrf.mxu0
    %v1316 = vadd.f32 %v400, %v1315
    %1317 = vdwg.mxu0
    %v1318 = vmul.f32 %v1309, %v1309
    %v1319 = vmul.f32 %v1311, %v1311
    %v1320 = vmul.f32 %v1314, %v1314
    %v1321 = vmul.f32 %v1316, %v1316
    %v1322 = vmul.f32 %v1309, %v1318
    %v1323 = vmul.f32 %v1311, %v1319
    %v1324 = vmul.f32 %v1314, %v1320
    %v1325 = vmul.f32 %v1316, %v1321
    %v1326 = vmul.f32 %v1322, 0.044715
    %v1327 = vmul.f32 %v1323, 0.044715
    %v1328 = vmul.f32 %v1324, 0.044715
    %v1329 = vmul.f32 %v1325, 0.044715
    %v1330 = vadd.f32 %v1309, %v1326
    %v1331 = vadd.f32 %v1311, %v1327
    %v1332 = vadd.f32 %v1314, %v1328
    %v1333 = vadd.f32 %v1316, %v1329
    %v1334 = vmul.f32 %v1330, 0.7978846
    %v1335 = vmul.f32 %v1331, 0.7978846
    %v1336 = vmul.f32 %v1332, 0.7978846
    %v1337 = vmul.f32 %v1333, 0.7978846
    %v1338 = vtanh.pop %v1334
    %v1339 = vtanh.pop %v1335
    %v1340 = vtanh.pop %v1336
    %v1341 = vtanh.pop %v1337
    %v1342 = vadd.f32 %v1338, 1.0
    %v1343 = vadd.f32 %v1339, 1.0
    %v1344 = vadd.f32 %v1340, 1.0
    %v1345 = vadd.f32 %v1341, 1.0
    %v1346 = vmul.f32 %v1342, 0.5
    %v1347 = vmul.f32 %v1343, 0.5
    %v1348 = vmul.f32 %v1344, 0.5
    %v1349 = vmul.f32 %v1345, 0.5
    %v1350 = vmul.f32 %v1309, %v1346
    %v1351 = vmul.f32 %v1311, %v1347
    %v1352 = vmul.f32 %v1314, %v1348
    %v1353 = vmul.f32 %v1316, %v1349
    %v1354 = vpack.c.bf16 %v1351, %v1350
    %v1355 = vpack.c.bf16 %v1353, %v1352
    %v1372 = vunpack.c.l.b16 %v401
    %v1373 = vunpack.c.l.b16 %v402
    %v1374 = vunpack.c.l.b16 %v403
    %v1375 = vunpack.c.l.b16 %v404
    %v1376 = vunpack.c.l.b16 %v405
    %v1377 = vunpack.c.l.b16 %v406
    %v1378 = vunpack.c.l.b16 %v407
    %v1379 = vunpack.c.l.b16 %v408
    %v1380 = vunpack.c.l.b16 %v409
    %v1381 = vunpack.c.l.b16 %v410
    %v1382 = vunpack.c.l.b16 %v411
    %v1383 = vunpack.c.l.b16 %v412
    %v1384 = vunpack.c.l.b16 %v413
    %v1385 = vunpack.c.l.b16 %v414
    %v1386 = vunpack.c.l.b16 %v415
    %v1387 = vunpack.c.l.b16 %v416
    %v1388 = vpack.c.b16 %v1373, %v1372
    %v1389 = vpack.c.b16 %v1375, %v1374
    %v1390 = vpack.c.b16 %v1377, %v1376
    %v1391 = vpack.c.b16 %v1379, %v1378
    %v1392 = vpack.c.b16 %v1381, %v1380
    %v1393 = vpack.c.b16 %v1383, %v1382
    %v1394 = vpack.c.b16 %v1385, %v1384
    %v1395 = vpack.c.b16 %v1387, %v1386
    %1404 = vmatpush.bf16.msra.mxu0 %v1395
    %1405 = vmatpush.bf16.msra.mxu0 %v1394
    %1406 = vmatpush.bf16.msra.mxu0 %v1393
    %1407 = vmatpush.bf16.msra.mxu0 %v1392
    %1408 = vmatpush.bf16.msra.mxu0 %v1391
    %1409 = vmatpush.bf16.msra.mxu0 %v1390
    %1410 = vmatpush.bf16.msra.mxu0 %v1389
    %1411 = vmatpush.bf16.msra.mxu0 %v1388
    %1412 = vmatmul.bf16.gmra.mxu0 %v1354
    %v1413 = vpop.f32.mrf.mxu0
    %v1414 = vadd.f32 0.0, %v1413
    %v1415 = vpop.f32.mrf.mxu0
    %v1416 = vadd.f32 0.0, %v1415
    %1417 = vmatmul.bf16.gmra.mxu0 %v1355
    %v1418 = vpop.f32.mrf.mxu0
    %v1419 = vadd.f32 0.0, %v1418
    %v1420 = vpop.f32.mrf.mxu0
    %v1421 = vadd.f32 0.0, %v1420
    %1422 = vdwg.mxu0
    %v1423 = vadd.f32 %v1179, %v1414
    %v1424 = vadd.f32 %v1180, %v1416
    %v1425 = vadd.f32 %v1181, %v1419
    %v1426 = vadd.f32 %v1182, %v1421
    %v1427 = vadd.f32 %v1423, %v417
    %v1428 = vadd.f32 %v1424, %v417
    %v1429 = vadd.f32 %v1425, %v417
    %v1430 = vadd.f32 %v1426, %v417
    %v1431 = vld [vmem:[%s1 + $0xd0] sm:$0xf]
    %v1432 = vld [vmem:[%s1 + $0xd4] sm:$0xf]
    %v1433 = vld [vmem:[%s1 + $0xd8] sm:$0xf]
    %v1434 = vld [vmem:[%s1 + $0xdc] sm:$0xf]
    %v1435 = vpack.c.bf16 %v1428, %v1427
    %v1436 = vpack.c.bf16 %v1430, %v1429
    %v1438 = vsel %vm78, %v1431, 0
    %1440 = vmatpush.bf16.msra.mxu0 0
    %1441 = vmatpush.bf16.msra.mxu0 0
    %1442 = vmatpush.bf16.msra.mxu0 0
    %1443 = vmatpush.bf16.msra.mxu0 0
    %1444 = vmatpush.bf16.msra.mxu0 0
    %1445 = vmatpush.bf16.msra.mxu0 0
    %1446 = vmatpush.bf16.msra.mxu0 %v1436
    %1447 = vmatpush.bf16.msra.mxu0 %v1435
    %1448 = vmatmul.bf16.gmra.mxu0 %v1438
    %v1449 = vpop.f32.mrf.mxu0
    %v1450 = vadd.f32 0.0, %v1449
    %v1451 = vpop.f32.mrf.mxu0
    %1452 = vdwg.mxu0
    %1453 = vst.msk [vmem:[#allocation2] sm:$0xff] %vm78, %v1450
    %v1455 = vsel %vm78, %v1432, 0
    %1457 = vmatpush.bf16.msra.mxu0 0
    %1458 = vmatpush.bf16.msra.mxu0 0
    %1459 = vmatpush.bf16.msra.mxu0 0
    %1460 = vmatpush.bf16.msra.mxu0 0
    %1461 = vmatpush.bf16.msra.mxu0 0
    %1462 = vmatpush.bf16.msra.mxu0 0
    %1463 = vmatpush.bf16.msra.mxu0 %v1436
    %1464 = vmatpush.bf16.msra.mxu0 %v1435
    %1465 = vmatmul.bf16.gmra.mxu0 %v1455
    %v1466 = vpop.f32.mrf.mxu0
    %v1467 = vadd.f32 0.0, %v1466
    %v1468 = vpop.f32.mrf.mxu0
    %1469 = vdwg.mxu0
    %1471 = vrot.lane.b32.xlu0 %v1467, 32
    %v1472 = vpop.permute.xlu0 %1471
    %vm1474 = vcmask 523520
    %1475 = vst.msk [vmem:[#allocation2] sm:$0xff] %vm1474, %v1472
    %v1477 = vsel %vm78, %v1433, 0
    %1479 = vmatpush.bf16.msra.mxu0 0
    %1480 = vmatpush.bf16.msra.mxu0 0
    %1481 = vmatpush.bf16.msra.mxu0 0
    %1482 = vmatpush.bf16.msra.mxu0 0
    %1483 = vmatpush.bf16.msra.mxu0 0
    %1484 = vmatpush.bf16.msra.mxu0 0
    %1485 = vmatpush.bf16.msra.mxu0 %v1436
    %1486 = vmatpush.bf16.msra.mxu0 %v1435
    %1487 = vmatmul.bf16.gmra.mxu0 %v1477
    %v1488 = vpop.f32.mrf.mxu0
    %v1489 = vadd.f32 0.0, %v1488
    %v1490 = vpop.f32.mrf.mxu0
    %1491 = vdwg.mxu0
    %1493 = vrot.lane.b32.xlu0 %v1489, 64
    %v1494 = vpop.permute.xlu0 %1493
    %vm1496 = vcmask 785920
    %1497 = vst.msk [vmem:[#allocation2] sm:$0xff] %vm1496, %v1494
    %v1499 = vsel %vm78, %v1434, 0
    %1501 = vmatpush.bf16.msra.mxu0 0
    %1502 = vmatpush.bf16.msra.mxu0 0
    %1503 = vmatpush.bf16.msra.mxu0 0
    %1504 = vmatpush.bf16.msra.mxu0 0
    %1505 = vmatpush.bf16.msra.mxu0 0
    %1506 = vmatpush.bf16.msra.mxu0 0
    %1507 = vmatpush.bf16.msra.mxu0 %v1436
    %1508 = vmatpush.bf16.msra.mxu0 %v1435
    %1509 = vmatmul.bf16.gmra.mxu0 %v1499
    %v1510 = vpop.f32.mrf.mxu0
    %v1511 = vadd.f32 0.0, %v1510
    %v1512 = vpop.f32.mrf.mxu0
    %1513 = vdwg.mxu0
    %1515 = vrot.lane.b32.xlu0 %v1511, 96
    %v1516 = vpop.permute.xlu0 %1515
    %vm1518 = vcmask 1048320
    %1519 = vst.msk [vmem:[#allocation2] sm:$0xff] %vm1518, %v1516
    %v1520 = vld [vmem:[#allocation2] sm:$0xff]
    %v1521 = vld [vmem:[%s3 + $0xe0] ss:$0 sm:$0xff]
    %v1522 = vld [vmem:[%s3 + $0xf0] ss:$0 sm:$0xff]
    %1523 = vadd.xlane.f32.xlu0 %v1520
    %v1524 = vpop.xlane.xlu0 %1523
    %v1525 = vrcp.pop 128.0
    %v1526 = vmul.f32 128.0, %v1525
    %v1527 = vsub.f32 1.0, %v1526
    %v1528 = vmul.f32 %v1525, %v1527
    %v1529 = vadd.f32 %v1525, %v1528
    %vm1530 = vweird.f32 %v1525
    %v1531 = vsel %vm1530, %v1525, %v1529
    %v1532 = vmul.f32 %v1524, %v1531
    %v1533 = vsub.f32 %v1520, %v1532
    %v1534 = vmul.f32 %v1533, %v1533
    %1535 = vadd.xlane.f32.xlu0 %v1534
    %v1536 = vpop.xlane.xlu0 %1535
    %v1537 = vmul.f32 %v1536, %v1531
    %v1538 = vadd.f32 %v1537, 1e-05
    %v1539 = vrsqrt.pop %v1538
    %v1540 = vmul.f32 %v1539, %v1538
    %v1541 = vmul.f32 %v1540, %v1539
    %v1542 = vmul.f32 0.5, %v1541
    %v1543 = vsub.f32 1.5, %v1542
    %v1544 = vmul.f32 %v1539, %v1543
    %vm1545 = vweird.f32 %v1538
    %vm1546 = vweird.f32 %v1539
    %vm1547 = vmor %vm1545, %vm1546
    %v1548 = vsel %vm1547, %v1539, %v1544
    %v1549 = vmul.f32 %v1533, %v1548
    %v1550 = vmul.f32 %v1549, %v1521
    %v1551 = vadd.f32 %v1550, %v1522
    %v1552 = vld [vmem:[%s2] sm:$0xf]
    %v1553 = vld [vmem:[%s2 + $0x8] sm:$0xf]
    %v1554 = vld [vmem:[%s2 + $0x10] sm:$0xf]
    %v1555 = vld [vmem:[%s2 + $0x18] sm:$0xf]
    %v1556 = vld [vmem:[%s2 + $0x20] sm:$0xf]
    %v1557 = vld [vmem:[%s2 + $0x28] sm:$0xf]
    %v1558 = vld [vmem:[%s2 + $0x30] sm:$0xf]
    %v1559 = vld [vmem:[%s2 + $0x38] sm:$0xf]
    %v1560 = vld [vmem:[%s2 + $0x40] sm:$0xf]
    %v1561 = vld [vmem:[%s2 + $0x48] sm:$0xf]
    %v1562 = vld [vmem:[%s2 + $0x50] sm:$0xf]
    %v1563 = vld [vmem:[%s2 + $0x58] sm:$0xf]
    %v1564 = vld [vmem:[%s2 + $0x60] sm:$0xf]
    %v1565 = vld [vmem:[%s2 + $0x68] sm:$0xf]
    %v1566 = vld [vmem:[%s2 + $0x70] sm:$0xf]
    %v1567 = vld [vmem:[%s2 + $0x78] sm:$0xf]
    %v1568 = vpack.c.bf16 %v1551, %v1551
    %v1569 = vld [vmem:[%s3 + $0x100] ss:$0 sm:$0xff]
    %v1586 = vunpack.c.l.b16 %v1552
    %v1587 = vunpack.c.l.b16 %v1553
    %v1588 = vunpack.c.l.b16 %v1554
    %v1589 = vunpack.c.l.b16 %v1555
    %v1590 = vunpack.c.l.b16 %v1556
    %v1591 = vunpack.c.l.b16 %v1557
    %v1592 = vunpack.c.l.b16 %v1558
    %v1593 = vunpack.c.l.b16 %v1559
    %v1594 = vunpack.c.l.b16 %v1560
    %v1595 = vunpack.c.l.b16 %v1561
    %v1596 = vunpack.c.l.b16 %v1562
    %v1597 = vunpack.c.l.b16 %v1563
    %v1598 = vunpack.c.l.b16 %v1564
    %v1599 = vunpack.c.l.b16 %v1565
    %v1600 = vunpack.c.l.b16 %v1566
    %v1601 = vunpack.c.l.b16 %v1567
    %v1602 = vpack.c.b16 %v1587, %v1586
    %v1603 = vpack.c.b16 %v1589, %v1588
    %v1604 = vpack.c.b16 %v1591, %v1590
    %v1605 = vpack.c.b16 %v1593, %v1592
    %v1606 = vpack.c.b16 %v1595, %v1594
    %v1607 = vpack.c.b16 %v1597, %v1596
    %v1608 = vpack.c.b16 %v1599, %v1598
    %v1609 = vpack.c.b16 %v1601, %v1600
    %1618 = vmatpush.bf16.msra.mxu0 %v1609
    %1619 = vmatpush.bf16.msra.mxu0 %v1608
    %1620 = vmatpush.bf16.msra.mxu0 %v1607
    %1621 = vmatpush.bf16.msra.mxu0 %v1606
    %1622 = vmatpush.bf16.msra.mxu0 %v1605
    %1623 = vmatpush.bf16.msra.mxu0 %v1604
    %1624 = vmatpush.bf16.msra.mxu0 %v1603
    %1625 = vmatpush.bf16.msra.mxu0 %v1602
    %1626 = vmatmul.bf16.gmra.mxu0 %v1568
    %v1627 = vpop.f32.mrf.mxu0
    %v1628 = vadd.f32 %v1569, %v1627
    %v1629 = vpop.f32.mrf.mxu0
    %1630 = vdwg.mxu0
    %v1631 = vld [vmem:[%s3 + $0x200] sm:$0xff]
    %v1632 = vld [vmem:[%s3 + $0x110] ss:$0 sm:$0xff]
    %v1633 = vld [vmem:[%s3 + $0x120] ss:$0 sm:$0xff]
    %v1634 = vld [vmem:[%s2 + $0x80] sm:$0xff]
    %v1635 = vld [vmem:[%s2 + $0x88] sm:$0xff]
    %v1636 = vld [vmem:[%s2 + $0x90] sm:$0xff]
    %v1637 = vld [vmem:[%s2 + $0x98] sm:$0xff]
    %v1638 = vld [vmem:[%s2 + $0xa0] sm:$0xff]
    %v1639 = vld [vmem:[%s2 + $0xa8] sm:$0xff]
    %v1640 = vld [vmem:[%s2 + $0xb0] sm:$0xff]
    %v1641 = vld [vmem:[%s2 + $0xb8] sm:$0xff]
    %s1642 = scalar_lea.vmem %s3, 304
    %v1643 = vld [vmem:[%s1642] ss:$8 sm:$0x3]
    %v1644 = vld [vmem:[%s2 + $0xc0] sm:$0xf]
    %v1645 = vld [vmem:[%s2 + $0xc8] sm:$0xf]
    %v1646 = vld [vmem:[%s2 + $0xd0] sm:$0xf]
    %v1647 = vld [vmem:[%s2 + $0xd8] sm:$0xf]
    %v1648 = vld [vmem:[%s2 + $0xe0] sm:$0xf]
    %v1649 = vld [vmem:[%s2 + $0xe8] sm:$0xf]
    %v1650 = vld [vmem:[%s2 + $0xf0] sm:$0xf]
    %v1651 = vld [vmem:[%s2 + $0xf8] sm:$0xf]
    %v1652 = vld [vmem:[%s3 + $0x140] ss:$0 sm:$0xff]
    %v1653 = vld [vmem:[%s3 + $0x150] ss:$0 sm:$0xff]
    %v1654 = vld [vmem:[%s3 + $0x160] ss:$0 sm:$0xff]
    %v1655 = vld [vmem:[%s2 + $0x100] sm:$0xff]
    %v1656 = vld [vmem:[%s2 + $0x108] sm:$0xff]
    %v1657 = vld [vmem:[%s2 + $0x110] sm:$0xff]
    %v1658 = vld [vmem:[%s2 + $0x118] sm:$0xff]
    %v1659 = vld [vmem:[%s2 + $0x120] sm:$0xff]
    %v1660 = vld [vmem:[%s2 + $0x128] sm:$0xff]
    %v1661 = vld [vmem:[%s2 + $0x130] sm:$0xff]
    %v1662 = vld [vmem:[%s2 + $0x138] sm:$0xff]
    %s1663 = scalar_lea.vmem %s3, 368
    %v1664 = vld [vmem:[%s1663] ss:$8 sm:$0x3]
    %v1665 = vld [vmem:[%s2 + $0x140] sm:$0xf]
    %v1666 = vld [vmem:[%s2 + $0x148] sm:$0xf]
    %v1667 = vld [vmem:[%s2 + $0x150] sm:$0xf]
    %v1668 = vld [vmem:[%s2 + $0x158] sm:$0xf]
    %v1669 = vld [vmem:[%s2 + $0x160] sm:$0xf]
    %v1670 = vld [vmem:[%s2 + $0x168] sm:$0xf]
    %v1671 = vld [vmem:[%s2 + $0x170] sm:$0xf]
    %v1672 = vld [vmem:[%s2 + $0x178] sm:$0xf]
    %v1673 = vld [vmem:[%s2 + $0x180] sm:$0xf]
    %v1674 = vld [vmem:[%s2 + $0x188] sm:$0xf]
    %v1675 = vld [vmem:[%s2 + $0x190] sm:$0xf]
    %v1676 = vld [vmem:[%s2 + $0x198] sm:$0xf]
    %v1677 = vld [vmem:[%s2 + $0x1a0] sm:$0xf]
    %v1678 = vld [vmem:[%s2 + $0x1a8] sm:$0xf]
    %v1679 = vld [vmem:[%s2 + $0x1b0] sm:$0xf]
    %v1680 = vld [vmem:[%s2 + $0x1b8] sm:$0xf]
    %v1681 = vld [vmem:[%s2 + $0x1c0] sm:$0xf]
    %v1682 = vld [vmem:[%s2 + $0x1c8] sm:$0xf]
    %v1683 = vld [vmem:[%s2 + $0x1d0] sm:$0xf]
    %v1684 = vld [vmem:[%s2 + $0x1d8] sm:$0xf]
    %v1685 = vld [vmem:[%s2 + $0x1e0] sm:$0xf]
    %v1686 = vld [vmem:[%s2 + $0x1e8] sm:$0xf]
    %v1687 = vld [vmem:[%s2 + $0x1f0] sm:$0xf]
    %v1688 = vld [vmem:[%s2 + $0x1f8] sm:$0xf]
    %v1689 = vld [vmem:[%s2 + $0x200] sm:$0xf]
    %v1690 = vld [vmem:[%s2 + $0x208] sm:$0xf]
    %v1691 = vld [vmem:[%s2 + $0x210] sm:$0xf]
    %v1692 = vld [vmem:[%s2 + $0x218] sm:$0xf]
    %v1693 = vld [vmem:[%s2 + $0x220] sm:$0xf]
    %v1694 = vld [vmem:[%s2 + $0x228] sm:$0xf]
    %v1695 = vld [vmem:[%s2 + $0x230] sm:$0xf]
    %v1696 = vld [vmem:[%s2 + $0x238] sm:$0xf]
    %v1697 = vld [vmem:[%s3 + $0x180] ss:$0 sm:$0xff]
    %vm1698 = vcmask 523264
    %v1699 = vsel %vm1698, %v1628, 0.0
    %1700 = vadd.xlane.f32.xlu0 %v1699
    %v1701 = vpop.xlane.xlu0 %1700
    %v1702 = vrcp.pop 64.0
    %v1703 = vmul.f32 64.0, %v1702
    %v1704 = vsub.f32 1.0, %v1703
    %v1705 = vmul.f32 %v1702, %v1704
    %v1706 = vadd.f32 %v1702, %v1705
    %vm1707 = vweird.f32 %v1702
    %v1708 = vsel %vm1707, %v1702, %v1706
    %v1709 = vmul.f32 %v1701, %v1708
    %v1710 = vsub.f32 %v1628, %v1709
    %v1711 = vmul.f32 %v1710, %v1710
    %v1712 = vsel %vm1698, %v1711, 0.0
    %1713 = vadd.xlane.f32.xlu0 %v1712
    %v1714 = vpop.xlane.xlu0 %1713
    %v1715 = vmul.f32 %v1714, %v1708
    %v1716 = vadd.f32 %v1715, 1e-05
    %v1717 = vrsqrt.pop %v1716
    %v1718 = vmul.f32 %v1717, %v1716
    %v1719 = vmul.f32 %v1718, %v1717
    %v1720 = vmul.f32 0.5, %v1719
    %v1721 = vsub.f32 1.5, %v1720
    %v1722 = vmul.f32 %v1717, %v1721
    %vm1723 = vweird.f32 %v1716
    %vm1724 = vweird.f32 %v1717
    %vm1725 = vmor %vm1723, %vm1724
    %v1726 = vsel %vm1725, %v1717, %v1722
    %v1727 = vmul.f32 %v1710, %v1726
    %v1728 = vmul.f32 %v1727, %v1632
    %v1729 = vadd.f32 %v1728, %v1633
    %v1730 = vpack.c.bf16 %v1729, %v1729
    %v1732 = vperm.slane %v1643, 0
    %v1733 = vperm.slane %v1643, 1
    %v1744 = vunpack.c.l.b16 %v1634
    %v1745 = vunpack.c.h.b16 %v1634
    %v1746 = vunpack.c.l.b16 %v1635
    %v1747 = vunpack.c.h.b16 %v1635
    %v1748 = vunpack.c.l.b16 %v1636
    %v1749 = vunpack.c.h.b16 %v1636
    %v1750 = vunpack.c.l.b16 %v1637
    %v1751 = vunpack.c.h.b16 %v1637
    %v1752 = vunpack.c.l.b16 %v1638
    %v1753 = vunpack.c.h.b16 %v1638
    %v1754 = vunpack.c.l.b16 %v1639
    %v1755 = vunpack.c.h.b16 %v1639
    %v1756 = vunpack.c.l.b16 %v1640
    %v1757 = vunpack.c.h.b16 %v1640
    %v1758 = vunpack.c.l.b16 %v1641
    %v1759 = vunpack.c.h.b16 %v1641
    %v1760 = vpack.c.b16 %v1746, %v1744
    %v1761 = vpack.c.b16 %v1747, %v1745
    %v1762 = vpack.c.b16 %v1750, %v1748
    %v1763 = vpack.c.b16 %v1751, %v1749
    %v1764 = vpack.c.b16 %v1754, %v1752
    %v1765 = vpack.c.b16 %v1755, %v1753
    %v1766 = vpack.c.b16 %v1758, %v1756
    %v1767 = vpack.c.b16 %v1759, %v1757
    %v1777 = vsel %vm1698, %v1730, 0
    %1779 = vmatpush.bf16.msra.mxu0 0
    %1780 = vmatpush.bf16.msra.mxu0 0
    %1781 = vmatpush.bf16.msra.mxu0 0
    %1782 = vmatpush.bf16.msra.mxu0 0
    %1783 = vmatpush.bf16.msra.mxu0 %v1766
    %1784 = vmatpush.bf16.msra.mxu0 %v1764
    %1785 = vmatpush.bf16.msra.mxu0 %v1762
    %1786 = vmatpush.bf16.msra.mxu0 %v1760
    %1787 = vmatmul.bf16.gmra.mxu0 %v1777
    %v1788 = vpop.f32.mrf.mxu0
    %v1789 = vadd.f32 %v1732, %v1788
    %v1790 = vpop.f32.mrf.mxu0
    %1791 = vdwg.mxu0
    %1792 = vmatpush.bf16.msra.mxu0 0
    %1793 = vmatpush.bf16.msra.mxu0 0
    %1794 = vmatpush.bf16.msra.mxu0 0
    %1795 = vmatpush.bf16.msra.mxu0 0
    %1796 = vmatpush.bf16.msra.mxu0 %v1767
    %1797 = vmatpush.bf16.msra.mxu0 %v1765
    %1798 = vmatpush.bf16.msra.mxu0 %v1763
    %1799 = vmatpush.bf16.msra.mxu0 %v1761
    %1800 = vmatmul.bf16.gmra.mxu0 %v1777
    %v1801 = vpop.f32.mrf.mxu0
    %v1802 = vadd.f32 %v1733, %v1801
    %v1803 = vpop.f32.mrf.mxu0
    %1804 = vdwg.mxu0
    %v1805 = vmul.f32 %v1789, 0.25
    %v1806 = vpack.c.bf16 %v1805, %v1805
    %v1807 = vpack.c.bf16 %v1789, %v1789
    %v1808 = vpack.c.bf16 %v1802, %v1802
    %v1810 = vunpack.c.l.b16 %v1807
    %v1811 = vpack.c.b16 %v1810, %v1810
    %1812 = vrot.lane.b32.xlu0 %v1811, 64
    %v1813 = vpop.permute.xlu0 %1812
    %vm1814 = vcmask 130048
    %v1816 = vsel %vm1814, %v1806, 0
    %v1819 = vsel %vm1814, %v1813, 0
    %1821 = vmatpush.bf16.xpose.msra.mxu0 0
    %1822 = vmatpush.bf16.xpose.msra.mxu0 0
    %1823 = vmatpush.bf16.xpose.msra.mxu0 0
    %1824 = vmatpush.bf16.xpose.msra.mxu0 0
    %1825 = vmatpush.bf16.xpose.msra.mxu0 0
    %1826 = vmatpush.bf16.xpose.msra.mxu0 0
    %1827 = vmatpush.bf16.xpose.msra.mxu0 0
    %1828 = vmatpush.bf16.xpose.msra.mxu0 %v1819
    %1829 = vmatmul.bf16.gmra.mxu0 %v1816
    %v1830 = vpop.f32.mrf.mxu0
    %v1831 = vadd.f32 %v1631, %v1830
    %v1832 = vpop.f32.mrf.mxu0
    %1833 = vdwg.mxu0
    %v1834 = vsel %vm589, %v1831, -inf
    %1835 = vmax.xlane.f32.xlu0 %v1834
    %v1836 = vpop.xlane.xlu0 %1835
    %v1837 = vsub.f32 %v1831, %v1836
    %v1838 = vmul.f32 %v1837, 1.442695
    %v1839 = vpow.pop %v1838
    %v1840 = vsel %vm589, %v1839, 0.0
    %1841 = vadd.xlane.f32.xlu0 %v1840
    %v1842 = vpop.xlane.xlu0 %1841
    %v1843 = vpack.c.bf16 %v1839, %v1839
    %v1845 = vsel %vm589, %v1843, 0
    %v1848 = vsel %vm824, %v1808, 0
    %1850 = vmatpush.bf16.msra.mxu0 0
    %1851 = vmatpush.bf16.msra.mxu0 0
    %1852 = vmatpush.bf16.msra.mxu0 0
    %1853 = vmatpush.bf16.msra.mxu0 0
    %1854 = vmatpush.bf16.msra.mxu0 0
    %1855 = vmatpush.bf16.msra.mxu0 0
    %1856 = vmatpush.bf16.msra.mxu0 0
    %1857 = vmatpush.bf16.msra.mxu0 %v1848
    %1858 = vmatmul.bf16.gmra.mxu0 %v1845
    %v1859 = vpop.f32.mrf.mxu0
    %v1860 = vadd.f32 0.0, %v1859
    %v1861 = vpop.f32.mrf.mxu0
    %1862 = vdwg.mxu0
    %v1863 = vrcp.pop %v1842
    %v1864 = vmul.f32 %v1860, %v1863
    %v1865 = vpack.c.bf16 %v1864, %v1864
    %v1867 = vunpack.c.l.b16 %v1806
    %v1868 = vpack.c.b16 %v1867, %v1867
    %1869 = vrot.lane.b32.xlu0 %v1868, 112
    %v1870 = vpop.permute.xlu0 %1869
    %1871 = vrot.lane.b32.xlu0 %v1811, 48
    %v1872 = vpop.permute.xlu0 %1871
    %v1874 = vsel %vm1814, %v1870, 0
    %v1877 = vsel %vm1814, %v1872, 0
    %1879 = vmatpush.bf16.xpose.msra.mxu0 0
    %1880 = vmatpush.bf16.xpose.msra.mxu0 0
    %1881 = vmatpush.bf16.xpose.msra.mxu0 0
    %1882 = vmatpush.bf16.xpose.msra.mxu0 0
    %1883 = vmatpush.bf16.xpose.msra.mxu0 0
    %1884 = vmatpush.bf16.xpose.msra.mxu0 0
    %1885 = vmatpush.bf16.xpose.msra.mxu0 0
    %1886 = vmatpush.bf16.xpose.msra.mxu0 %v1877
    %1887 = vmatmul.bf16.gmra.mxu0 %v1874
    %v1888 = vpop.f32.mrf.mxu0
    %v1889 = vadd.f32 %v1631, %v1888
    %v1890 = vpop.f32.mrf.mxu0
    %1891 = vdwg.mxu0
    %v1892 = vsel %vm589, %v1889, -inf
    %1893 = vmax.xlane.f32.xlu0 %v1892
    %v1894 = vpop.xlane.xlu0 %1893
    %v1895 = vsub.f32 %v1889, %v1894
    %v1896 = vmul.f32 %v1895, 1.442695
    %v1897 = vpow.pop %v1896
    %v1898 = vsel %vm589, %v1897, 0.0
    %1899 = vadd.xlane.f32.xlu0 %v1898
    %v1900 = vpop.xlane.xlu0 %1899
    %v1901 = vpack.c.bf16 %v1897, %v1897
    %v1903 = vunpack.c.l.b16 %v1808
    %v1904 = vpack.c.b16 %v1903, %v1903
    %1905 = vrot.lane.b32.xlu0 %v1904, 112
    %v1906 = vpop.permute.xlu0 %1905
    %v1908 = vsel %vm589, %v1901, 0
    %v1911 = vsel %vm824, %v1906, 0
    %1913 = vmatpush.bf16.msra.mxu0 0
    %1914 = vmatpush.bf16.msra.mxu0 0
    %1915 = vmatpush.bf16.msra.mxu0 0
    %1916 = vmatpush.bf16.msra.mxu0 0
    %1917 = vmatpush.bf16.msra.mxu0 0
    %1918 = vmatpush.bf16.msra.mxu0 0
    %1919 = vmatpush.bf16.msra.mxu0 0
    %1920 = vmatpush.bf16.msra.mxu0 %v1911
    %1921 = vmatmul.bf16.gmra.mxu0 %v1908
    %v1922 = vpop.f32.mrf.mxu0
    %v1923 = vadd.f32 0.0, %v1922
    %v1924 = vpop.f32.mrf.mxu0
    %1925 = vdwg.mxu0
    %v1926 = vrcp.pop %v1900
    %v1927 = vmul.f32 %v1923, %v1926
    %v1928 = vpack.c.bf16 %v1927, %v1927
    %v1931 = vunpack.c.l.b16 %v1646
    %v1932 = vunpack.c.l.b16 %v1647
    %v1933 = vpack.c.b16 %v1932, %v1931
    %v1936 = vsel %vm1814, %v1928, 0
    %1938 = vmatpush.bf16.msra.mxu0 0
    %1939 = vmatpush.bf16.msra.mxu0 0
    %1940 = vmatpush.bf16.msra.mxu0 0
    %1941 = vmatpush.bf16.msra.mxu0 0
    %1942 = vmatpush.bf16.msra.mxu0 0
    %1943 = vmatpush.bf16.msra.mxu0 0
    %1944 = vmatpush.bf16.msra.mxu0 0
    %1945 = vmatpush.bf16.msra.mxu0 %v1933
    %1946 = vmatmul.bf16.gmra.mxu0 %v1936
    %v1947 = vpop.f32.mrf.mxu0
    %v1948 = vadd.f32 0.0, %v1947
    %v1949 = vpop.f32.mrf.mxu0
    %1950 = vdwg.mxu0
    %v1953 = vunpack.c.l.b16 %v1644
    %v1954 = vunpack.c.l.b16 %v1645
    %v1955 = vpack.c.b16 %v1954, %v1953
    %v1958 = vsel %vm1814, %v1865, 0
    %1960 = vmatpush.bf16.msra.mxu0 0
    %1961 = vmatpush.bf16.msra.mxu0 0
    %1962 = vmatpush.bf16.msra.mxu0 0
    %1963 = vmatpush.bf16.msra.mxu0 0
    %1964 = vmatpush.bf16.msra.mxu0 0
    %1965 = vmatpush.bf16.msra.mxu0 0
    %1966 = vmatpush.bf16.msra.mxu0 0
    %1967 = vmatpush.bf16.msra.mxu0 %v1955
    %1968 = vmatmul.bf16.gmra.mxu0 %v1958
    %v1969 = vpop.f32.mrf.mxu0
    %v1970 = vadd.f32 %v1948, %v1969
    %v1971 = vpop.f32.mrf.mxu0
    %1972 = vdwg.mxu0
    %1973 = vrot.lane.b32.xlu0 %v1868, 96
    %v1974 = vpop.permute.xlu0 %1973
    %1975 = vrot.lane.b32.xlu0 %v1811, 32
    %v1976 = vpop.permute.xlu0 %1975
    %v1978 = vsel %vm1814, %v1974, 0
    %v1981 = vsel %vm1814, %v1976, 0
    %1983 = vmatpush.bf16.xpose.msra.mxu0 0
    %1984 = vmatpush.bf16.xpose.msra.mxu0 0
    %1985 = vmatpush.bf16.xpose.msra.mxu0 0
    %1986 = vmatpush.bf16.xpose.msra.mxu0 0
    %1987 = vmatpush.bf16.xpose.msra.mxu0 0
    %1988 = vmatpush.bf16.xpose.msra.mxu0 0
    %1989 = vmatpush.bf16.xpose.msra.mxu0 0
    %1990 = vmatpush.bf16.xpose.msra.mxu0 %v1981
    %1991 = vmatmul.bf16.gmra.mxu0 %v1978
    %v1992 = vpop.f32.mrf.mxu0
    %v1993 = vadd.f32 %v1631, %v1992
    %v1994 = vpop.f32.mrf.mxu0
    %1995 = vdwg.mxu0
    %v1996 = vsel %vm589, %v1993, -inf
    %1997 = vmax.xlane.f32.xlu0 %v1996
    %v1998 = vpop.xlane.xlu0 %1997
    %v1999 = vsub.f32 %v1993, %v1998
    %v2000 = vmul.f32 %v1999, 1.442695
    %v2001 = vpow.pop %v2000
    %v2002 = vsel %vm589, %v2001, 0.0
    %2003 = vadd.xlane.f32.xlu0 %v2002
    %v2004 = vpop.xlane.xlu0 %2003
    %v2005 = vpack.c.bf16 %v2001, %v2001
    %2006 = vrot.lane.b32.xlu0 %v1904, 96
    %v2007 = vpop.permute.xlu0 %2006
    %v2009 = vsel %vm589, %v2005, 0
    %v2012 = vsel %vm824, %v2007, 0
    %2014 = vmatpush.bf16.msra.mxu0 0
    %2015 = vmatpush.bf16.msra.mxu0 0
    %2016 = vmatpush.bf16.msra.mxu0 0
    %2017 = vmatpush.bf16.msra.mxu0 0
    %2018 = vmatpush.bf16.msra.mxu0 0
    %2019 = vmatpush.bf16.msra.mxu0 0
    %2020 = vmatpush.bf16.msra.mxu0 0
    %2021 = vmatpush.bf16.msra.mxu0 %v2012
    %2022 = vmatmul.bf16.gmra.mxu0 %v2009
    %v2023 = vpop.f32.mrf.mxu0
    %v2024 = vadd.f32 0.0, %v2023
    %v2025 = vpop.f32.mrf.mxu0
    %2026 = vdwg.mxu0
    %v2027 = vrcp.pop %v2004
    %v2028 = vmul.f32 %v2024, %v2027
    %v2029 = vpack.c.bf16 %v2028, %v2028
    %v2032 = vunpack.c.l.b16 %v1648
    %v2033 = vunpack.c.l.b16 %v1649
    %v2034 = vpack.c.b16 %v2033, %v2032
    %v2037 = vsel %vm1814, %v2029, 0
    %2039 = vmatpush.bf16.msra.mxu0 0
    %2040 = vmatpush.bf16.msra.mxu0 0
    %2041 = vmatpush.bf16.msra.mxu0 0
    %2042 = vmatpush.bf16.msra.mxu0 0
    %2043 = vmatpush.bf16.msra.mxu0 0
    %2044 = vmatpush.bf16.msra.mxu0 0
    %2045 = vmatpush.bf16.msra.mxu0 0
    %2046 = vmatpush.bf16.msra.mxu0 %v2034
    %2047 = vmatmul.bf16.gmra.mxu0 %v2037
    %v2048 = vpop.f32.mrf.mxu0
    %v2049 = vadd.f32 0.0, %v2048
    %v2050 = vpop.f32.mrf.mxu0
    %2051 = vdwg.mxu0
    %v2052 = vadd.f32 %v1970, %v2049
    %2053 = vrot.lane.b32.xlu0 %v1868, 80
    %v2054 = vpop.permute.xlu0 %2053
    %2055 = vrot.lane.b32.xlu0 %v1811, 16
    %v2056 = vpop.permute.xlu0 %2055
    %v2058 = vsel %vm1814, %v2054, 0
    %v2061 = vsel %vm1814, %v2056, 0
    %2063 = vmatpush.bf16.xpose.msra.mxu0 0
    %2064 = vmatpush.bf16.xpose.msra.mxu0 0
    %2065 = vmatpush.bf16.xpose.msra.mxu0 0
    %2066 = vmatpush.bf16.xpose.msra.mxu0 0
    %2067 = vmatpush.bf16.xpose.msra.mxu0 0
    %2068 = vmatpush.bf16.xpose.msra.mxu0 0
    %2069 = vmatpush.bf16.xpose.msra.mxu0 0
    %2070 = vmatpush.bf16.xpose.msra.mxu0 %v2061
    %2071 = vmatmul.bf16.gmra.mxu0 %v2058
    %v2072 = vpop.f32.mrf.mxu0
    %v2073 = vadd.f32 %v1631, %v2072
    %v2074 = vpop.f32.mrf.mxu0
    %2075 = vdwg.mxu0
    %v2076 = vsel %vm589, %v2073, -inf
    %2077 = vmax.xlane.f32.xlu0 %v2076
    %v2078 = vpop.xlane.xlu0 %2077
    %v2079 = vsub.f32 %v2073, %v2078
    %v2080 = vmul.f32 %v2079, 1.442695
    %v2081 = vpow.pop %v2080
    %v2082 = vsel %vm589, %v2081, 0.0
    %2083 = vadd.xlane.f32.xlu0 %v2082
    %v2084 = vpop.xlane.xlu0 %2083
    %v2085 = vpack.c.bf16 %v2081, %v2081
    %2086 = vrot.lane.b32.xlu0 %v1904, 80
    %v2087 = vpop.permute.xlu0 %2086
    %v2089 = vsel %vm589, %v2085, 0
    %v2092 = vsel %vm824, %v2087, 0
    %2094 = vmatpush.bf16.msra.mxu0 0
    %2095 = vmatpush.bf16.msra.mxu0 0
    %2096 = vmatpush.bf16.msra.mxu0 0
    %2097 = vmatpush.bf16.msra.mxu0 0
    %2098 = vmatpush.bf16.msra.mxu0 0
    %2099 = vmatpush.bf16.msra.mxu0 0
    %2100 = vmatpush.bf16.msra.mxu0 0
    %2101 = vmatpush.bf16.msra.mxu0 %v2092
    %2102 = vmatmul.bf16.gmra.mxu0 %v2089
    %v2103 = vpop.f32.mrf.mxu0
    %v2104 = vadd.f32 0.0, %v2103
    %v2105 = vpop.f32.mrf.mxu0
    %2106 = vdwg.mxu0
    %v2107 = vrcp.pop %v2084
    %v2108 = vmul.f32 %v2104, %v2107
    %v2109 = vpack.c.bf16 %v2108, %v2108
    %v2112 = vunpack.c.l.b16 %v1650
    %v2113 = vunpack.c.l.b16 %v1651
    %v2114 = vpack.c.b16 %v2113, %v2112
    %v2117 = vsel %vm1814, %v2109, 0
    %2119 = vmatpush.bf16.msra.mxu0 0
    %2120 = vmatpush.bf16.msra.mxu0 0
    %2121 = vmatpush.bf16.msra.mxu0 0
    %2122 = vmatpush.bf16.msra.mxu0 0
    %2123 = vmatpush.bf16.msra.mxu0 0
    %2124 = vmatpush.bf16.msra.mxu0 0
    %2125 = vmatpush.bf16.msra.mxu0 0
    %2126 = vmatpush.bf16.msra.mxu0 %v2114
    %2127 = vmatmul.bf16.gmra.mxu0 %v2117
    %v2128 = vpop.f32.mrf.mxu0
    %v2129 = vadd.f32 0.0, %v2128
    %v2130 = vpop.f32.mrf.mxu0
    %2131 = vdwg.mxu0
    %v2132 = vadd.f32 %v2052, %v2129
    %v2133 = vadd.f32 %v1628, %v2132
    %v2134 = vadd.f32 %v2133, %v1652
    %v2135 = vsel %vm1698, %v2134, 0.0
    %2136 = vadd.xlane.f32.xlu0 %v2135
    %v2137 = vpop.xlane.xlu0 %2136
    %v2138 = vmul.f32 %v2137, %v1708
    %v2139 = vsub.f32 %v2134, %v2138
    %v2140 = vmul.f32 %v2139, %v2139
    %v2141 = vsel %vm1698, %v2140, 0.0
    %2142 = vadd.xlane.f32.xlu0 %v2141
    %v2143 = vpop.xlane.xlu0 %2142
    %v2144 = vmul.f32 %v2143, %v1708
    %v2145 = vadd.f32 %v2144, 1e-05
    %v2146 = vrsqrt.pop %v2145
    %v2147 = vmul.f32 %v2146, %v2145
    %v2148 = vmul.f32 %v2147, %v2146
    %v2149 = vmul.f32 0.5, %v2148
    %v2150 = vsub.f32 1.5, %v2149
    %v2151 = vmul.f32 %v2146, %v2150
    %vm2152 = vweird.f32 %v2145
    %vm2153 = vweird.f32 %v2146
    %vm2154 = vmor %vm2152, %vm2153
    %v2155 = vsel %vm2154, %v2146, %v2151
    %v2156 = vmul.f32 %v2139, %v2155
    %v2157 = vmul.f32 %v2156, %v1653
    %v2158 = vadd.f32 %v2157, %v1654
    %v2159 = vpack.c.bf16 %v2158, %v2158
    %v2161 = vperm.slane %v1664, 0
    %v2162 = vperm.slane %v1664, 1
    %v2173 = vunpack.c.l.b16 %v1655
    %v2174 = vunpack.c.h.b16 %v1655
    %v2175 = vunpack.c.l.b16 %v1656
    %v2176 = vunpack.c.h.b16 %v1656
    %v2177 = vunpack.c.l.b16 %v1657
    %v2178 = vunpack.c.h.b16 %v1657
    %v2179 = vunpack.c.l.b16 %v1658
    %v2180 = vunpack.c.h.b16 %v1658
    %v2181 = vunpack.c.l.b16 %v1659
    %v2182 = vunpack.c.h.b16 %v1659
    %v2183 = vunpack.c.l.b16 %v1660
    %v2184 = vunpack.c.h.b16 %v1660
    %v2185 = vunpack.c.l.b16 %v1661
    %v2186 = vunpack.c.h.b16 %v1661
    %v2187 = vunpack.c.l.b16 %v1662
    %v2188 = vunpack.c.h.b16 %v1662
    %v2189 = vpack.c.b16 %v2175, %v2173
    %v2190 = vpack.c.b16 %v2176, %v2174
    %v2191 = vpack.c.b16 %v2179, %v2177
    %v2192 = vpack.c.b16 %v2180, %v2178
    %v2193 = vpack.c.b16 %v2183, %v2181
    %v2194 = vpack.c.b16 %v2184, %v2182
    %v2195 = vpack.c.b16 %v2187, %v2185
    %v2196 = vpack.c.b16 %v2188, %v2186
    %v2206 = vsel %vm1698, %v2159, 0
    %2208 = vmatpush.bf16.msra.mxu0 0
    %2209 = vmatpush.bf16.msra.mxu0 0
    %2210 = vmatpush.bf16.msra.mxu0 0
    %2211 = vmatpush.bf16.msra.mxu0 0
    %2212 = vmatpush.bf16.msra.mxu0 %v2195
    %2213 = vmatpush.bf16.msra.mxu0 %v2193
    %2214 = vmatpush.bf16.msra.mxu0 %v2191
    %2215 = vmatpush.bf16.msra.mxu0 %v2189
    %2216 = vmatmul.bf16.gmra.mxu0 %v2206
    %v2217 = vpop.f32.mrf.mxu0
    %v2218 = vadd.f32 %v2161, %v2217
    %v2219 = vpop.f32.mrf.mxu0
    %2220 = vdwg.mxu0
    %2221 = vmatpush.bf16.msra.mxu0 0
    %2222 = vmatpush.bf16.msra.mxu0 0
    %2223 = vmatpush.bf16.msra.mxu0 0
    %2224 = vmatpush.bf16.msra.mxu0 0
    %2225 = vmatpush.bf16.msra.mxu0 %v2196
    %2226 = vmatpush.bf16.msra.mxu0 %v2194
    %2227 = vmatpush.bf16.msra.mxu0 %v2192
    %2228 = vmatpush.bf16.msra.mxu0 %v2190
    %2229 = vmatmul.bf16.gmra.mxu0 %v2206
    %v2230 = vpop.f32.mrf.mxu0
    %v2231 = vadd.f32 %v2162, %v2230
    %v2232 = vpop.f32.mrf.mxu0
    %2233 = vdwg.mxu0
    %v2234 = vmul.f32 %v2218, %v2218
    %v2235 = vmul.f32 %v2231, %v2231
    %v2236 = vmul.f32 %v2218, %v2234
    %v2237 = vmul.f32 %v2231, %v2235
    %v2238 = vmul.f32 %v2236, 0.044715
    %v2239 = vmul.f32 %v2237, 0.044715
    %v2240 = vadd.f32 %v2218, %v2238
    %v2241 = vadd.f32 %v2231, %v2239
    %v2242 = vmul.f32 %v2240, 0.7978846
    %v2243 = vmul.f32 %v2241, 0.7978846
    %v2244 = vtanh.pop %v2242
    %v2245 = vtanh.pop %v2243
    %v2246 = vadd.f32 %v2244, 1.0
    %v2247 = vadd.f32 %v2245, 1.0
    %v2248 = vmul.f32 %v2246, 0.5
    %v2249 = vmul.f32 %v2247, 0.5
    %v2250 = vmul.f32 %v2218, %v2248
    %v2251 = vmul.f32 %v2231, %v2249
    %v2252 = vpack.c.bf16 %v2250, %v2250
    %v2253 = vpack.c.bf16 %v2251, %v2251
    %v2286 = vunpack.c.l.b16 %v1665
    %v2287 = vunpack.c.l.b16 %v1666
    %v2288 = vunpack.c.l.b16 %v1667
    %v2289 = vunpack.c.l.b16 %v1668
    %v2290 = vunpack.c.l.b16 %v1669
    %v2291 = vunpack.c.l.b16 %v1670
    %v2292 = vunpack.c.l.b16 %v1671
    %v2293 = vunpack.c.l.b16 %v1672
    %v2294 = vunpack.c.l.b16 %v1673
    %v2295 = vunpack.c.l.b16 %v1674
    %v2296 = vunpack.c.l.b16 %v1675
    %v2297 = vunpack.c.l.b16 %v1676
    %v2298 = vunpack.c.l.b16 %v1677
    %v2299 = vunpack.c.l.b16 %v1678
    %v2300 = vunpack.c.l.b16 %v1679
    %v2301 = vunpack.c.l.b16 %v1680
    %v2302 = vunpack.c.l.b16 %v1681
    %v2303 = vunpack.c.l.b16 %v1682
    %v2304 = vunpack.c.l.b16 %v1683
    %v2305 = vunpack.c.l.b16 %v1684
    %v2306 = vunpack.c.l.b16 %v1685
    %v2307 = vunpack.c.l.b16 %v1686
    %v2308 = vunpack.c.l.b16 %v1687
    %v2309 = vunpack.c.l.b16 %v1688
    %v2310 = vunpack.c.l.b16 %v1689
    %v2311 = vunpack.c.l.b16 %v1690
    %v2312 = vunpack.c.l.b16 %v1691
    %v2313 = vunpack.c.l.b16 %v1692
    %v2314 = vunpack.c.l.b16 %v1693
    %v2315 = vunpack.c.l.b16 %v1694
    %v2316 = vunpack.c.l.b16 %v1695
    %v2317 = vunpack.c.l.b16 %v1696
    %v2318 = vpack.c.b16 %v2287, %v2286
    %v2319 = vpack.c.b16 %v2289, %v2288
    %v2320 = vpack.c.b16 %v2291, %v2290
    %v2321 = vpack.c.b16 %v2293, %v2292
    %v2322 = vpack.c.b16 %v2295, %v2294
    %v2323 = vpack.c.b16 %v2297, %v2296
    %v2324 = vpack.c.b16 %v2299, %v2298
    %v2325 = vpack.c.b16 %v2301, %v2300
    %v2326 = vpack.c.b16 %v2303, %v2302
    %v2327 = vpack.c.b16 %v2305, %v2304
    %v2328 = vpack.c.b16 %v2307, %v2306
    %v2329 = vpack.c.b16 %v2309, %v2308
    %v2330 = vpack.c.b16 %v2311, %v2310
    %v2331 = vpack.c.b16 %v2313, %v2312
    %v2332 = vpack.c.b16 %v2315, %v2314
    %v2333 = vpack.c.b16 %v2317, %v2316
    %2350 = vmatpush.bf16.msra.mxu0 %v2325
    %2351 = vmatpush.bf16.msra.mxu0 %v2324
    %2352 = vmatpush.bf16.msra.mxu0 %v2323
    %2353 = vmatpush.bf16.msra.mxu0 %v2322
    %2354 = vmatpush.bf16.msra.mxu0 %v2321
    %2355 = vmatpush.bf16.msra.mxu0 %v2320
    %2356 = vmatpush.bf16.msra.mxu0 %v2319
    %2357 = vmatpush.bf16.msra.mxu0 %v2318
    %2358 = vmatmul.bf16.gmra.mxu0 %v2252
    %v2359 = vpop.f32.mrf.mxu0
    %v2360 = vadd.f32 0.0, %v2359
    %v2361 = vpop.f32.mrf.mxu0
    %2362 = vdwg.mxu0
    %2363 = vmatpush.bf16.msra.mxu0 %v2333
    %2364 = vmatpush.bf16.msra.mxu0 %v2332
    %2365 = vmatpush.bf16.msra.mxu0 %v2331
    %2366 = vmatpush.bf16.msra.mxu0 %v2330
    %2367 = vmatpush.bf16.msra.mxu0 %v2329
    %2368 = vmatpush.bf16.msra.mxu0 %v2328
    %2369 = vmatpush.bf16.msra.mxu0 %v2327
    %2370 = vmatpush.bf16.msra.mxu0 %v2326
    %2371 = vmatmul.bf16.gmra.mxu0 %v2253
    %v2372 = vpop.f32.mrf.mxu0
    %v2373 = vadd.f32 %v2360, %v2372
    %v2374 = vpop.f32.mrf.mxu0
    %2375 = vdwg.mxu0
    %v2376 = vadd.f32 %v2134, %v2373
    %v2377 = vadd.f32 %v2376, %v1697
    %v2378 = vld [vmem:[%s3 + $0x190] ss:$0 sm:$0xff]
    %v2379 = vld [vmem:[%s3 + $0x1a0] ss:$0 sm:$0xff]
    %v2380 = vsel %vm1698, %v2377, 0.0
    %2381 = vadd.xlane.f32.xlu0 %v2380
    %v2382 = vpop.xlane.xlu0 %2381
    %v2383 = vmul.f32 %v2382, %v1708
    %v2384 = vsub.f32 %v2377, %v2383
    %v2385 = vmul.f32 %v2384, %v2384
    %v2386 = vsel %vm1698, %v2385, 0.0
    %2387 = vadd.xlane.f32.xlu0 %v2386
    %v2388 = vpop.xlane.xlu0 %2387
    %v2389 = vmul.f32 %v2388, %v1708
    %v2390 = vadd.f32 %v2389, 1e-05
    %v2391 = vrsqrt.pop %v2390
    %v2392 = vmul.f32 %v2391, %v2390
    %v2393 = vmul.f32 %v2392, %v2391
    %v2394 = vmul.f32 0.5, %v2393
    %v2395 = vsub.f32 1.5, %v2394
    %v2396 = vmul.f32 %v2391, %v2395
    %vm2397 = vweird.f32 %v2390
    %vm2398 = vweird.f32 %v2391
    %vm2399 = vmor %vm2397, %vm2398
    %v2400 = vsel %vm2399, %v2391, %v2396
    %v2401 = vmul.f32 %v2384, %v2400
    %v2402 = vmul.f32 %v2401, %v2378
    %v2403 = vadd.f32 %v2402, %v2379
    %v2404 = vld [vmem:[%s2 + $0x280] sm:$0x1]
    %v2405 = vpack.c.bf16 %v2403, %v2403
    %v2407 = vsel %vm589, %v2404, 0
    %v2410 = vsel %vm824, %v2405, 0
    %2412 = vmatpush.bf16.msra.mxu0 0
    %2413 = vmatpush.bf16.msra.mxu0 0
    %2414 = vmatpush.bf16.msra.mxu0 0
    %2415 = vmatpush.bf16.msra.mxu0 0
    %2416 = vmatpush.bf16.msra.mxu0 0
    %2417 = vmatpush.bf16.msra.mxu0 0
    %2418 = vmatpush.bf16.msra.mxu0 0
    %2419 = vmatpush.bf16.msra.mxu0 %v2410
    %2420 = vmatmul.bf16.gmra.mxu0 %v2407
    %v2421 = vpop.f32.mrf.mxu0
    %v2422 = vadd.f32 0.0, %v2421
    %v2423 = vpop.f32.mrf.mxu0
    %2424 = vdwg.mxu0
    %v2425 = vld [vmem:[%s2 + $0x240] sm:$0xf]
    %v2426 = vld [vmem:[%s2 + $0x248] sm:$0xf]
    %v2427 = vld [vmem:[%s2 + $0x250] sm:$0xf]
    %v2428 = vld [vmem:[%s2 + $0x258] sm:$0xf]
    %v2429 = vld [vmem:[%s2 + $0x260] sm:$0xf]
    %v2430 = vld [vmem:[%s2 + $0x268] sm:$0xf]
    %v2431 = vld [vmem:[%s2 + $0x270] sm:$0xf]
    %v2432 = vld [vmem:[%s2 + $0x278] sm:$0xf]
    %v2433 = vpack.c.bf16 %v2422, %v2422
    %v2434 = vld [vmem:[%s3 + $0x1b0] ss:$0 sm:$0xff]
    %v2443 = vunpack.c.l.b16 %v2425
    %v2444 = vunpack.c.l.b16 %v2426
    %v2445 = vunpack.c.l.b16 %v2427
    %v2446 = vunpack.c.l.b16 %v2428
    %v2447 = vunpack.c.l.b16 %v2429
    %v2448 = vunpack.c.l.b16 %v2430
    %v2449 = vunpack.c.l.b16 %v2431
    %v2450 = vunpack.c.l.b16 %v2432
    %v2451 = vpack.c.b16 %v2444, %v2443
    %v2452 = vpack.c.b16 %v2446, %v2445
    %v2453 = vpack.c.b16 %v2448, %v2447
    %v2454 = vpack.c.b16 %v2450, %v2449
    %v2460 = vsel %vm1698, %v2433, 0
    %2462 = vmatpush.bf16.msra.mxu0 0
    %2463 = vmatpush.bf16.msra.mxu0 0
    %2464 = vmatpush.bf16.msra.mxu0 0
    %2465 = vmatpush.bf16.msra.mxu0 0
    %2466 = vmatpush.bf16.msra.mxu0 %v2454
    %2467 = vmatpush.bf16.msra.mxu0 %v2453
    %2468 = vmatpush.bf16.msra.mxu0 %v2452
    %2469 = vmatpush.bf16.msra.mxu0 %v2451
    %2470 = vmatmul.bf16.gmra.mxu0 %v2460
    %v2471 = vpop.f32.mrf.mxu0
    %v2472 = vadd.f32 %v2434, %v2471
    %v2473 = vpop.f32.mrf.mxu0
    %2474 = vdwg.mxu0
    %2475 = vst [vmem:[#allocation3] sm:$0x3] %v2472
    // Predicated region
    $region18: #{forward.1} parent=1 // pred_check
      _
    $region19: #{forward.1} parent=1 // pred_check_branch
      %2477 = sbr.rel (0) target = $region21
    $region20: #{forward.1} parent=1 // pred_region
      %2479 = vsyncadd [#allocation4], 0
      %s2481 = sshll.u32 [#allocation3], 4
      %s2482 = int_to_ptr.vmem [resolvable:$true] %s2481
      %s2483 = sshll.u32 %s4, 4
      %s2484 = int_to_ptr.hbm [resolvable:$true] %s2483
      %2486 = dma.vmem_to_hbm [thread:$0]  %s2482, 32, %s2484, [#allocation4]
    $region21: #{forward.1} parent=1 // pred_fallthru
      _
    // Predicated region
    $region22: #{forward.1} parent=1 // pred_check
      _
    $region23: #{forward.1} parent=1 // pred_check_branch
      %2488 = sbr.rel (0) target = $region25
    $region24: #{forward.1} parent=1 // pred_region
      %2490 = dma.done [#allocation4], 32
    $region25: #{forward.1} parent=1 // pred_fallthru
      _
    %2491 = vsyncpa [#allocation4], 1

</llo_original>
